<compile_context>
chip_gen: v7x
topology: tpu7x:2x2x1
jax: 0.10.0
libtpu: 0.0.40
codegen_flags: <defaults>
</compile_context>

<pallas_src>
import functools

import jax
import jax.numpy as jnp
from jax import lax
from jax.experimental import pallas as pl
from jax.experimental.pallas import tpu as pltpu


def _mdlstm_kernel(num_layers, hidden_size, latent_size, gaussian_size, seq_len,
                   *refs):
    """Single-invocation kernel: stacked-LSTM recurrence + gmm_linear MDN head.

    Refs (inputs): x, h0, c0, w_ih0, w_hh0, b0,
                   [w_ih_l, w_hh_l, b_l] for l = 1..num_layers-1,
                   w_gmm, b_gmm
    Refs (outputs): head (seq, 2*G*L + G), h_final, c_final
    """
    H = hidden_size
    G = gaussian_size
    stride = gaussian_size * latent_size

    # --- unpack refs -------------------------------------------------------
    x_ref, h0_ref, c0_ref, wih0_ref, whh0_ref, b0_ref = refs[:6]
    idx = 6
    deep_refs = []
    for _ in range(num_layers - 1):
        deep_refs.append((refs[idx], refs[idx + 1], refs[idx + 2]))
        idx += 3
    wgmm_ref = refs[idx]
    bgmm_ref = refs[idx + 1]
    head_ref = refs[idx + 2]
    hT_ref = refs[idx + 3]
    cT_ref = refs[idx + 4]

    # --- hoisted layer-0 input projection (all timesteps at once) ----------
    xproj = (jnp.dot(x_ref[...], wih0_ref[...],
                     preferred_element_type=jnp.float32)
             + b0_ref[...])                                   # (seq, 4H)

    # Initial per-layer states, each (1, H).
    hs = [h0_ref[pl.ds(l, 1), :] for l in range(num_layers)]
    cs = [c0_ref[pl.ds(l, 1), :] for l in range(num_layers)]

    def lstm_cell(gates, c_prev):
        # Gate columns are pre-permuted to (i, f, o, g):
        #   one sigmoid over a contiguous (1, 3H) slice + one tanh over (1, H).
        sig = jax.nn.sigmoid(gates[:, 0:3 * H])
        g_g = jnp.tanh(gates[:, 3 * H:4 * H])
        i_g = sig[:, 0:H]
        f_g = sig[:, H:2 * H]
        o_g = sig[:, 2 * H:3 * H]
        c_new = f_g * c_prev + i_g * g_g
        h_new = o_g * jnp.tanh(c_new)
        return h_new, c_new

    # Top-layer outputs collected as a value (single (seq, H) block), no
    # per-row scratch stores / VMEM round trip.
    row_ids = lax.broadcasted_iota(jnp.int32, (seq_len, H), 0)
    outs = jnp.zeros((seq_len, H), jnp.float32)

    # Fully unrolled sequence loop: gives the scheduler visibility so the
    # recurrent (h @ W_hh) matmuls — which only depend on the previous step —
    # overlap the current step's activation chain.
    for t in range(seq_len):
        # Layer 0: input projection already hoisted; only the recurrent matmul
        # remains on the per-step dependency chain.
        gates0 = xproj[t:t + 1, :] + jnp.dot(
            hs[0], whh0_ref[...], preferred_element_type=jnp.float32)
        hs[0], cs[0] = lstm_cell(gates0, cs[0])
        inp = hs[0]
        for l in range(1, num_layers):
            wih_ref, whh_ref, b_ref = deep_refs[l - 1]
            # Recurrent side (prev-step h) — schedulable early, off the
            # critical path once the loop is unrolled.
            rec = jnp.dot(hs[l], whh_ref[...],
                          preferred_element_type=jnp.float32) + b_ref[...]
            # Input side (this step's lower-layer output) — the critical path.
            gates = jnp.dot(inp, wih_ref[...],
                            preferred_element_type=jnp.float32) + rec
            hs[l], cs[l] = lstm_cell(gates, cs[l])
            inp = hs[l]
        outs = jnp.where(row_ids == t, inp, outs)

    # --- gmm_linear + MDN head (one (seq, H) @ (H, (2L+1)G) matmul) --------
    gmm = (jnp.dot(outs, wgmm_ref[...], preferred_element_type=jnp.float32)
           + bgmm_ref[...])                                   # (seq, (2L+1)G)

    pi = gmm[:, 2 * stride:2 * stride + G]
    m = jnp.max(pi, axis=-1, keepdims=True)
    logpi = pi - m - jnp.log(jnp.sum(jnp.exp(pi - m), axis=-1, keepdims=True))

    # Single lane-dense fused output buffer: [mus | sigmas | logpi].
    head_ref[:, 0:stride] = gmm[:, 0:stride]                            # mus
    head_ref[:, stride:2 * stride] = jnp.exp(gmm[:, stride:2 * stride])  # sigmas
    head_ref[:, 2 * stride:2 * stride + G] = logpi                      # log pi

    # Final hidden/cell states (PyTorch forward updates self.h_0 / self.c_0).
    for l in range(num_layers):
        hT_ref[pl.ds(l, 1), :] = hs[l]
        cT_ref[pl.ds(l, 1), :] = cs[l]


def _reorder_gates(w, hidden_size):
    """Permute 4H gate columns from PyTorch (i, f, g, o) to kernel (i, f, o, g)."""
    H = hidden_size
    return jnp.concatenate(
        [w[..., 0:2 * H], w[..., 3 * H:4 * H], w[..., 2 * H:3 * H]], axis=-1)


def _pack_params(params, hidden_size):
    """Offline gate-column permutation; PyTorch order only at the API boundary."""
    H = hidden_size
    layers = params["layers"]
    wih0 = _reorder_gates(layers[0][0], H)
    whh0 = _reorder_gates(layers[0][1], H)
    b0 = _reorder_gates(layers[0][2], H)
    deep = [tuple(_reorder_gates(a, H) for a in layers[l])
            for l in range(1, len(layers))]
    return wih0, whh0, b0, deep


def mdlstm_forward(action, latent, h0, c0, params, *,
                   latent_size, hidden_size, num_layers, gaussian_size):
    """Wrapper: concat (glue), weight repacking (glue), one pallas_call,
    split + reshape of the fused MDN output (glue)."""
    seq_len = action.shape[0]
    x = jnp.concatenate([action, latent], axis=-1).astype(jnp.float32)
    G, L, H = gaussian_size, latent_size, hidden_size
    stride = G * L
    head_width = 2 * stride + G

    wih0, whh0, b0, deep = _pack_params(params, H)
    inputs = [x, h0, c0, wih0, whh0, b0]
    for wih, whh, b in deep:
        inputs += [wih, whh, b]
    inputs += [params["wgmm"], params["bgmm"]]

    vmem = pl.BlockSpec(memory_space=pltpu.MemorySpace.VMEM)
    kernel = functools.partial(_mdlstm_kernel, num_layers, H, L, G, seq_len)

    head, h_n, c_n = pl.pallas_call(
        kernel,
        out_shape=(
            jax.ShapeDtypeStruct((seq_len, head_width), jnp.float32),
            jax.ShapeDtypeStruct((num_layers, H), jnp.float32),
            jax.ShapeDtypeStruct((num_layers, H), jnp.float32),
        ),
        in_specs=[vmem] * len(inputs),
        out_specs=(vmem, vmem, vmem),
    )(*inputs)

    mus = head[:, 0:stride].reshape(seq_len, G, L)
    sigmas = head[:, stride:2 * stride].reshape(seq_len, G, L)
    logpi = head[:, 2 * stride:2 * stride + G]
    return mus, sigmas, logpi, (h_n, c_n)


def init_params(key, *, latent_size, action_size, hidden_size, num_layers,
                gaussian_size):
    """Deterministic synthetic parameters matching nn.LSTM / nn.Linear shapes
    (PyTorch gate order i,f,g,o; b_ih + b_hh pre-summed — same math)."""
    in_dim = latent_size + action_size
    out_dim = (2 * latent_size + 1) * gaussian_size
    k = 1.0 / jnp.sqrt(jnp.float32(hidden_size))
    keys = jax.random.split(key, 4 * num_layers + 2)
    ki = 0
    layers = []
    for l in range(num_layers):
        isz = in_dim if l == 0 else hidden_size
        wih = jax.random.uniform(keys[ki], (isz, 4 * hidden_size),
                                 jnp.float32, -k, k); ki += 1
        whh = jax.random.uniform(keys[ki], (hidden_size, 4 * hidden_size),
                                 jnp.float32, -k, k); ki += 1
        bih = jax.random.uniform(keys[ki], (1, 4 * hidden_size),
                                 jnp.float32, -k, k); ki += 1
        bhh = jax.random.uniform(keys[ki], (1, 4 * hidden_size),
                                 jnp.float32, -k, k); ki += 1
        layers.append((wih, whh, bih + bhh))
    wgmm = jax.random.uniform(keys[ki], (hidden_size, out_dim),
                              jnp.float32, -k, k); ki += 1
    bgmm = jax.random.uniform(keys[ki], (1, out_dim),
                              jnp.float32, -k, k); ki += 1
    return {"layers": layers, "wgmm": wgmm, "bgmm": bgmm}


def _mdlstm_reference(action, latent, h0, c0, params, *,
                      latent_size, hidden_size, num_layers, gaussian_size):
    """Pure-JAX reference (PyTorch gate order, full-f32 matmuls)."""
    x = jnp.concatenate([action, latent], axis=-1).astype(jnp.float32)
    H = hidden_size
    hp = lax.Precision.HIGHEST
    hs = [h0[l:l + 1, :] for l in range(num_layers)]
    cs = [c0[l:l + 1, :] for l in range(num_layers)]
    rows = []
    for t in range(x.shape[0]):
        inp = x[t:t + 1, :]
        for l in range(num_layers):
            wih, whh, b = params["layers"][l]
            gates = (jnp.dot(inp, wih, precision=hp)
                     + jnp.dot(hs[l], whh, precision=hp) + b)
            i = jax.nn.sigmoid(gates[:, 0:H])
            f = jax.nn.sigmoid(gates[:, H:2 * H])
            g = jnp.tanh(gates[:, 2 * H:3 * H])
            o = jax.nn.sigmoid(gates[:, 3 * H:4 * H])
            cs[l] = f * cs[l] + i * g
            hs[l] = o * jnp.tanh(cs[l])
            inp = hs[l]
        rows.append(inp)
    outs = jnp.concatenate(rows, axis=0)
    gmm = jnp.dot(outs, params["wgmm"], precision=hp) + params["bgmm"]
    stride = gaussian_size * latent_size
    mus = gmm[:, :stride].reshape(-1, gaussian_size, latent_size)
    sigmas = jnp.exp(gmm[:, stride:2 * stride]).reshape(-1, gaussian_size,
                                                        latent_size)
    logpi = jax.nn.log_softmax(gmm[:, 2 * stride:2 * stride + gaussian_size],
                               axis=-1)
    return mus, sigmas, logpi, (jnp.concatenate(hs, 0), jnp.concatenate(cs, 0))


if __name__ == "__main__":
    latent_size = 16
    action_size = 4
    hidden_size = 32
    num_layers = 2
    gaussian_size = 5
    seq_len = 8

    root = jax.random.PRNGKey(0)
    k_par, k_h, k_c, k_a, k_l = jax.random.split(root, 5)

    params = init_params(k_par, latent_size=latent_size, action_size=action_size,
                         hidden_size=hidden_size, num_layers=num_layers,
                         gaussian_size=gaussian_size)

    # init_hs(): randn hidden/cell states, shape (num_layers, hidden_size)
    h0 = jax.random.normal(k_h, (num_layers, hidden_size), jnp.float32)
    c0 = jax.random.normal(k_c, (num_layers, hidden_size), jnp.float32)

    action = jax.random.normal(k_a, (seq_len, action_size), jnp.float32)
    latent = jax.random.normal(k_l, (seq_len, latent_size), jnp.float32)

    fwd = jax.jit(functools.partial(
        mdlstm_forward, latent_size=latent_size, hidden_size=hidden_size,
        num_layers=num_layers, gaussian_size=gaussian_size))

    mus, sigmas, logpi, (h_n, c_n) = fwd(action, latent, h0, c0, params)
    jax.block_until_ready((mus, sigmas, logpi, h_n, c_n))

    assert mus.shape == (seq_len, gaussian_size, latent_size)
    assert sigmas.shape == (seq_len, gaussian_size, latent_size)
    assert logpi.shape == (seq_len, gaussian_size)
    assert h_n.shape == (num_layers, hidden_size)
    assert c_n.shape == (num_layers, hidden_size)

    # Cross-check against the pure-JAX reference (loose tolerance to absorb
    # MXU-vs-XLA f32 matmul precision differences; real bugs are O(1) off).
    r_mus, r_sig, r_lp, (r_h, r_c) = _mdlstm_reference(
        action, latent, h0, c0, params,
        latent_size=latent_size, hidden_size=hidden_size,
        num_layers=num_layers, gaussian_size=gaussian_size)
    ok = (jnp.allclose(mus, r_mus, rtol=5e-2, atol=5e-2)
          and jnp.allclose(sigmas, r_sig, rtol=5e-2, atol=5e-2)
          and jnp.allclose(logpi, r_lp, rtol=5e-2, atol=5e-2)
          and jnp.allclose(h_n, r_h, rtol=5e-2, atol=5e-2)
          and jnp.allclose(c_n, r_c, rtol=5e-2, atol=5e-2))
    assert bool(ok), "Pallas MDLSTM diverges from the pure-JAX reference"

    print("KERNEL_OK")
</pallas_src>

<mosaic_0001>
module attributes {stable_mosaic.version = 11 : i64} {
  func.func @_mdlstm_kernel(%arg0: memref<8x20xf32, #tpu.memory_space<vmem>>, %arg1: memref<2x32xf32, #tpu.memory_space<vmem>>, %arg2: memref<2x32xf32, #tpu.memory_space<vmem>>, %arg3: memref<20x128xf32, #tpu.memory_space<vmem>>, %arg4: memref<32x128xf32, #tpu.memory_space<vmem>>, %arg5: memref<1x128xf32, #tpu.memory_space<vmem>>, %arg6: memref<32x128xf32, #tpu.memory_space<vmem>>, %arg7: memref<32x128xf32, #tpu.memory_space<vmem>>, %arg8: memref<1x128xf32, #tpu.memory_space<vmem>>, %arg9: memref<32x165xf32, #tpu.memory_space<vmem>>, %arg10: memref<1x165xf32, #tpu.memory_space<vmem>>, %arg11: memref<8x165xf32, #tpu.memory_space<vmem>>, %arg12: memref<2x32xf32, #tpu.memory_space<vmem>>, %arg13: memref<2x32xf32, #tpu.memory_space<vmem>>) attributes {dimension_semantics = [], scalar_prefetch = 0 : i64, scratch_operands = 0 : i64, tpu.core_type = #tpu.core_type<tc>} {
    %c0 = arith.constant 0 : index
    %c0_0 = arith.constant 0 : index
    %0 = vector.load %arg0[%c0, %c0_0] : memref<8x20xf32, #tpu.memory_space<vmem>>, vector<8x20xf32>
    %c0_1 = arith.constant 0 : index
    %c0_2 = arith.constant 0 : index
    %1 = vector.load %arg3[%c0_1, %c0_2] : memref<20x128xf32, #tpu.memory_space<vmem>>, vector<20x128xf32>
    %cst = arith.constant dense<0.000000e+00> : vector<8x128xf32>
    %2 = tpu.matmul %0, %1, %cst {dimension_numbers = #tpu.dot_dimension_numbers<[1], [0], [0], [1], [0, 0, 1, 1], [], []>} : vector<8x20xf32>, vector<20x128xf32>, vector<8x128xf32> -> vector<8x128xf32>
    %c0_3 = arith.constant 0 : index
    %c0_4 = arith.constant 0 : index
    %3 = vector.load %arg5[%c0_3, %c0_4] : memref<1x128xf32, #tpu.memory_space<vmem>>, vector<1x128xf32>
    %4 = vector.broadcast %3 : vector<1x128xf32> to vector<8x128xf32>
    %5 = arith.addf %2, %4 : vector<8x128xf32>
    %c0_5 = arith.constant 0 : index
    %c0_6 = arith.constant 0 : index
    %6 = vector.load %arg1[%c0_5, %c0_6] : memref<2x32xf32, #tpu.memory_space<vmem>>, vector<1x32xf32>
    %c1 = arith.constant 1 : index
    %c0_7 = arith.constant 0 : index
    %7 = vector.load %arg1[%c1, %c0_7] : memref<2x32xf32, #tpu.memory_space<vmem>>, vector<1x32xf32>
    %c0_8 = arith.constant 0 : index
    %c0_9 = arith.constant 0 : index
    %8 = vector.load %arg2[%c0_8, %c0_9] : memref<2x32xf32, #tpu.memory_space<vmem>>, vector<1x32xf32>
    %c1_10 = arith.constant 1 : index
    %c0_11 = arith.constant 0 : index
    %9 = vector.load %arg2[%c1_10, %c0_11] : memref<2x32xf32, #tpu.memory_space<vmem>>, vector<1x32xf32>
    %10 = tpu.iota {dimensions = array<i32: 0>} : vector<8x32xi32>
    %cst_12 = arith.constant 0.000000e+00 : f32
    %11 = vector.broadcast %cst_12 : f32 to vector<8x32xf32>
    %12 = vector.extract_strided_slice %5 {offsets = [0, 0], sizes = [1, 128], strides = [1, 1]} : vector<8x128xf32> to vector<1x128xf32>
    %c0_13 = arith.constant 0 : index
    %c0_14 = arith.constant 0 : index
    %13 = vector.load %arg4[%c0_13, %c0_14] : memref<32x128xf32, #tpu.memory_space<vmem>>, vector<32x128xf32>
    %cst_15 = arith.constant dense<0.000000e+00> : vector<1x128xf32>
    %14 = tpu.matmul %6, %13, %cst_15 {dimension_numbers = #tpu.dot_dimension_numbers<[1], [0], [0], [1], [0, 0, 1, 1], [], []>} : vector<1x32xf32>, vector<32x128xf32>, vector<1x128xf32> -> vector<1x128xf32>
    %15 = arith.addf %12, %14 : vector<1x128xf32>
    %16 = vector.extract_strided_slice %15 {offsets = [0, 0], sizes = [1, 96], strides = [1, 1]} : vector<1x128xf32> to vector<1x96xf32>
    %17 = arith.negf %16 : vector<1x96xf32>
    %18 = math.exp %17 : vector<1x96xf32>
    %cst_16 = arith.constant 1.000000e+00 : f32
    %19 = vector.broadcast %cst_16 : f32 to vector<1x96xf32>
    %20 = arith.addf %19, %18 : vector<1x96xf32>
    %21 = arith.divf %19, %20 : vector<1x96xf32>
    %22 = vector.extract_strided_slice %15 {offsets = [0, 96], sizes = [1, 32], strides = [1, 1]} : vector<1x128xf32> to vector<1x32xf32>
    %23 = math.tanh %22 : vector<1x32xf32>
    %24 = vector.extract_strided_slice %21 {offsets = [0, 0], sizes = [1, 32], strides = [1, 1]} : vector<1x96xf32> to vector<1x32xf32>
    %25 = vector.extract_strided_slice %21 {offsets = [0, 32], sizes = [1, 32], strides = [1, 1]} : vector<1x96xf32> to vector<1x32xf32>
    %26 = vector.extract_strided_slice %21 {offsets = [0, 64], sizes = [1, 32], strides = [1, 1]} : vector<1x96xf32> to vector<1x32xf32>
    %27 = arith.mulf %25, %8 : vector<1x32xf32>
    %28 = arith.mulf %24, %23 : vector<1x32xf32>
    %29 = arith.addf %27, %28 : vector<1x32xf32>
    %30 = math.tanh %29 : vector<1x32xf32>
    %31 = arith.mulf %26, %30 : vector<1x32xf32>
    %c0_17 = arith.constant 0 : index
    %c0_18 = arith.constant 0 : index
    %32 = vector.load %arg7[%c0_17, %c0_18] : memref<32x128xf32, #tpu.memory_space<vmem>>, vector<32x128xf32>
    %cst_19 = arith.constant dense<0.000000e+00> : vector<1x128xf32>
    %33 = tpu.matmul %7, %32, %cst_19 {dimension_numbers = #tpu.dot_dimension_numbers<[1], [0], [0], [1], [0, 0, 1, 1], [], []>} : vector<1x32xf32>, vector<32x128xf32>, vector<1x128xf32> -> vector<1x128xf32>
    %c0_20 = arith.constant 0 : index
    %c0_21 = arith.constant 0 : index
    %34 = vector.load %arg8[%c0_20, %c0_21] : memref<1x128xf32, #tpu.memory_space<vmem>>, vector<1x128xf32>
    %35 = arith.addf %33, %34 : vector<1x128xf32>
    %c0_22 = arith.constant 0 : index
    %c0_23 = arith.constant 0 : index
    %36 = vector.load %arg6[%c0_22, %c0_23] : memref<32x128xf32, #tpu.memory_space<vmem>>, vector<32x128xf32>
    %cst_24 = arith.constant dense<0.000000e+00> : vector<1x128xf32>
    %37 = tpu.matmul %31, %36, %cst_24 {dimension_numbers = #tpu.dot_dimension_numbers<[1], [0], [0], [1], [0, 0, 1, 1], [], []>} : vector<1x32xf32>, vector<32x128xf32>, vector<1x128xf32> -> vector<1x128xf32>
    %38 = arith.addf %37, %35 : vector<1x128xf32>
    %39 = vector.extract_strided_slice %38 {offsets = [0, 0], sizes = [1, 96], strides = [1, 1]} : vector<1x128xf32> to vector<1x96xf32>
    %40 = arith.negf %39 : vector<1x96xf32>
    %41 = math.exp %40 : vector<1x96xf32>
    %cst_25 = arith.constant 1.000000e+00 : f32
    %42 = vector.broadcast %cst_25 : f32 to vector<1x96xf32>
    %43 = arith.addf %42, %41 : vector<1x96xf32>
    %44 = arith.divf %42, %43 : vector<1x96xf32>
    %45 = vector.extract_strided_slice %38 {offsets = [0, 96], sizes = [1, 32], strides = [1, 1]} : vector<1x128xf32> to vector<1x32xf32>
    %46 = math.tanh %45 : vector<1x32xf32>
    %47 = vector.extract_strided_slice %44 {offsets = [0, 0], sizes = [1, 32], strides = [1, 1]} : vector<1x96xf32> to vector<1x32xf32>
    %48 = vector.extract_strided_slice %44 {offsets = [0, 32], sizes = [1, 32], strides = [1, 1]} : vector<1x96xf32> to vector<1x32xf32>
    %49 = vector.extract_strided_slice %44 {offsets = [0, 64], sizes = [1, 32], strides = [1, 1]} : vector<1x96xf32> to vector<1x32xf32>
    %50 = arith.mulf %48, %9 : vector<1x32xf32>
    %51 = arith.mulf %47, %46 : vector<1x32xf32>
    %52 = arith.addf %50, %51 : vector<1x32xf32>
    %53 = math.tanh %52 : vector<1x32xf32>
    %54 = arith.mulf %49, %53 : vector<1x32xf32>
    %c0_i32 = arith.constant 0 : i32
    %55 = vector.broadcast %c0_i32 : i32 to vector<8x32xi32>
    %56 = arith.cmpi eq, %10, %55 : vector<8x32xi32>
    %57 = vector.shape_cast %54 : vector<1x32xf32> to vector<1x32xf32>
    %58 = vector.broadcast %57 : vector<1x32xf32> to vector<8x32xf32>
    %59 = arith.select %56, %58, %11 : vector<8x32xi1>, vector<8x32xf32>
    %60 = vector.extract_strided_slice %5 {offsets = [1, 0], sizes = [1, 128], strides = [1, 1]} : vector<8x128xf32> to vector<1x128xf32>
    %c0_26 = arith.constant 0 : index
    %c0_27 = arith.constant 0 : index
    %61 = vector.load %arg4[%c0_26, %c0_27] : memref<32x128xf32, #tpu.memory_space<vmem>>, vector<32x128xf32>
    %cst_28 = arith.constant dense<0.000000e+00> : vector<1x128xf32>
    %62 = tpu.matmul %31, %61, %cst_28 {dimension_numbers = #tpu.dot_dimension_numbers<[1], [0], [0], [1], [0, 0, 1, 1], [], []>} : vector<1x32xf32>, vector<32x128xf32>, vector<1x128xf32> -> vector<1x128xf32>
    %63 = arith.addf %60, %62 : vector<1x128xf32>
    %64 = vector.extract_strided_slice %63 {offsets = [0, 0], sizes = [1, 96], strides = [1, 1]} : vector<1x128xf32> to vector<1x96xf32>
    %65 = arith.negf %64 : vector<1x96xf32>
    %66 = math.exp %65 : vector<1x96xf32>
    %cst_29 = arith.constant 1.000000e+00 : f32
    %67 = vector.broadcast %cst_29 : f32 to vector<1x96xf32>
    %68 = arith.addf %67, %66 : vector<1x96xf32>
    %69 = arith.divf %67, %68 : vector<1x96xf32>
    %70 = vector.extract_strided_slice %63 {offsets = [0, 96], sizes = [1, 32], strides = [1, 1]} : vector<1x128xf32> to vector<1x32xf32>
    %71 = math.tanh %70 : vector<1x32xf32>
    %72 = vector.extract_strided_slice %69 {offsets = [0, 0], sizes = [1, 32], strides = [1, 1]} : vector<1x96xf32> to vector<1x32xf32>
    %73 = vector.extract_strided_slice %69 {offsets = [0, 32], sizes = [1, 32], strides = [1, 1]} : vector<1x96xf32> to vector<1x32xf32>
    %74 = vector.extract_strided_slice %69 {offsets = [0, 64], sizes = [1, 32], strides = [1, 1]} : vector<1x96xf32> to vector<1x32xf32>
    %75 = arith.mulf %73, %29 : vector<1x32xf32>
    %76 = arith.mulf %72, %71 : vector<1x32xf32>
    %77 = arith.addf %75, %76 : vector<1x32xf32>
    %78 = math.tanh %77 : vector<1x32xf32>
    %79 = arith.mulf %74, %78 : vector<1x32xf32>
    %c0_30 = arith.constant 0 : index
    %c0_31 = arith.constant 0 : index
    %80 = vector.load %arg7[%c0_30, %c0_31] : memref<32x128xf32, #tpu.memory_space<vmem>>, vector<32x128xf32>
    %cst_32 = arith.constant dense<0.000000e+00> : vector<1x128xf32>
    %81 = tpu.matmul %54, %80, %cst_32 {dimension_numbers = #tpu.dot_dimension_numbers<[1], [0], [0], [1], [0, 0, 1, 1], [], []>} : vector<1x32xf32>, vector<32x128xf32>, vector<1x128xf32> -> vector<1x128xf32>
    %c0_33 = arith.constant 0 : index
    %c0_34 = arith.constant 0 : index
    %82 = vector.load %arg8[%c0_33, %c0_34] : memref<1x128xf32, #tpu.memory_space<vmem>>, vector<1x128xf32>
    %83 = arith.addf %81, %82 : vector<1x128xf32>
    %c0_35 = arith.constant 0 : index
    %c0_36 = arith.constant 0 : index
    %84 = vector.load %arg6[%c0_35, %c0_36] : memref<32x128xf32, #tpu.memory_space<vmem>>, vector<32x128xf32>
    %cst_37 = arith.constant dense<0.000000e+00> : vector<1x128xf32>
    %85 = tpu.matmul %79, %84, %cst_37 {dimension_numbers = #tpu.dot_dimension_numbers<[1], [0], [0], [1], [0, 0, 1, 1], [], []>} : vector<1x32xf32>, vector<32x128xf32>, vector<1x128xf32> -> vector<1x128xf32>
    %86 = arith.addf %85, %83 : vector<1x128xf32>
    %87 = vector.extract_strided_slice %86 {offsets = [0, 0], sizes = [1, 96], strides = [1, 1]} : vector<1x128xf32> to vector<1x96xf32>
    %88 = arith.negf %87 : vector<1x96xf32>
    %89 = math.exp %88 : vector<1x96xf32>
    %cst_38 = arith.constant 1.000000e+00 : f32
    %90 = vector.broadcast %cst_38 : f32 to vector<1x96xf32>
    %91 = arith.addf %90, %89 : vector<1x96xf32>
    %92 = arith.divf %90, %91 : vector<1x96xf32>
    %93 = vector.extract_strided_slice %86 {offsets = [0, 96], sizes = [1, 32], strides = [1, 1]} : vector<1x128xf32> to vector<1x32xf32>
    %94 = math.tanh %93 : vector<1x32xf32>
    %95 = vector.extract_strided_slice %92 {offsets = [0, 0], sizes = [1, 32], strides = [1, 1]} : vector<1x96xf32> to vector<1x32xf32>
    %96 = vector.extract_strided_slice %92 {offsets = [0, 32], sizes = [1, 32], strides = [1, 1]} : vector<1x96xf32> to vector<1x32xf32>
    %97 = vector.extract_strided_slice %92 {offsets = [0, 64], sizes = [1, 32], strides = [1, 1]} : vector<1x96xf32> to vector<1x32xf32>
    %98 = arith.mulf %96, %52 : vector<1x32xf32>
    %99 = arith.mulf %95, %94 : vector<1x32xf32>
    %100 = arith.addf %98, %99 : vector<1x32xf32>
    %101 = math.tanh %100 : vector<1x32xf32>
    %102 = arith.mulf %97, %101 : vector<1x32xf32>
    %c1_i32 = arith.constant 1 : i32
    %103 = vector.broadcast %c1_i32 : i32 to vector<8x32xi32>
    %104 = arith.cmpi eq, %10, %103 : vector<8x32xi32>
    %105 = vector.shape_cast %102 : vector<1x32xf32> to vector<1x32xf32>
    %106 = vector.broadcast %105 : vector<1x32xf32> to vector<8x32xf32>
    %107 = arith.select %104, %106, %59 : vector<8x32xi1>, vector<8x32xf32>
    %108 = vector.extract_strided_slice %5 {offsets = [2, 0], sizes = [1, 128], strides = [1, 1]} : vector<8x128xf32> to vector<1x128xf32>
    %c0_39 = arith.constant 0 : index
    %c0_40 = arith.constant 0 : index
    %109 = vector.load %arg4[%c0_39, %c0_40] : memref<32x128xf32, #tpu.memory_space<vmem>>, vector<32x128xf32>
    %cst_41 = arith.constant dense<0.000000e+00> : vector<1x128xf32>
    %110 = tpu.matmul %79, %109, %cst_41 {dimension_numbers = #tpu.dot_dimension_numbers<[1], [0], [0], [1], [0, 0, 1, 1], [], []>} : vector<1x32xf32>, vector<32x128xf32>, vector<1x128xf32> -> vector<1x128xf32>
    %111 = arith.addf %108, %110 : vector<1x128xf32>
    %112 = vector.extract_strided_slice %111 {offsets = [0, 0], sizes = [1, 96], strides = [1, 1]} : vector<1x128xf32> to vector<1x96xf32>
    %113 = arith.negf %112 : vector<1x96xf32>
    %114 = math.exp %113 : vector<1x96xf32>
    %cst_42 = arith.constant 1.000000e+00 : f32
    %115 = vector.broadcast %cst_42 : f32 to vector<1x96xf32>
    %116 = arith.addf %115, %114 : vector<1x96xf32>
    %117 = arith.divf %115, %116 : vector<1x96xf32>
    %118 = vector.extract_strided_slice %111 {offsets = [0, 96], sizes = [1, 32], strides = [1, 1]} : vector<1x128xf32> to vector<1x32xf32>
    %119 = math.tanh %118 : vector<1x32xf32>
    %120 = vector.extract_strided_slice %117 {offsets = [0, 0], sizes = [1, 32], strides = [1, 1]} : vector<1x96xf32> to vector<1x32xf32>
    %121 = vector.extract_strided_slice %117 {offsets = [0, 32], sizes = [1, 32], strides = [1, 1]} : vector<1x96xf32> to vector<1x32xf32>
    %122 = vector.extract_strided_slice %117 {offsets = [0, 64], sizes = [1, 32], strides = [1, 1]} : vector<1x96xf32> to vector<1x32xf32>
    %123 = arith.mulf %121, %77 : vector<1x32xf32>
    %124 = arith.mulf %120, %119 : vector<1x32xf32>
    %125 = arith.addf %123, %124 : vector<1x32xf32>
    %126 = math.tanh %125 : vector<1x32xf32>
    %127 = arith.mulf %122, %126 : vector<1x32xf32>
    %c0_43 = arith.constant 0 : index
    %c0_44 = arith.constant 0 : index
    %128 = vector.load %arg7[%c0_43, %c0_44] : memref<32x128xf32, #tpu.memory_space<vmem>>, vector<32x128xf32>
    %cst_45 = arith.constant dense<0.000000e+00> : vector<1x128xf32>
    %129 = tpu.matmul %102, %128, %cst_45 {dimension_numbers = #tpu.dot_dimension_numbers<[1], [0], [0], [1], [0, 0, 1, 1], [], []>} : vector<1x32xf32>, vector<32x128xf32>, vector<1x128xf32> -> vector<1x128xf32>
    %c0_46 = arith.constant 0 : index
    %c0_47 = arith.constant 0 : index
    %130 = vector.load %arg8[%c0_46, %c0_47] : memref<1x128xf32, #tpu.memory_space<vmem>>, vector<1x128xf32>
    %131 = arith.addf %129, %130 : vector<1x128xf32>
    %c0_48 = arith.constant 0 : index
    %c0_49 = arith.constant 0 : index
    %132 = vector.load %arg6[%c0_48, %c0_49] : memref<32x128xf32, #tpu.memory_space<vmem>>, vector<32x128xf32>
    %cst_50 = arith.constant dense<0.000000e+00> : vector<1x128xf32>
    %133 = tpu.matmul %127, %132, %cst_50 {dimension_numbers = #tpu.dot_dimension_numbers<[1], [0], [0], [1], [0, 0, 1, 1], [], []>} : vector<1x32xf32>, vector<32x128xf32>, vector<1x128xf32> -> vector<1x128xf32>
    %134 = arith.addf %133, %131 : vector<1x128xf32>
    %135 = vector.extract_strided_slice %134 {offsets = [0, 0], sizes = [1, 96], strides = [1, 1]} : vector<1x128xf32> to vector<1x96xf32>
    %136 = arith.negf %135 : vector<1x96xf32>
    %137 = math.exp %136 : vector<1x96xf32>
    %cst_51 = arith.constant 1.000000e+00 : f32
    %138 = vector.broadcast %cst_51 : f32 to vector<1x96xf32>
    %139 = arith.addf %138, %137 : vector<1x96xf32>
    %140 = arith.divf %138, %139 : vector<1x96xf32>
    %141 = vector.extract_strided_slice %134 {offsets = [0, 96], sizes = [1, 32], strides = [1, 1]} : vector<1x128xf32> to vector<1x32xf32>
    %142 = math.tanh %141 : vector<1x32xf32>
    %143 = vector.extract_strided_slice %140 {offsets = [0, 0], sizes = [1, 32], strides = [1, 1]} : vector<1x96xf32> to vector<1x32xf32>
    %144 = vector.extract_strided_slice %140 {offsets = [0, 32], sizes = [1, 32], strides = [1, 1]} : vector<1x96xf32> to vector<1x32xf32>
    %145 = vector.extract_strided_slice %140 {offsets = [0, 64], sizes = [1, 32], strides = [1, 1]} : vector<1x96xf32> to vector<1x32xf32>
    %146 = arith.mulf %144, %100 : vector<1x32xf32>
    %147 = arith.mulf %143, %142 : vector<1x32xf32>
    %148 = arith.addf %146, %147 : vector<1x32xf32>
    %149 = math.tanh %148 : vector<1x32xf32>
    %150 = arith.mulf %145, %149 : vector<1x32xf32>
    %c2_i32 = arith.constant 2 : i32
    %151 = vector.broadcast %c2_i32 : i32 to vector<8x32xi32>
    %152 = arith.cmpi eq, %10, %151 : vector<8x32xi32>
    %153 = vector.shape_cast %150 : vector<1x32xf32> to vector<1x32xf32>
    %154 = vector.broadcast %153 : vector<1x32xf32> to vector<8x32xf32>
    %155 = arith.select %152, %154, %107 : vector<8x32xi1>, vector<8x32xf32>
    %156 = vector.extract_strided_slice %5 {offsets = [3, 0], sizes = [1, 128], strides = [1, 1]} : vector<8x128xf32> to vector<1x128xf32>
    %c0_52 = arith.constant 0 : index
    %c0_53 = arith.constant 0 : index
    %157 = vector.load %arg4[%c0_52, %c0_53] : memref<32x128xf32, #tpu.memory_space<vmem>>, vector<32x128xf32>
    %cst_54 = arith.constant dense<0.000000e+00> : vector<1x128xf32>
    %158 = tpu.matmul %127, %157, %cst_54 {dimension_numbers = #tpu.dot_dimension_numbers<[1], [0], [0], [1], [0, 0, 1, 1], [], []>} : vector<1x32xf32>, vector<32x128xf32>, vector<1x128xf32> -> vector<1x128xf32>
    %159 = arith.addf %156, %158 : vector<1x128xf32>
    %160 = vector.extract_strided_slice %159 {offsets = [0, 0], sizes = [1, 96], strides = [1, 1]} : vector<1x128xf32> to vector<1x96xf32>
    %161 = arith.negf %160 : vector<1x96xf32>
    %162 = math.exp %161 : vector<1x96xf32>
    %cst_55 = arith.constant 1.000000e+00 : f32
    %163 = vector.broadcast %cst_55 : f32 to vector<1x96xf32>
    %164 = arith.addf %163, %162 : vector<1x96xf32>
    %165 = arith.divf %163, %164 : vector<1x96xf32>
    %166 = vector.extract_strided_slice %159 {offsets = [0, 96], sizes = [1, 32], strides = [1, 1]} : vector<1x128xf32> to vector<1x32xf32>
    %167 = math.tanh %166 : vector<1x32xf32>
    %168 = vector.extract_strided_slice %165 {offsets = [0, 0], sizes = [1, 32], strides = [1, 1]} : vector<1x96xf32> to vector<1x32xf32>
    %169 = vector.extract_strided_slice %165 {offsets = [0, 32], sizes = [1, 32], strides = [1, 1]} : vector<1x96xf32> to vector<1x32xf32>
    %170 = vector.extract_strided_slice %165 {offsets = [0, 64], sizes = [1, 32], strides = [1, 1]} : vector<1x96xf32> to vector<1x32xf32>
    %171 = arith.mulf %169, %125 : vector<1x32xf32>
    %172 = arith.mulf %168, %167 : vector<1x32xf32>
    %173 = arith.addf %171, %172 : vector<1x32xf32>
    %174 = math.tanh %173 : vector<1x32xf32>
    %175 = arith.mulf %170, %174 : vector<1x32xf32>
    %c0_56 = arith.constant 0 : index
    %c0_57 = arith.constant 0 : index
    %176 = vector.load %arg7[%c0_56, %c0_57] : memref<32x128xf32, #tpu.memory_space<vmem>>, vector<32x128xf32>
    %cst_58 = arith.constant dense<0.000000e+00> : vector<1x128xf32>
    %177 = tpu.matmul %150, %176, %cst_58 {dimension_numbers = #tpu.dot_dimension_numbers<[1], [0], [0], [1], [0, 0, 1, 1], [], []>} : vector<1x32xf32>, vector<32x128xf32>, vector<1x128xf32> -> vector<1x128xf32>
    %c0_59 = arith.constant 0 : index
    %c0_60 = arith.constant 0 : index
    %178 = vector.load %arg8[%c0_59, %c0_60] : memref<1x128xf32, #tpu.memory_space<vmem>>, vector<1x128xf32>
    %179 = arith.addf %177, %178 : vector<1x128xf32>
    %c0_61 = arith.constant 0 : index
    %c0_62 = arith.constant 0 : index
    %180 = vector.load %arg6[%c0_61, %c0_62] : memref<32x128xf32, #tpu.memory_space<vmem>>, vector<32x128xf32>
    %cst_63 = arith.constant dense<0.000000e+00> : vector<1x128xf32>
    %181 = tpu.matmul %175, %180, %cst_63 {dimension_numbers = #tpu.dot_dimension_numbers<[1], [0], [0], [1], [0, 0, 1, 1], [], []>} : vector<1x32xf32>, vector<32x128xf32>, vector<1x128xf32> -> vector<1x128xf32>
    %182 = arith.addf %181, %179 : vector<1x128xf32>
    %183 = vector.extract_strided_slice %182 {offsets = [0, 0], sizes = [1, 96], strides = [1, 1]} : vector<1x128xf32> to vector<1x96xf32>
    %184 = arith.negf %183 : vector<1x96xf32>
    %185 = math.exp %184 : vector<1x96xf32>
    %cst_64 = arith.constant 1.000000e+00 : f32
    %186 = vector.broadcast %cst_64 : f32 to vector<1x96xf32>
    %187 = arith.addf %186, %185 : vector<1x96xf32>
    %188 = arith.divf %186, %187 : vector<1x96xf32>
    %189 = vector.extract_strided_slice %182 {offsets = [0, 96], sizes = [1, 32], strides = [1, 1]} : vector<1x128xf32> to vector<1x32xf32>
    %190 = math.tanh %189 : vector<1x32xf32>
    %191 = vector.extract_strided_slice %188 {offsets = [0, 0], sizes = [1, 32], strides = [1, 1]} : vector<1x96xf32> to vector<1x32xf32>
    %192 = vector.extract_strided_slice %188 {offsets = [0, 32], sizes = [1, 32], strides = [1, 1]} : vector<1x96xf32> to vector<1x32xf32>
    %193 = vector.extract_strided_slice %188 {offsets = [0, 64], sizes = [1, 32], strides = [1, 1]} : vector<1x96xf32> to vector<1x32xf32>
    %194 = arith.mulf %192, %148 : vector<1x32xf32>
    %195 = arith.mulf %191, %190 : vector<1x32xf32>
    %196 = arith.addf %194, %195 : vector<1x32xf32>
    %197 = math.tanh %196 : vector<1x32xf32>
    %198 = arith.mulf %193, %197 : vector<1x32xf32>
    %c3_i32 = arith.constant 3 : i32
    %199 = vector.broadcast %c3_i32 : i32 to vector<8x32xi32>
    %200 = arith.cmpi eq, %10, %199 : vector<8x32xi32>
    %201 = vector.shape_cast %198 : vector<1x32xf32> to vector<1x32xf32>
    %202 = vector.broadcast %201 : vector<1x32xf32> to vector<8x32xf32>
    %203 = arith.select %200, %202, %155 : vector<8x32xi1>, vector<8x32xf32>
    %204 = vector.extract_strided_slice %5 {offsets = [4, 0], sizes = [1, 128], strides = [1, 1]} : vector<8x128xf32> to vector<1x128xf32>
    %c0_65 = arith.constant 0 : index
    %c0_66 = arith.constant 0 : index
    %205 = vector.load %arg4[%c0_65, %c0_66] : memref<32x128xf32, #tpu.memory_space<vmem>>, vector<32x128xf32>
    %cst_67 = arith.constant dense<0.000000e+00> : vector<1x128xf32>
    %206 = tpu.matmul %175, %205, %cst_67 {dimension_numbers = #tpu.dot_dimension_numbers<[1], [0], [0], [1], [0, 0, 1, 1], [], []>} : vector<1x32xf32>, vector<32x128xf32>, vector<1x128xf32> -> vector<1x128xf32>
    %207 = arith.addf %204, %206 : vector<1x128xf32>
    %208 = vector.extract_strided_slice %207 {offsets = [0, 0], sizes = [1, 96], strides = [1, 1]} : vector<1x128xf32> to vector<1x96xf32>
    %209 = arith.negf %208 : vector<1x96xf32>
    %210 = math.exp %209 : vector<1x96xf32>
    %cst_68 = arith.constant 1.000000e+00 : f32
    %211 = vector.broadcast %cst_68 : f32 to vector<1x96xf32>
    %212 = arith.addf %211, %210 : vector<1x96xf32>
    %213 = arith.divf %211, %212 : vector<1x96xf32>
    %214 = vector.extract_strided_slice %207 {offsets = [0, 96], sizes = [1, 32], strides = [1, 1]} : vector<1x128xf32> to vector<1x32xf32>
    %215 = math.tanh %214 : vector<1x32xf32>
    %216 = vector.extract_strided_slice %213 {offsets = [0, 0], sizes = [1, 32], strides = [1, 1]} : vector<1x96xf32> to vector<1x32xf32>
    %217 = vector.extract_strided_slice %213 {offsets = [0, 32], sizes = [1, 32], strides = [1, 1]} : vector<1x96xf32> to vector<1x32xf32>
    %218 = vector.extract_strided_slice %213 {offsets = [0, 64], sizes = [1, 32], strides = [1, 1]} : vector<1x96xf32> to vector<1x32xf32>
    %219 = arith.mulf %217, %173 : vector<1x32xf32>
    %220 = arith.mulf %216, %215 : vector<1x32xf32>
    %221 = arith.addf %219, %220 : vector<1x32xf32>
    %222 = math.tanh %221 : vector<1x32xf32>
    %223 = arith.mulf %218, %222 : vector<1x32xf32>
    %c0_69 = arith.constant 0 : index
    %c0_70 = arith.constant 0 : index
    %224 = vector.load %arg7[%c0_69, %c0_70] : memref<32x128xf32, #tpu.memory_space<vmem>>, vector<32x128xf32>
    %cst_71 = arith.constant dense<0.000000e+00> : vector<1x128xf32>
    %225 = tpu.matmul %198, %224, %cst_71 {dimension_numbers = #tpu.dot_dimension_numbers<[1], [0], [0], [1], [0, 0, 1, 1], [], []>} : vector<1x32xf32>, vector<32x128xf32>, vector<1x128xf32> -> vector<1x128xf32>
    %c0_72 = arith.constant 0 : index
    %c0_73 = arith.constant 0 : index
    %226 = vector.load %arg8[%c0_72, %c0_73] : memref<1x128xf32, #tpu.memory_space<vmem>>, vector<1x128xf32>
    %227 = arith.addf %225, %226 : vector<1x128xf32>
    %c0_74 = arith.constant 0 : index
    %c0_75 = arith.constant 0 : index
    %228 = vector.load %arg6[%c0_74, %c0_75] : memref<32x128xf32, #tpu.memory_space<vmem>>, vector<32x128xf32>
    %cst_76 = arith.constant dense<0.000000e+00> : vector<1x128xf32>
    %229 = tpu.matmul %223, %228, %cst_76 {dimension_numbers = #tpu.dot_dimension_numbers<[1], [0], [0], [1], [0, 0, 1, 1], [], []>} : vector<1x32xf32>, vector<32x128xf32>, vector<1x128xf32> -> vector<1x128xf32>
    %230 = arith.addf %229, %227 : vector<1x128xf32>
    %231 = vector.extract_strided_slice %230 {offsets = [0, 0], sizes = [1, 96], strides = [1, 1]} : vector<1x128xf32> to vector<1x96xf32>
    %232 = arith.negf %231 : vector<1x96xf32>
    %233 = math.exp %232 : vector<1x96xf32>
    %cst_77 = arith.constant 1.000000e+00 : f32
    %234 = vector.broadcast %cst_77 : f32 to vector<1x96xf32>
    %235 = arith.addf %234, %233 : vector<1x96xf32>
    %236 = arith.divf %234, %235 : vector<1x96xf32>
    %237 = vector.extract_strided_slice %230 {offsets = [0, 96], sizes = [1, 32], strides = [1, 1]} : vector<1x128xf32> to vector<1x32xf32>
    %238 = math.tanh %237 : vector<1x32xf32>
    %239 = vector.extract_strided_slice %236 {offsets = [0, 0], sizes = [1, 32], strides = [1, 1]} : vector<1x96xf32> to vector<1x32xf32>
    %240 = vector.extract_strided_slice %236 {offsets = [0, 32], sizes = [1, 32], strides = [1, 1]} : vector<1x96xf32> to vector<1x32xf32>
    %241 = vector.extract_strided_slice %236 {offsets = [0, 64], sizes = [1, 32], strides = [1, 1]} : vector<1x96xf32> to vector<1x32xf32>
    %242 = arith.mulf %240, %196 : vector<1x32xf32>
    %243 = arith.mulf %239, %238 : vector<1x32xf32>
    %244 = arith.addf %242, %243 : vector<1x32xf32>
    %245 = math.tanh %244 : vector<1x32xf32>
    %246 = arith.mulf %241, %245 : vector<1x32xf32>
    %c4_i32 = arith.constant 4 : i32
    %247 = vector.broadcast %c4_i32 : i32 to vector<8x32xi32>
    %248 = arith.cmpi eq, %10, %247 : vector<8x32xi32>
    %249 = vector.shape_cast %246 : vector<1x32xf32> to vector<1x32xf32>
    %250 = vector.broadcast %249 : vector<1x32xf32> to vector<8x32xf32>
    %251 = arith.select %248, %250, %203 : vector<8x32xi1>, vector<8x32xf32>
    %252 = vector.extract_strided_slice %5 {offsets = [5, 0], sizes = [1, 128], strides = [1, 1]} : vector<8x128xf32> to vector<1x128xf32>
    %c0_78 = arith.constant 0 : index
    %c0_79 = arith.constant 0 : index
    %253 = vector.load %arg4[%c0_78, %c0_79] : memref<32x128xf32, #tpu.memory_space<vmem>>, vector<32x128xf32>
    %cst_80 = arith.constant dense<0.000000e+00> : vector<1x128xf32>
    %254 = tpu.matmul %223, %253, %cst_80 {dimension_numbers = #tpu.dot_dimension_numbers<[1], [0], [0], [1], [0, 0, 1, 1], [], []>} : vector<1x32xf32>, vector<32x128xf32>, vector<1x128xf32> -> vector<1x128xf32>
    %255 = arith.addf %252, %254 : vector<1x128xf32>
    %256 = vector.extract_strided_slice %255 {offsets = [0, 0], sizes = [1, 96], strides = [1, 1]} : vector<1x128xf32> to vector<1x96xf32>
    %257 = arith.negf %256 : vector<1x96xf32>
    %258 = math.exp %257 : vector<1x96xf32>
    %cst_81 = arith.constant 1.000000e+00 : f32
    %259 = vector.broadcast %cst_81 : f32 to vector<1x96xf32>
    %260 = arith.addf %259, %258 : vector<1x96xf32>
    %261 = arith.divf %259, %260 : vector<1x96xf32>
    %262 = vector.extract_strided_slice %255 {offsets = [0, 96], sizes = [1, 32], strides = [1, 1]} : vector<1x128xf32> to vector<1x32xf32>
    %263 = math.tanh %262 : vector<1x32xf32>
    %264 = vector.extract_strided_slice %261 {offsets = [0, 0], sizes = [1, 32], strides = [1, 1]} : vector<1x96xf32> to vector<1x32xf32>
    %265 = vector.extract_strided_slice %261 {offsets = [0, 32], sizes = [1, 32], strides = [1, 1]} : vector<1x96xf32> to vector<1x32xf32>
    %266 = vector.extract_strided_slice %261 {offsets = [0, 64], sizes = [1, 32], strides = [1, 1]} : vector<1x96xf32> to vector<1x32xf32>
    %267 = arith.mulf %265, %221 : vector<1x32xf32>
    %268 = arith.mulf %264, %263 : vector<1x32xf32>
    %269 = arith.addf %267, %268 : vector<1x32xf32>
    %270 = math.tanh %269 : vector<1x32xf32>
    %271 = arith.mulf %266, %270 : vector<1x32xf32>
    %c0_82 = arith.constant 0 : index
    %c0_83 = arith.constant 0 : index
    %272 = vector.load %arg7[%c0_82, %c0_83] : memref<32x128xf32, #tpu.memory_space<vmem>>, vector<32x128xf32>
    %cst_84 = arith.constant dense<0.000000e+00> : vector<1x128xf32>
    %273 = tpu.matmul %246, %272, %cst_84 {dimension_numbers = #tpu.dot_dimension_numbers<[1], [0], [0], [1], [0, 0, 1, 1], [], []>} : vector<1x32xf32>, vector<32x128xf32>, vector<1x128xf32> -> vector<1x128xf32>
    %c0_85 = arith.constant 0 : index
    %c0_86 = arith.constant 0 : index
    %274 = vector.load %arg8[%c0_85, %c0_86] : memref<1x128xf32, #tpu.memory_space<vmem>>, vector<1x128xf32>
    %275 = arith.addf %273, %274 : vector<1x128xf32>
    %c0_87 = arith.constant 0 : index
    %c0_88 = arith.constant 0 : index
    %276 = vector.load %arg6[%c0_87, %c0_88] : memref<32x128xf32, #tpu.memory_space<vmem>>, vector<32x128xf32>
    %cst_89 = arith.constant dense<0.000000e+00> : vector<1x128xf32>
    %277 = tpu.matmul %271, %276, %cst_89 {dimension_numbers = #tpu.dot_dimension_numbers<[1], [0], [0], [1], [0, 0, 1, 1], [], []>} : vector<1x32xf32>, vector<32x128xf32>, vector<1x128xf32> -> vector<1x128xf32>
    %278 = arith.addf %277, %275 : vector<1x128xf32>
    %279 = vector.extract_strided_slice %278 {offsets = [0, 0], sizes = [1, 96], strides = [1, 1]} : vector<1x128xf32> to vector<1x96xf32>
    %280 = arith.negf %279 : vector<1x96xf32>
    %281 = math.exp %280 : vector<1x96xf32>
    %cst_90 = arith.constant 1.000000e+00 : f32
    %282 = vector.broadcast %cst_90 : f32 to vector<1x96xf32>
    %283 = arith.addf %282, %281 : vector<1x96xf32>
    %284 = arith.divf %282, %283 : vector<1x96xf32>
    %285 = vector.extract_strided_slice %278 {offsets = [0, 96], sizes = [1, 32], strides = [1, 1]} : vector<1x128xf32> to vector<1x32xf32>
    %286 = math.tanh %285 : vector<1x32xf32>
    %287 = vector.extract_strided_slice %284 {offsets = [0, 0], sizes = [1, 32], strides = [1, 1]} : vector<1x96xf32> to vector<1x32xf32>
    %288 = vector.extract_strided_slice %284 {offsets = [0, 32], sizes = [1, 32], strides = [1, 1]} : vector<1x96xf32> to vector<1x32xf32>
    %289 = vector.extract_strided_slice %284 {offsets = [0, 64], sizes = [1, 32], strides = [1, 1]} : vector<1x96xf32> to vector<1x32xf32>
    %290 = arith.mulf %288, %244 : vector<1x32xf32>
    %291 = arith.mulf %287, %286 : vector<1x32xf32>
    %292 = arith.addf %290, %291 : vector<1x32xf32>
    %293 = math.tanh %292 : vector<1x32xf32>
    %294 = arith.mulf %289, %293 : vector<1x32xf32>
    %c5_i32 = arith.constant 5 : i32
    %295 = vector.broadcast %c5_i32 : i32 to vector<8x32xi32>
    %296 = arith.cmpi eq, %10, %295 : vector<8x32xi32>
    %297 = vector.shape_cast %294 : vector<1x32xf32> to vector<1x32xf32>
    %298 = vector.broadcast %297 : vector<1x32xf32> to vector<8x32xf32>
    %299 = arith.select %296, %298, %251 : vector<8x32xi1>, vector<8x32xf32>
    %300 = vector.extract_strided_slice %5 {offsets = [6, 0], sizes = [1, 128], strides = [1, 1]} : vector<8x128xf32> to vector<1x128xf32>
    %c0_91 = arith.constant 0 : index
    %c0_92 = arith.constant 0 : index
    %301 = vector.load %arg4[%c0_91, %c0_92] : memref<32x128xf32, #tpu.memory_space<vmem>>, vector<32x128xf32>
    %cst_93 = arith.constant dense<0.000000e+00> : vector<1x128xf32>
    %302 = tpu.matmul %271, %301, %cst_93 {dimension_numbers = #tpu.dot_dimension_numbers<[1], [0], [0], [1], [0, 0, 1, 1], [], []>} : vector<1x32xf32>, vector<32x128xf32>, vector<1x128xf32> -> vector<1x128xf32>
    %303 = arith.addf %300, %302 : vector<1x128xf32>
    %304 = vector.extract_strided_slice %303 {offsets = [0, 0], sizes = [1, 96], strides = [1, 1]} : vector<1x128xf32> to vector<1x96xf32>
    %305 = arith.negf %304 : vector<1x96xf32>
    %306 = math.exp %305 : vector<1x96xf32>
    %cst_94 = arith.constant 1.000000e+00 : f32
    %307 = vector.broadcast %cst_94 : f32 to vector<1x96xf32>
    %308 = arith.addf %307, %306 : vector<1x96xf32>
    %309 = arith.divf %307, %308 : vector<1x96xf32>
    %310 = vector.extract_strided_slice %303 {offsets = [0, 96], sizes = [1, 32], strides = [1, 1]} : vector<1x128xf32> to vector<1x32xf32>
    %311 = math.tanh %310 : vector<1x32xf32>
    %312 = vector.extract_strided_slice %309 {offsets = [0, 0], sizes = [1, 32], strides = [1, 1]} : vector<1x96xf32> to vector<1x32xf32>
    %313 = vector.extract_strided_slice %309 {offsets = [0, 32], sizes = [1, 32], strides = [1, 1]} : vector<1x96xf32> to vector<1x32xf32>
    %314 = vector.extract_strided_slice %309 {offsets = [0, 64], sizes = [1, 32], strides = [1, 1]} : vector<1x96xf32> to vector<1x32xf32>
    %315 = arith.mulf %313, %269 : vector<1x32xf32>
    %316 = arith.mulf %312, %311 : vector<1x32xf32>
    %317 = arith.addf %315, %316 : vector<1x32xf32>
    %318 = math.tanh %317 : vector<1x32xf32>
    %319 = arith.mulf %314, %318 : vector<1x32xf32>
    %c0_95 = arith.constant 0 : index
    %c0_96 = arith.constant 0 : index
    %320 = vector.load %arg7[%c0_95, %c0_96] : memref<32x128xf32, #tpu.memory_space<vmem>>, vector<32x128xf32>
    %cst_97 = arith.constant dense<0.000000e+00> : vector<1x128xf32>
    %321 = tpu.matmul %294, %320, %cst_97 {dimension_numbers = #tpu.dot_dimension_numbers<[1], [0], [0], [1], [0, 0, 1, 1], [], []>} : vector<1x32xf32>, vector<32x128xf32>, vector<1x128xf32> -> vector<1x128xf32>
    %c0_98 = arith.constant 0 : index
    %c0_99 = arith.constant 0 : index
    %322 = vector.load %arg8[%c0_98, %c0_99] : memref<1x128xf32, #tpu.memory_space<vmem>>, vector<1x128xf32>
    %323 = arith.addf %321, %322 : vector<1x128xf32>
    %c0_100 = arith.constant 0 : index
    %c0_101 = arith.constant 0 : index
    %324 = vector.load %arg6[%c0_100, %c0_101] : memref<32x128xf32, #tpu.memory_space<vmem>>, vector<32x128xf32>
    %cst_102 = arith.constant dense<0.000000e+00> : vector<1x128xf32>
    %325 = tpu.matmul %319, %324, %cst_102 {dimension_numbers = #tpu.dot_dimension_numbers<[1], [0], [0], [1], [0, 0, 1, 1], [], []>} : vector<1x32xf32>, vector<32x128xf32>, vector<1x128xf32> -> vector<1x128xf32>
    %326 = arith.addf %325, %323 : vector<1x128xf32>
    %327 = vector.extract_strided_slice %326 {offsets = [0, 0], sizes = [1, 96], strides = [1, 1]} : vector<1x128xf32> to vector<1x96xf32>
    %328 = arith.negf %327 : vector<1x96xf32>
    %329 = math.exp %328 : vector<1x96xf32>
    %cst_103 = arith.constant 1.000000e+00 : f32
    %330 = vector.broadcast %cst_103 : f32 to vector<1x96xf32>
    %331 = arith.addf %330, %329 : vector<1x96xf32>
    %332 = arith.divf %330, %331 : vector<1x96xf32>
    %333 = vector.extract_strided_slice %326 {offsets = [0, 96], sizes = [1, 32], strides = [1, 1]} : vector<1x128xf32> to vector<1x32xf32>
    %334 = math.tanh %333 : vector<1x32xf32>
    %335 = vector.extract_strided_slice %332 {offsets = [0, 0], sizes = [1, 32], strides = [1, 1]} : vector<1x96xf32> to vector<1x32xf32>
    %336 = vector.extract_strided_slice %332 {offsets = [0, 32], sizes = [1, 32], strides = [1, 1]} : vector<1x96xf32> to vector<1x32xf32>
    %337 = vector.extract_strided_slice %332 {offsets = [0, 64], sizes = [1, 32], strides = [1, 1]} : vector<1x96xf32> to vector<1x32xf32>
    %338 = arith.mulf %336, %292 : vector<1x32xf32>
    %339 = arith.mulf %335, %334 : vector<1x32xf32>
    %340 = arith.addf %338, %339 : vector<1x32xf32>
    %341 = math.tanh %340 : vector<1x32xf32>
    %342 = arith.mulf %337, %341 : vector<1x32xf32>
    %c6_i32 = arith.constant 6 : i32
    %343 = vector.broadcast %c6_i32 : i32 to vector<8x32xi32>
    %344 = arith.cmpi eq, %10, %343 : vector<8x32xi32>
    %345 = vector.shape_cast %342 : vector<1x32xf32> to vector<1x32xf32>
    %346 = vector.broadcast %345 : vector<1x32xf32> to vector<8x32xf32>
    %347 = arith.select %344, %346, %299 : vector<8x32xi1>, vector<8x32xf32>
    %348 = vector.extract_strided_slice %5 {offsets = [7, 0], sizes = [1, 128], strides = [1, 1]} : vector<8x128xf32> to vector<1x128xf32>
    %c0_104 = arith.constant 0 : index
    %c0_105 = arith.constant 0 : index
    %349 = vector.load %arg4[%c0_104, %c0_105] : memref<32x128xf32, #tpu.memory_space<vmem>>, vector<32x128xf32>
    %cst_106 = arith.constant dense<0.000000e+00> : vector<1x128xf32>
    %350 = tpu.matmul %319, %349, %cst_106 {dimension_numbers = #tpu.dot_dimension_numbers<[1], [0], [0], [1], [0, 0, 1, 1], [], []>} : vector<1x32xf32>, vector<32x128xf32>, vector<1x128xf32> -> vector<1x128xf32>
    %351 = arith.addf %348, %350 : vector<1x128xf32>
    %352 = vector.extract_strided_slice %351 {offsets = [0, 0], sizes = [1, 96], strides = [1, 1]} : vector<1x128xf32> to vector<1x96xf32>
    %353 = arith.negf %352 : vector<1x96xf32>
    %354 = math.exp %353 : vector<1x96xf32>
    %cst_107 = arith.constant 1.000000e+00 : f32
    %355 = vector.broadcast %cst_107 : f32 to vector<1x96xf32>
    %356 = arith.addf %355, %354 : vector<1x96xf32>
    %357 = arith.divf %355, %356 : vector<1x96xf32>
    %358 = vector.extract_strided_slice %351 {offsets = [0, 96], sizes = [1, 32], strides = [1, 1]} : vector<1x128xf32> to vector<1x32xf32>
    %359 = math.tanh %358 : vector<1x32xf32>
    %360 = vector.extract_strided_slice %357 {offsets = [0, 0], sizes = [1, 32], strides = [1, 1]} : vector<1x96xf32> to vector<1x32xf32>
    %361 = vector.extract_strided_slice %357 {offsets = [0, 32], sizes = [1, 32], strides = [1, 1]} : vector<1x96xf32> to vector<1x32xf32>
    %362 = vector.extract_strided_slice %357 {offsets = [0, 64], sizes = [1, 32], strides = [1, 1]} : vector<1x96xf32> to vector<1x32xf32>
    %363 = arith.mulf %361, %317 : vector<1x32xf32>
    %364 = arith.mulf %360, %359 : vector<1x32xf32>
    %365 = arith.addf %363, %364 : vector<1x32xf32>
    %366 = math.tanh %365 : vector<1x32xf32>
    %367 = arith.mulf %362, %366 : vector<1x32xf32>
    %c0_108 = arith.constant 0 : index
    %c0_109 = arith.constant 0 : index
    %368 = vector.load %arg7[%c0_108, %c0_109] : memref<32x128xf32, #tpu.memory_space<vmem>>, vector<32x128xf32>
    %cst_110 = arith.constant dense<0.000000e+00> : vector<1x128xf32>
    %369 = tpu.matmul %342, %368, %cst_110 {dimension_numbers = #tpu.dot_dimension_numbers<[1], [0], [0], [1], [0, 0, 1, 1], [], []>} : vector<1x32xf32>, vector<32x128xf32>, vector<1x128xf32> -> vector<1x128xf32>
    %c0_111 = arith.constant 0 : index
    %c0_112 = arith.constant 0 : index
    %370 = vector.load %arg8[%c0_111, %c0_112] : memref<1x128xf32, #tpu.memory_space<vmem>>, vector<1x128xf32>
    %371 = arith.addf %369, %370 : vector<1x128xf32>
    %c0_113 = arith.constant 0 : index
    %c0_114 = arith.constant 0 : index
    %372 = vector.load %arg6[%c0_113, %c0_114] : memref<32x128xf32, #tpu.memory_space<vmem>>, vector<32x128xf32>
    %cst_115 = arith.constant dense<0.000000e+00> : vector<1x128xf32>
    %373 = tpu.matmul %367, %372, %cst_115 {dimension_numbers = #tpu.dot_dimension_numbers<[1], [0], [0], [1], [0, 0, 1, 1], [], []>} : vector<1x32xf32>, vector<32x128xf32>, vector<1x128xf32> -> vector<1x128xf32>
    %374 = arith.addf %373, %371 : vector<1x128xf32>
    %375 = vector.extract_strided_slice %374 {offsets = [0, 0], sizes = [1, 96], strides = [1, 1]} : vector<1x128xf32> to vector<1x96xf32>
    %376 = arith.negf %375 : vector<1x96xf32>
    %377 = math.exp %376 : vector<1x96xf32>
    %cst_116 = arith.constant 1.000000e+00 : f32
    %378 = vector.broadcast %cst_116 : f32 to vector<1x96xf32>
    %379 = arith.addf %378, %377 : vector<1x96xf32>
    %380 = arith.divf %378, %379 : vector<1x96xf32>
    %381 = vector.extract_strided_slice %374 {offsets = [0, 96], sizes = [1, 32], strides = [1, 1]} : vector<1x128xf32> to vector<1x32xf32>
    %382 = math.tanh %381 : vector<1x32xf32>
    %383 = vector.extract_strided_slice %380 {offsets = [0, 0], sizes = [1, 32], strides = [1, 1]} : vector<1x96xf32> to vector<1x32xf32>
    %384 = vector.extract_strided_slice %380 {offsets = [0, 32], sizes = [1, 32], strides = [1, 1]} : vector<1x96xf32> to vector<1x32xf32>
    %385 = vector.extract_strided_slice %380 {offsets = [0, 64], sizes = [1, 32], strides = [1, 1]} : vector<1x96xf32> to vector<1x32xf32>
    %386 = arith.mulf %384, %340 : vector<1x32xf32>
    %387 = arith.mulf %383, %382 : vector<1x32xf32>
    %388 = arith.addf %386, %387 : vector<1x32xf32>
    %389 = math.tanh %388 : vector<1x32xf32>
    %390 = arith.mulf %385, %389 : vector<1x32xf32>
    %c7_i32 = arith.constant 7 : i32
    %391 = vector.broadcast %c7_i32 : i32 to vector<8x32xi32>
    %392 = arith.cmpi eq, %10, %391 : vector<8x32xi32>
    %393 = vector.shape_cast %390 : vector<1x32xf32> to vector<1x32xf32>
    %394 = vector.broadcast %393 : vector<1x32xf32> to vector<8x32xf32>
    %395 = arith.select %392, %394, %347 : vector<8x32xi1>, vector<8x32xf32>
    %c0_117 = arith.constant 0 : index
    %c0_118 = arith.constant 0 : index
    %396 = vector.load %arg9[%c0_117, %c0_118] : memref<32x165xf32, #tpu.memory_space<vmem>>, vector<32x165xf32>
    %cst_119 = arith.constant dense<0.000000e+00> : vector<8x165xf32>
    %397 = tpu.matmul %395, %396, %cst_119 {dimension_numbers = #tpu.dot_dimension_numbers<[1], [0], [0], [1], [0, 0, 1, 1], [], []>} : vector<8x32xf32>, vector<32x165xf32>, vector<8x165xf32> -> vector<8x165xf32>
    %c0_120 = arith.constant 0 : index
    %c0_121 = arith.constant 0 : index
    %398 = vector.load %arg10[%c0_120, %c0_121] : memref<1x165xf32, #tpu.memory_space<vmem>>, vector<1x165xf32>
    %399 = vector.broadcast %398 : vector<1x165xf32> to vector<8x165xf32>
    %400 = arith.addf %397, %399 : vector<8x165xf32>
    %401 = vector.extract_strided_slice %400 {offsets = [0, 160], sizes = [8, 5], strides = [1, 1]} : vector<8x165xf32> to vector<8x5xf32>
    %cst_122 = arith.constant dense<0xFF800000> : vector<8xf32>
    %402 = vector.multi_reduction <maximumf>, %401, %cst_122 [1] : vector<8x5xf32> to vector<8xf32>
    %403 = vector.shape_cast %402 : vector<8xf32> to vector<8x1xf32>
    %404 = vector.broadcast %403 : vector<8x1xf32> to vector<8x5xf32>
    %405 = arith.subf %401, %404 : vector<8x5xf32>
    %406 = vector.broadcast %403 : vector<8x1xf32> to vector<8x5xf32>
    %407 = arith.subf %401, %406 : vector<8x5xf32>
    %408 = math.exp %407 : vector<8x5xf32>
    %cst_123 = arith.constant dense<0.000000e+00> : vector<8xf32>
    %409 = vector.multi_reduction <add>, %408, %cst_123 [1] : vector<8x5xf32> to vector<8xf32>
    %410 = vector.shape_cast %409 : vector<8xf32> to vector<8x1xf32>
    %411 = math.log %410 : vector<8x1xf32>
    %412 = vector.broadcast %411 : vector<8x1xf32> to vector<8x5xf32>
    %413 = arith.subf %405, %412 : vector<8x5xf32>
    %414 = vector.extract_strided_slice %400 {offsets = [0, 0], sizes = [8, 80], strides = [1, 1]} : vector<8x165xf32> to vector<8x80xf32>
    %c0_124 = arith.constant 0 : index
    %c0_125 = arith.constant 0 : index
    %415 = vector.load %arg11[%c0_124, %c0_125] : memref<8x165xf32, #tpu.memory_space<vmem>>, vector<8x80xf32>
    tpu.vector_store %arg11[%c0_124, %c0_125], %414 {strides = array<i32>} : memref<8x165xf32, #tpu.memory_space<vmem>>, vector<8x80xf32>,
    %416 = vector.extract_strided_slice %400 {offsets = [0, 80], sizes = [8, 80], strides = [1, 1]} : vector<8x165xf32> to vector<8x80xf32>
    %417 = math.exp %416 : vector<8x80xf32>
    %c0_126 = arith.constant 0 : index
    %c80 = arith.constant 80 : index
    %418 = vector.load %arg11[%c0_126, %c80] : memref<8x165xf32, #tpu.memory_space<vmem>>, vector<8x80xf32>
    tpu.vector_store %arg11[%c0_126, %c80], %417 {strides = array<i32>} : memref<8x165xf32, #tpu.memory_space<vmem>>, vector<8x80xf32>,
    %c0_127 = arith.constant 0 : index
    %c160 = arith.constant 160 : index
    %419 = vector.load %arg11[%c0_127, %c160] : memref<8x165xf32, #tpu.memory_space<vmem>>, vector<8x5xf32>
    tpu.vector_store %arg11[%c0_127, %c160], %413 {strides = array<i32>} : memref<8x165xf32, #tpu.memory_space<vmem>>, vector<8x5xf32>,
    %c0_128 = arith.constant 0 : index
    %c0_129 = arith.constant 0 : index
    %420 = vector.load %arg12[%c0_128, %c0_129] : memref<2x32xf32, #tpu.memory_space<vmem>>, vector<1x32xf32>
    tpu.vector_store %arg12[%c0_128, %c0_129], %367 {strides = array<i32>} : memref<2x32xf32, #tpu.memory_space<vmem>>, vector<1x32xf32>,
    %c0_130 = arith.constant 0 : index
    %c0_131 = arith.constant 0 : index
    %421 = vector.load %arg13[%c0_130, %c0_131] : memref<2x32xf32, #tpu.memory_space<vmem>>, vector<1x32xf32>
    tpu.vector_store %arg13[%c0_130, %c0_131], %365 {strides = array<i32>} : memref<2x32xf32, #tpu.memory_space<vmem>>, vector<1x32xf32>,
    %c1_132 = arith.constant 1 : index
    %c0_133 = arith.constant 0 : index
    %422 = vector.load %arg12[%c1_132, %c0_133] : memref<2x32xf32, #tpu.memory_space<vmem>>, vector<1x32xf32>
    tpu.vector_store %arg12[%c1_132, %c0_133], %390 {strides = array<i32>} : memref<2x32xf32, #tpu.memory_space<vmem>>, vector<1x32xf32>,
    %c1_134 = arith.constant 1 : index
    %c0_135 = arith.constant 0 : index
    %423 = vector.load %arg13[%c1_134, %c0_135] : memref<2x32xf32, #tpu.memory_space<vmem>>, vector<1x32xf32>
    tpu.vector_store %arg13[%c1_134, %c0_135], %388 {strides = array<i32>} : memref<2x32xf32, #tpu.memory_space<vmem>>, vector<1x32xf32>,
    return
  }
}

</mosaic_0001>

<llo_original>
// kernel: mdlstm_forward.1
$region0: #{mdlstm_forward.1}
  #allocation0 [shape = 'u32[]', space=smem, size = 0x4, offset = 0x4, fixed_abs, tag = 'smem constant byte address 0x4 - core index']
  #allocation1 [shape = 'u32[144,128]{1,0:T(1,128)}', space=vmem, size = 0x12000, scoped, tag = 'internal scratch']
  %s0 = inlined_call_operand.vmem [shape: f32[8,20], index: 0, kind: input, shape index: {}]
  %s1 = inlined_call_operand.vmem [shape: f32[2,32], index: 1, kind: input, shape index: {}]
  %s2 = inlined_call_operand.vmem [shape: f32[2,32], index: 2, kind: input, shape index: {}]
  %s3 = inlined_call_operand.vmem [shape: f32[20,128], index: 3, kind: input, shape index: {}]
  %s4 = inlined_call_operand.vmem [shape: f32[32,128], index: 4, kind: input, shape index: {}]
  %s5 = inlined_call_operand.vmem [shape: f32[1,128], index: 5, kind: input, shape index: {}]
  %s6 = inlined_call_operand.vmem [shape: f32[32,128], index: 6, kind: input, shape index: {}]
  %s7 = inlined_call_operand.vmem [shape: f32[32,128], index: 7, kind: input, shape index: {}]
  %s8 = inlined_call_operand.vmem [shape: f32[1,128], index: 8, kind: input, shape index: {}]
  %s9 = inlined_call_operand.vmem [shape: f32[32,165], index: 9, kind: input, shape index: {}]
  %s10 = inlined_call_operand.vmem [shape: f32[1,165], index: 10, kind: input, shape index: {}]
  %s11 = inlined_call_operand.vmem [shape: f32[8,165], index: 11, kind: output, shape index: {0}]
  %s12 = inlined_call_operand.hbm [shape: f32[2,32], index: 12, kind: output, shape index: {1}]
  %s13 = inlined_call_operand.hbm [shape: f32[2,32], index: 13, kind: output, shape index: {2}]
  %14 = xla_tuple %s11, %s12, %s13
  %s15 = sld [smem:[#allocation0]]
  $region70: #{mdlstm_forward.1} parent=0
    _
  %s17 = ssub.s32 1, %s15
  %s18 = scalar_select 0, %s17, %s15
  $region1: #{mdlstm_forward.1} parent=0
    #allocation2 [shape = 'u8[1024]{0}', space=vmem, size = 0x400, scoped, tag = 'output window, operand 1, single buffered']
    #allocation3 [shape = 's32[1]{0}', space=sflag, size = 0x4, scoped, tag = 'scoped memory for mdlstm_forward.1']
    #allocation4 [shape = 'u8[1024]{0}', space=vmem, size = 0x400, scoped, tag = 'output window, operand 2, single buffered']
    #allocation5 [shape = 's32[1]{0}', space=sflag, size = 0x4, scoped, tag = 'scoped memory for mdlstm_forward.1']
    %19 = vsyncpa [#allocation3], 0
    %20 = vsyncpa [#allocation5], 0
    // Predicated region
    $region2: #{mdlstm_forward.1} parent=1 // pred_check
      _
    $region3: #{mdlstm_forward.1} parent=1 // pred_check_branch
      %22 = sbr.rel (0) target = $region5
    $region4: #{mdlstm_forward.1} parent=1 // pred_region
      _
    $region5: #{mdlstm_forward.1} parent=1 // pred_fallthru
      _
    // Predicated region
    $region6: #{mdlstm_forward.1} parent=1 // pred_check
      _
    $region7: #{mdlstm_forward.1} parent=1 // pred_check_branch
      %24 = sbr.rel (0) target = $region9
    $region8: #{mdlstm_forward.1} parent=1 // pred_region
      _
    $region9: #{mdlstm_forward.1} parent=1 // pred_fallthru
      _
    // Predicated region
    $region10: #{mdlstm_forward.1} parent=1 // pred_check
      _
    $region11: #{mdlstm_forward.1} parent=1 // pred_check_branch
      %26 = sbr.rel (0) target = $region13
    $region12: #{mdlstm_forward.1} parent=1 // pred_region
      _
    $region13: #{mdlstm_forward.1} parent=1 // pred_fallthru
      _
    // Predicated region
    $region14: #{mdlstm_forward.1} parent=1 // pred_check
      _
    $region15: #{mdlstm_forward.1} parent=1 // pred_check_branch
      %28 = sbr.rel (0) target = $region17
    $region16: #{mdlstm_forward.1} parent=1 // pred_region
      _
    $region17: #{mdlstm_forward.1} parent=1 // pred_fallthru
      _
    // Predicated region
    $region18: #{mdlstm_forward.1} parent=1 // pred_check
      _
    $region19: #{mdlstm_forward.1} parent=1 // pred_check_branch
      %30 = sbr.rel (0) target = $region21
    $region20: #{mdlstm_forward.1} parent=1 // pred_region
      _
    $region21: #{mdlstm_forward.1} parent=1 // pred_fallthru
      _
    // Predicated region
    $region22: #{mdlstm_forward.1} parent=1 // pred_check
      _
    $region23: #{mdlstm_forward.1} parent=1 // pred_check_branch
      %32 = sbr.rel (0) target = $region25
    $region24: #{mdlstm_forward.1} parent=1 // pred_region
      _
    $region25: #{mdlstm_forward.1} parent=1 // pred_fallthru
      _
    // Predicated region
    $region26: #{mdlstm_forward.1} parent=1 // pred_check
      _
    $region27: #{mdlstm_forward.1} parent=1 // pred_check_branch
      %34 = sbr.rel (0) target = $region29
    $region28: #{mdlstm_forward.1} parent=1 // pred_region
      _
    $region29: #{mdlstm_forward.1} parent=1 // pred_fallthru
      _
    // Predicated region
    $region30: #{mdlstm_forward.1} parent=1 // pred_check
      _
    $region31: #{mdlstm_forward.1} parent=1 // pred_check_branch
      %36 = sbr.rel (0) target = $region33
    $region32: #{mdlstm_forward.1} parent=1 // pred_region
      _
    $region33: #{mdlstm_forward.1} parent=1 // pred_fallthru
      _
    // Predicated region
    $region34: #{mdlstm_forward.1} parent=1 // pred_check
      _
    $region35: #{mdlstm_forward.1} parent=1 // pred_check_branch
      %38 = sbr.rel (0) target = $region37
    $region36: #{mdlstm_forward.1} parent=1 // pred_region
      _
    $region37: #{mdlstm_forward.1} parent=1 // pred_fallthru
      _
    // Predicated region
    $region38: #{mdlstm_forward.1} parent=1 // pred_check
      _
    $region39: #{mdlstm_forward.1} parent=1 // pred_check_branch
      %40 = sbr.rel (0) target = $region41
    $region40: #{mdlstm_forward.1} parent=1 // pred_region
      _
    $region41: #{mdlstm_forward.1} parent=1 // pred_fallthru
      _
    // Predicated region
    $region42: #{mdlstm_forward.1} parent=1 // pred_check
      _
    $region43: #{mdlstm_forward.1} parent=1 // pred_check_branch
      %42 = sbr.rel (0) target = $region45
    $region44: #{mdlstm_forward.1} parent=1 // pred_region
      _
    $region45: #{mdlstm_forward.1} parent=1 // pred_fallthru
      _
    %v43 = vld [vmem:[%s0] sm:$0xff]
    %v44 = vld [vmem:[%s3] sm:$0xff]
    %v45 = vld [vmem:[%s3 + $0x8] sm:$0xff]
    %v46 = vld [vmem:[%s3 + $0x10] sm:$0xf]
    %v47 = vld [vmem:[%s5] sm:$0x1]
    %v49 = vlaneseq
    %v50 = vshrl.u32 %v49, 7
    %v51 = vsub.s32 0, %v50
    %v52 = vrot.slane %v47, %v51
    %vm54 = vcmask 162816
    %v56 = vsel %vm54, %v43, 0
    %vm58 = vcmask 1043456
    %v60 = vsel %vm58, %v46, 0
    %62 = vmatprep.subr.mxu0 0.0
    %63 = vmatpush1.msra.mxu0 %v44
    %64 = vmatprep.subr.mxu0 0.0
    %65 = vmatpush1.msra.mxu0 %v45
    %66 = vmatprep.subr.mxu0 0.0
    %67 = vmatpush1.msra.mxu0 %v60
    %68 = vmatprep.subr.mxu0 0.0
    %69 = vmatpush1.msra.mxu0 0.0
    %70 = vmatprep.subr.mxu0 0.0
    %71 = vmatpush1.msra.mxu0 0.0
    %72 = vmatprep.subr.mxu0 0.0
    %73 = vmatpush1.msra.mxu0 0.0
    %74 = vmatprep.subr.mxu0 0.0
    %75 = vmatpush1.msra.mxu0 0.0
    %76 = vmatprep.subr.mxu0 0.0
    %77 = vmatpush1.msra.mxu0 0.0
    %78 = vmatprep.subr.mxu0 0.0
    %79 = vmatpush1.msra.mxu0 0.0
    %80 = vmatprep.subr.mxu0 0.0
    %81 = vmatpush1.msra.mxu0 0.0
    %82 = vmatprep.subr.mxu0 0.0
    %83 = vmatpush1.msra.mxu0 0.0
    %84 = vmatprep.subr.mxu0 0.0
    %85 = vmatpush1.msra.mxu0 0.0
    %86 = vmatprep.subr.mxu0 0.0
    %87 = vmatpush1.msra.mxu0 0.0
    %88 = vmatprep.subr.mxu0 0.0
    %89 = vmatpush1.msra.mxu0 0.0
    %90 = vmatprep.subr.mxu0 0.0
    %91 = vmatpush1.msra.mxu0 0.0
    %92 = vmatprep.subr.mxu0 0.0
    %93 = vmatpush1.msra.mxu0 0.0
    %94 = vmatprep.subr.mxu0 0.0
    %95 = vmatpush1.msra.mxu0 0.0
    %96 = vmatprep.subr.mxu0 0.0
    %97 = vmatpush1.msra.mxu0 0.0
    %98 = vmatprep.subr.mxu0 0.0
    %99 = vmatpush1.msra.mxu0 0.0
    %100 = vmatprep.subr.mxu0 0.0
    %101 = vmatpush1.msra.mxu0 0.0
    %102 = vmatprep.subr.mxu0 0.0
    %103 = vmatpush1.msra.mxu0 0.0
    %104 = vmatprep.subr.mxu0 0.0
    %105 = vmatpush1.msra.mxu0 0.0
    %106 = vmatprep.subr.mxu0 0.0
    %107 = vmatpush1.msra.mxu0 0.0
    %108 = vmatprep.subr.mxu0 0.0
    %109 = vmatpush1.msra.mxu0 0.0
    %110 = vmatprep.subr.mxu0 0.0
    %111 = vmatpush1.msra.mxu0 0.0
    %112 = vmatprep.subr.mxu0 0.0
    %113 = vmatpush1.msra.mxu0 0.0
    %114 = vmatprep.subr.mxu0 0.0
    %115 = vmatpush1.msra.mxu0 0.0
    %116 = vmatprep.subr.mxu0 0.0
    %117 = vmatpush1.msra.mxu0 0.0
    %118 = vmatprep.subr.mxu0 0.0
    %119 = vmatpush1.msra.mxu0 0.0
    %120 = vmatprep.subr.mxu0 0.0
    %121 = vmatpush1.msra.mxu0 0.0
    %122 = vmatprep.subr.mxu0 0.0
    %123 = vmatpush1.msra.mxu0 0.0
    %124 = vmatprep.subr.mxu0 0.0
    %125 = vmatpush1.msra.mxu0 0.0
    %126 = vmatprep.mubr.f32.mxu0 0.0
    %127 = vmatmul.mubr.f32.gmra.mrb[0].mxu0 %v56
    %v128 = vpop.f32.mrb[0].mxu0
    %v129 = vadd.f32 %v52, %v128
    %v130 = vpop.f32.mrb[0].mxu0
    %131 = vdwg.mxu0
    %v132 = vld [vmem:[%s1] sm:$0x1]
    %v133 = vld [vmem:[%s1 + $0x1] sm:$0x1]
    %v134 = vld [vmem:[%s2] sm:$0x1]
    %v135 = vld [vmem:[%s2 + $0x1] sm:$0x1]
    %v136 = vlaneseq
    %v137 = vshrl.u32 %v136, 7
    %v138 = vld [vmem:[%s4] sm:$0xff]
    %v139 = vld [vmem:[%s4 + $0x8] sm:$0xff]
    %v140 = vld [vmem:[%s4 + $0x10] sm:$0xff]
    %v141 = vld [vmem:[%s4 + $0x18] sm:$0xff]
    %vm142 = vcmask 261120
    %v144 = vsel %vm142, %v132, 0
    %146 = vmatprep.subr.mxu0 0.0
    %147 = vmatpush1.msra.mxu0 %v138
    %148 = vmatprep.subr.mxu0 0.0
    %149 = vmatpush1.msra.mxu0 %v139
    %150 = vmatprep.subr.mxu0 0.0
    %151 = vmatpush1.msra.mxu0 %v140
    %152 = vmatprep.subr.mxu0 0.0
    %153 = vmatpush1.msra.mxu0 %v141
    %154 = vmatprep.subr.mxu0 0.0
    %155 = vmatpush1.msra.mxu0 0.0
    %156 = vmatprep.subr.mxu0 0.0
    %157 = vmatpush1.msra.mxu0 0.0
    %158 = vmatprep.subr.mxu0 0.0
    %159 = vmatpush1.msra.mxu0 0.0
    %160 = vmatprep.subr.mxu0 0.0
    %161 = vmatpush1.msra.mxu0 0.0
    %162 = vmatprep.subr.mxu0 0.0
    %163 = vmatpush1.msra.mxu0 0.0
    %164 = vmatprep.subr.mxu0 0.0
    %165 = vmatpush1.msra.mxu0 0.0
    %166 = vmatprep.subr.mxu0 0.0
    %167 = vmatpush1.msra.mxu0 0.0
    %168 = vmatprep.subr.mxu0 0.0
    %169 = vmatpush1.msra.mxu0 0.0
    %170 = vmatprep.subr.mxu0 0.0
    %171 = vmatpush1.msra.mxu0 0.0
    %172 = vmatprep.subr.mxu0 0.0
    %173 = vmatpush1.msra.mxu0 0.0
    %174 = vmatprep.subr.mxu0 0.0
    %175 = vmatpush1.msra.mxu0 0.0
    %176 = vmatprep.subr.mxu0 0.0
    %177 = vmatpush1.msra.mxu0 0.0
    %178 = vmatprep.subr.mxu0 0.0
    %179 = vmatpush1.msra.mxu0 0.0
    %180 = vmatprep.subr.mxu0 0.0
    %181 = vmatpush1.msra.mxu0 0.0
    %182 = vmatprep.subr.mxu0 0.0
    %183 = vmatpush1.msra.mxu0 0.0
    %184 = vmatprep.subr.mxu0 0.0
    %185 = vmatpush1.msra.mxu0 0.0
    %186 = vmatprep.subr.mxu0 0.0
    %187 = vmatpush1.msra.mxu0 0.0
    %188 = vmatprep.subr.mxu0 0.0
    %189 = vmatpush1.msra.mxu0 0.0
    %190 = vmatprep.subr.mxu0 0.0
    %191 = vmatpush1.msra.mxu0 0.0
    %192 = vmatprep.subr.mxu0 0.0
    %193 = vmatpush1.msra.mxu0 0.0
    %194 = vmatprep.subr.mxu0 0.0
    %195 = vmatpush1.msra.mxu0 0.0
    %196 = vmatprep.subr.mxu0 0.0
    %197 = vmatpush1.msra.mxu0 0.0
    %198 = vmatprep.subr.mxu0 0.0
    %199 = vmatpush1.msra.mxu0 0.0
    %200 = vmatprep.subr.mxu0 0.0
    %201 = vmatpush1.msra.mxu0 0.0
    %202 = vmatprep.subr.mxu0 0.0
    %203 = vmatpush1.msra.mxu0 0.0
    %204 = vmatprep.subr.mxu0 0.0
    %205 = vmatpush1.msra.mxu0 0.0
    %206 = vmatprep.subr.mxu0 0.0
    %207 = vmatpush1.msra.mxu0 0.0
    %208 = vmatprep.subr.mxu0 0.0
    %209 = vmatpush1.msra.mxu0 0.0
    %210 = vmatprep.mubr.f32.mxu0 0.0
    %211 = vmatmul.mubr.f32.gmra.mrb[0].mxu0 %v144
    %v212 = vpop.f32.mrb[0].mxu0
    %v213 = vadd.f32 0.0, %v212
    %v214 = vpop.f32.mrb[0].mxu0
    %215 = vdwg.mxu0
    %v216 = vadd.f32 %v129, %v213
    %v217 = vxor.u32 %v216, 2147483648
    %v218 = vmul.f32 %v217, 1.442695
    %v219 = vpow.pop %v218
    %v220 = vadd.f32 %v219, 1.0
    %v221 = vrcp.pop %v220
    %v222 = vmul.f32 1.0, %v221
    %v223 = vtanh.pop %v216
    %225 = vrot.lane.b32.xlu0 %v134, 32
    %v226 = vpop.permute.xlu0 %225
    %v228 = vmul.f32 %v222, %v226
    %230 = vrot.lane.b32.xlu0 %v223, 32
    %v231 = vpop.permute.xlu0 %230
    %v233 = vmul.f32 %v222, %v231
    %235 = vrot.lane.b32.xlu0 %v233, 32
    %v236 = vpop.permute.xlu0 %235
    %v238 = vadd.f32 %v228, %v236
    %v239 = vtanh.pop %v238
    %241 = vrot.lane.b32.xlu0 %v239, 32
    %v242 = vpop.permute.xlu0 %241
    %v244 = vmul.f32 %v222, %v242
    %v245 = vld [vmem:[%s7] sm:$0xff]
    %v246 = vld [vmem:[%s7 + $0x8] sm:$0xff]
    %v247 = vld [vmem:[%s7 + $0x10] sm:$0xff]
    %v248 = vld [vmem:[%s7 + $0x18] sm:$0xff]
    %v249 = vld [vmem:[%s8] sm:$0x1]
    %v251 = vsel %vm142, %v133, 0
    %253 = vmatprep.subr.mxu0 0.0
    %254 = vmatpush1.msra.mxu0 %v245
    %255 = vmatprep.subr.mxu0 0.0
    %256 = vmatpush1.msra.mxu0 %v246
    %257 = vmatprep.subr.mxu0 0.0
    %258 = vmatpush1.msra.mxu0 %v247
    %259 = vmatprep.subr.mxu0 0.0
    %260 = vmatpush1.msra.mxu0 %v248
    %261 = vmatprep.subr.mxu0 0.0
    %262 = vmatpush1.msra.mxu0 0.0
    %263 = vmatprep.subr.mxu0 0.0
    %264 = vmatpush1.msra.mxu0 0.0
    %265 = vmatprep.subr.mxu0 0.0
    %266 = vmatpush1.msra.mxu0 0.0
    %267 = vmatprep.subr.mxu0 0.0
    %268 = vmatpush1.msra.mxu0 0.0
    %269 = vmatprep.subr.mxu0 0.0
    %270 = vmatpush1.msra.mxu0 0.0
    %271 = vmatprep.subr.mxu0 0.0
    %272 = vmatpush1.msra.mxu0 0.0
    %273 = vmatprep.subr.mxu0 0.0
    %274 = vmatpush1.msra.mxu0 0.0
    %275 = vmatprep.subr.mxu0 0.0
    %276 = vmatpush1.msra.mxu0 0.0
    %277 = vmatprep.subr.mxu0 0.0
    %278 = vmatpush1.msra.mxu0 0.0
    %279 = vmatprep.subr.mxu0 0.0
    %280 = vmatpush1.msra.mxu0 0.0
    %281 = vmatprep.subr.mxu0 0.0
    %282 = vmatpush1.msra.mxu0 0.0
    %283 = vmatprep.subr.mxu0 0.0
    %284 = vmatpush1.msra.mxu0 0.0
    %285 = vmatprep.subr.mxu0 0.0
    %286 = vmatpush1.msra.mxu0 0.0
    %287 = vmatprep.subr.mxu0 0.0
    %288 = vmatpush1.msra.mxu0 0.0
    %289 = vmatprep.subr.mxu0 0.0
    %290 = vmatpush1.msra.mxu0 0.0
    %291 = vmatprep.subr.mxu0 0.0
    %292 = vmatpush1.msra.mxu0 0.0
    %293 = vmatprep.subr.mxu0 0.0
    %294 = vmatpush1.msra.mxu0 0.0
    %295 = vmatprep.subr.mxu0 0.0
    %296 = vmatpush1.msra.mxu0 0.0
    %297 = vmatprep.subr.mxu0 0.0
    %298 = vmatpush1.msra.mxu0 0.0
    %299 = vmatprep.subr.mxu0 0.0
    %300 = vmatpush1.msra.mxu0 0.0
    %301 = vmatprep.subr.mxu0 0.0
    %302 = vmatpush1.msra.mxu0 0.0
    %303 = vmatprep.subr.mxu0 0.0
    %304 = vmatpush1.msra.mxu0 0.0
    %305 = vmatprep.subr.mxu0 0.0
    %306 = vmatpush1.msra.mxu0 0.0
    %307 = vmatprep.subr.mxu0 0.0
    %308 = vmatpush1.msra.mxu0 0.0
    %309 = vmatprep.subr.mxu0 0.0
    %310 = vmatpush1.msra.mxu0 0.0
    %311 = vmatprep.subr.mxu0 0.0
    %312 = vmatpush1.msra.mxu0 0.0
    %313 = vmatprep.subr.mxu0 0.0
    %314 = vmatpush1.msra.mxu0 0.0
    %315 = vmatprep.subr.mxu0 0.0
    %316 = vmatpush1.msra.mxu0 0.0
    %317 = vmatprep.mubr.f32.mxu0 0.0
    %318 = vmatmul.mubr.f32.gmra.mrb[0].mxu0 %v251
    %v319 = vpop.f32.mrb[0].mxu0
    %v320 = vadd.f32 %v249, %v319
    %v321 = vpop.f32.mrb[0].mxu0
    %322 = vdwg.mxu0
    %v323 = vld [vmem:[%s6] sm:$0xff]
    %v324 = vld [vmem:[%s6 + $0x8] sm:$0xff]
    %v325 = vld [vmem:[%s6 + $0x10] sm:$0xff]
    %v326 = vld [vmem:[%s6 + $0x18] sm:$0xff]
    %328 = vrot.lane.b32.xlu0 %v244, 64
    %v329 = vpop.permute.xlu0 %328
    %v330 = vsel %vm142, %v329, 0
    %332 = vmatprep.subr.mxu0 0.0
    %333 = vmatpush1.msra.mxu0 %v323
    %334 = vmatprep.subr.mxu0 0.0
    %335 = vmatpush1.msra.mxu0 %v324
    %336 = vmatprep.subr.mxu0 0.0
    %337 = vmatpush1.msra.mxu0 %v325
    %338 = vmatprep.subr.mxu0 0.0
    %339 = vmatpush1.msra.mxu0 %v326
    %340 = vmatprep.subr.mxu0 0.0
    %341 = vmatpush1.msra.mxu0 0.0
    %342 = vmatprep.subr.mxu0 0.0
    %343 = vmatpush1.msra.mxu0 0.0
    %344 = vmatprep.subr.mxu0 0.0
    %345 = vmatpush1.msra.mxu0 0.0
    %346 = vmatprep.subr.mxu0 0.0
    %347 = vmatpush1.msra.mxu0 0.0
    %348 = vmatprep.subr.mxu0 0.0
    %349 = vmatpush1.msra.mxu0 0.0
    %350 = vmatprep.subr.mxu0 0.0
    %351 = vmatpush1.msra.mxu0 0.0
    %352 = vmatprep.subr.mxu0 0.0
    %353 = vmatpush1.msra.mxu0 0.0
    %354 = vmatprep.subr.mxu0 0.0
    %355 = vmatpush1.msra.mxu0 0.0
    %356 = vmatprep.subr.mxu0 0.0
    %357 = vmatpush1.msra.mxu0 0.0
    %358 = vmatprep.subr.mxu0 0.0
    %359 = vmatpush1.msra.mxu0 0.0
    %360 = vmatprep.subr.mxu0 0.0
    %361 = vmatpush1.msra.mxu0 0.0
    %362 = vmatprep.subr.mxu0 0.0
    %363 = vmatpush1.msra.mxu0 0.0
    %364 = vmatprep.subr.mxu0 0.0
    %365 = vmatpush1.msra.mxu0 0.0
    %366 = vmatprep.subr.mxu0 0.0
    %367 = vmatpush1.msra.mxu0 0.0
    %368 = vmatprep.subr.mxu0 0.0
    %369 = vmatpush1.msra.mxu0 0.0
    %370 = vmatprep.subr.mxu0 0.0
    %371 = vmatpush1.msra.mxu0 0.0
    %372 = vmatprep.subr.mxu0 0.0
    %373 = vmatpush1.msra.mxu0 0.0
    %374 = vmatprep.subr.mxu0 0.0
    %375 = vmatpush1.msra.mxu0 0.0
    %376 = vmatprep.subr.mxu0 0.0
    %377 = vmatpush1.msra.mxu0 0.0
    %378 = vmatprep.subr.mxu0 0.0
    %379 = vmatpush1.msra.mxu0 0.0
    %380 = vmatprep.subr.mxu0 0.0
    %381 = vmatpush1.msra.mxu0 0.0
    %382 = vmatprep.subr.mxu0 0.0
    %383 = vmatpush1.msra.mxu0 0.0
    %384 = vmatprep.subr.mxu0 0.0
    %385 = vmatpush1.msra.mxu0 0.0
    %386 = vmatprep.subr.mxu0 0.0
    %387 = vmatpush1.msra.mxu0 0.0
    %388 = vmatprep.subr.mxu0 0.0
    %389 = vmatpush1.msra.mxu0 0.0
    %390 = vmatprep.subr.mxu0 0.0
    %391 = vmatpush1.msra.mxu0 0.0
    %392 = vmatprep.subr.mxu0 0.0
    %393 = vmatpush1.msra.mxu0 0.0
    %394 = vmatprep.subr.mxu0 0.0
    %395 = vmatpush1.msra.mxu0 0.0
    %396 = vmatprep.mubr.f32.mxu0 0.0
    %397 = vmatmul.mubr.f32.gmra.mrb[0].mxu0 %v330
    %v398 = vpop.f32.mrb[0].mxu0
    %v399 = vadd.f32 %v320, %v398
    %v400 = vpop.f32.mrb[0].mxu0
    %401 = vdwg.mxu0
    %v402 = vxor.u32 %v399, 2147483648
    %v403 = vmul.f32 %v402, 1.442695
    %v404 = vpow.pop %v403
    %v405 = vadd.f32 %v404, 1.0
    %v406 = vrcp.pop %v405
    %v407 = vmul.f32 1.0, %v406
    %v408 = vtanh.pop %v399
    %410 = vrot.lane.b32.xlu0 %v135, 32
    %v411 = vpop.permute.xlu0 %410
    %v413 = vmul.f32 %v407, %v411
    %415 = vrot.lane.b32.xlu0 %v408, 32
    %v416 = vpop.permute.xlu0 %415
    %v418 = vmul.f32 %v407, %v416
    %420 = vrot.lane.b32.xlu0 %v418, 32
    %v421 = vpop.permute.xlu0 %420
    %v423 = vadd.f32 %v413, %v421
    %v424 = vtanh.pop %v423
    %426 = vrot.lane.b32.xlu0 %v424, 32
    %v427 = vpop.permute.xlu0 %426
    %v429 = vmul.f32 %v407, %v427
    %vm430 = vcmp.eq.s32.totalorder %v137, 0
    %v431 = vlaneseq
    %v432 = vshrl.u32 %v431, 7
    %v433 = vsub.s32 0, %v432
    %v434 = vrot.slane %v429, %v433
    %v435 = vsel %vm430, %v434, 0.0
    %436 = vmatprep.subr.mxu0 0.0
    %437 = vmatpush1.msra.mxu0 %v138
    %438 = vmatprep.subr.mxu0 0.0
    %439 = vmatpush1.msra.mxu0 %v139
    %440 = vmatprep.subr.mxu0 0.0
    %441 = vmatpush1.msra.mxu0 %v140
    %442 = vmatprep.subr.mxu0 0.0
    %443 = vmatpush1.msra.mxu0 %v141
    %444 = vmatprep.subr.mxu0 0.0
    %445 = vmatpush1.msra.mxu0 0.0
    %446 = vmatprep.subr.mxu0 0.0
    %447 = vmatpush1.msra.mxu0 0.0
    %448 = vmatprep.subr.mxu0 0.0
    %449 = vmatpush1.msra.mxu0 0.0
    %450 = vmatprep.subr.mxu0 0.0
    %451 = vmatpush1.msra.mxu0 0.0
    %452 = vmatprep.subr.mxu0 0.0
    %453 = vmatpush1.msra.mxu0 0.0
    %454 = vmatprep.subr.mxu0 0.0
    %455 = vmatpush1.msra.mxu0 0.0
    %456 = vmatprep.subr.mxu0 0.0
    %457 = vmatpush1.msra.mxu0 0.0
    %458 = vmatprep.subr.mxu0 0.0
    %459 = vmatpush1.msra.mxu0 0.0
    %460 = vmatprep.subr.mxu0 0.0
    %461 = vmatpush1.msra.mxu0 0.0
    %462 = vmatprep.subr.mxu0 0.0
    %463 = vmatpush1.msra.mxu0 0.0
    %464 = vmatprep.subr.mxu0 0.0
    %465 = vmatpush1.msra.mxu0 0.0
    %466 = vmatprep.subr.mxu0 0.0
    %467 = vmatpush1.msra.mxu0 0.0
    %468 = vmatprep.subr.mxu0 0.0
    %469 = vmatpush1.msra.mxu0 0.0
    %470 = vmatprep.subr.mxu0 0.0
    %471 = vmatpush1.msra.mxu0 0.0
    %472 = vmatprep.subr.mxu0 0.0
    %473 = vmatpush1.msra.mxu0 0.0
    %474 = vmatprep.subr.mxu0 0.0
    %475 = vmatpush1.msra.mxu0 0.0
    %476 = vmatprep.subr.mxu0 0.0
    %477 = vmatpush1.msra.mxu0 0.0
    %478 = vmatprep.subr.mxu0 0.0
    %479 = vmatpush1.msra.mxu0 0.0
    %480 = vmatprep.subr.mxu0 0.0
    %481 = vmatpush1.msra.mxu0 0.0
    %482 = vmatprep.subr.mxu0 0.0
    %483 = vmatpush1.msra.mxu0 0.0
    %484 = vmatprep.subr.mxu0 0.0
    %485 = vmatpush1.msra.mxu0 0.0
    %486 = vmatprep.subr.mxu0 0.0
    %487 = vmatpush1.msra.mxu0 0.0
    %488 = vmatprep.subr.mxu0 0.0
    %489 = vmatpush1.msra.mxu0 0.0
    %490 = vmatprep.subr.mxu0 0.0
    %491 = vmatpush1.msra.mxu0 0.0
    %492 = vmatprep.subr.mxu0 0.0
    %493 = vmatpush1.msra.mxu0 0.0
    %494 = vmatprep.subr.mxu0 0.0
    %495 = vmatpush1.msra.mxu0 0.0
    %496 = vmatprep.subr.mxu0 0.0
    %497 = vmatpush1.msra.mxu0 0.0
    %498 = vmatprep.subr.mxu0 0.0
    %499 = vmatpush1.msra.mxu0 0.0
    %500 = vmatprep.mubr.f32.mxu0 0.0
    %501 = vmatmul.mubr.f32.gmra.mrb[0].mxu0 %v330
    %v502 = vpop.f32.mrb[0].mxu0
    %v503 = vadd.f32 0.0, %v502
    %v504 = vpop.f32.mrb[0].mxu0
    %505 = vdwg.mxu0
    %v507 = vrot.slane %v503, 7
    %v509 = vadd.f32 %v129, %v507
    %v510 = vxor.u32 %v509, 2147483648
    %v511 = vmul.f32 %v510, 1.442695
    %v512 = vpow.pop %v511
    %v513 = vadd.f32 %v512, 1.0
    %v514 = vrcp.pop %v513
    %v515 = vmul.f32 1.0, %v514
    %v516 = vtanh.pop %v509
    %v518 = vrot.slane %v238, 7
    %v520 = vmul.f32 %v515, %v518
    %522 = vrot.lane.b32.xlu0 %v516, 32
    %v523 = vpop.permute.xlu0 %522
    %v525 = vmul.f32 %v515, %v523
    %527 = vrot.lane.b32.xlu0 %v525, 32
    %v528 = vpop.permute.xlu0 %527
    %v530 = vadd.f32 %v520, %v528
    %v531 = vtanh.pop %v530
    %533 = vrot.lane.b32.xlu0 %v531, 32
    %v534 = vpop.permute.xlu0 %533
    %v536 = vmul.f32 %v515, %v534
    %538 = vrot.lane.b32.xlu0 %v429, 64
    %v539 = vpop.permute.xlu0 %538
    %v540 = vsel %vm142, %v539, 0
    %542 = vmatprep.subr.mxu0 0.0
    %543 = vmatpush1.msra.mxu0 %v245
    %544 = vmatprep.subr.mxu0 0.0
    %545 = vmatpush1.msra.mxu0 %v246
    %546 = vmatprep.subr.mxu0 0.0
    %547 = vmatpush1.msra.mxu0 %v247
    %548 = vmatprep.subr.mxu0 0.0
    %549 = vmatpush1.msra.mxu0 %v248
    %550 = vmatprep.subr.mxu0 0.0
    %551 = vmatpush1.msra.mxu0 0.0
    %552 = vmatprep.subr.mxu0 0.0
    %553 = vmatpush1.msra.mxu0 0.0
    %554 = vmatprep.subr.mxu0 0.0
    %555 = vmatpush1.msra.mxu0 0.0
    %556 = vmatprep.subr.mxu0 0.0
    %557 = vmatpush1.msra.mxu0 0.0
    %558 = vmatprep.subr.mxu0 0.0
    %559 = vmatpush1.msra.mxu0 0.0
    %560 = vmatprep.subr.mxu0 0.0
    %561 = vmatpush1.msra.mxu0 0.0
    %562 = vmatprep.subr.mxu0 0.0
    %563 = vmatpush1.msra.mxu0 0.0
    %564 = vmatprep.subr.mxu0 0.0
    %565 = vmatpush1.msra.mxu0 0.0
    %566 = vmatprep.subr.mxu0 0.0
    %567 = vmatpush1.msra.mxu0 0.0
    %568 = vmatprep.subr.mxu0 0.0
    %569 = vmatpush1.msra.mxu0 0.0
    %570 = vmatprep.subr.mxu0 0.0
    %571 = vmatpush1.msra.mxu0 0.0
    %572 = vmatprep.subr.mxu0 0.0
    %573 = vmatpush1.msra.mxu0 0.0
    %574 = vmatprep.subr.mxu0 0.0
    %575 = vmatpush1.msra.mxu0 0.0
    %576 = vmatprep.subr.mxu0 0.0
    %577 = vmatpush1.msra.mxu0 0.0
    %578 = vmatprep.subr.mxu0 0.0
    %579 = vmatpush1.msra.mxu0 0.0
    %580 = vmatprep.subr.mxu0 0.0
    %581 = vmatpush1.msra.mxu0 0.0
    %582 = vmatprep.subr.mxu0 0.0
    %583 = vmatpush1.msra.mxu0 0.0
    %584 = vmatprep.subr.mxu0 0.0
    %585 = vmatpush1.msra.mxu0 0.0
    %586 = vmatprep.subr.mxu0 0.0
    %587 = vmatpush1.msra.mxu0 0.0
    %588 = vmatprep.subr.mxu0 0.0
    %589 = vmatpush1.msra.mxu0 0.0
    %590 = vmatprep.subr.mxu0 0.0
    %591 = vmatpush1.msra.mxu0 0.0
    %592 = vmatprep.subr.mxu0 0.0
    %593 = vmatpush1.msra.mxu0 0.0
    %594 = vmatprep.subr.mxu0 0.0
    %595 = vmatpush1.msra.mxu0 0.0
    %596 = vmatprep.subr.mxu0 0.0
    %597 = vmatpush1.msra.mxu0 0.0
    %598 = vmatprep.subr.mxu0 0.0
    %599 = vmatpush1.msra.mxu0 0.0
    %600 = vmatprep.subr.mxu0 0.0
    %601 = vmatpush1.msra.mxu0 0.0
    %602 = vmatprep.subr.mxu0 0.0
    %603 = vmatpush1.msra.mxu0 0.0
    %604 = vmatprep.subr.mxu0 0.0
    %605 = vmatpush1.msra.mxu0 0.0
    %606 = vmatprep.mubr.f32.mxu0 0.0
    %607 = vmatmul.mubr.f32.gmra.mrb[0].mxu0 %v540
    %v608 = vpop.f32.mrb[0].mxu0
    %v609 = vadd.f32 %v249, %v608
    %v610 = vpop.f32.mrb[0].mxu0
    %611 = vdwg.mxu0
    %v613 = vrot.slane %v536, 1
    %614 = vrot.lane.b32.xlu0 %v613, 64
    %v615 = vpop.permute.xlu0 %614
    %v616 = vsel %vm142, %v615, 0
    %618 = vmatprep.subr.mxu0 0.0
    %619 = vmatpush1.msra.mxu0 %v323
    %620 = vmatprep.subr.mxu0 0.0
    %621 = vmatpush1.msra.mxu0 %v324
    %622 = vmatprep.subr.mxu0 0.0
    %623 = vmatpush1.msra.mxu0 %v325
    %624 = vmatprep.subr.mxu0 0.0
    %625 = vmatpush1.msra.mxu0 %v326
    %626 = vmatprep.subr.mxu0 0.0
    %627 = vmatpush1.msra.mxu0 0.0
    %628 = vmatprep.subr.mxu0 0.0
    %629 = vmatpush1.msra.mxu0 0.0
    %630 = vmatprep.subr.mxu0 0.0
    %631 = vmatpush1.msra.mxu0 0.0
    %632 = vmatprep.subr.mxu0 0.0
    %633 = vmatpush1.msra.mxu0 0.0
    %634 = vmatprep.subr.mxu0 0.0
    %635 = vmatpush1.msra.mxu0 0.0
    %636 = vmatprep.subr.mxu0 0.0
    %637 = vmatpush1.msra.mxu0 0.0
    %638 = vmatprep.subr.mxu0 0.0
    %639 = vmatpush1.msra.mxu0 0.0
    %640 = vmatprep.subr.mxu0 0.0
    %641 = vmatpush1.msra.mxu0 0.0
    %642 = vmatprep.subr.mxu0 0.0
    %643 = vmatpush1.msra.mxu0 0.0
    %644 = vmatprep.subr.mxu0 0.0
    %645 = vmatpush1.msra.mxu0 0.0
    %646 = vmatprep.subr.mxu0 0.0
    %647 = vmatpush1.msra.mxu0 0.0
    %648 = vmatprep.subr.mxu0 0.0
    %649 = vmatpush1.msra.mxu0 0.0
    %650 = vmatprep.subr.mxu0 0.0
    %651 = vmatpush1.msra.mxu0 0.0
    %652 = vmatprep.subr.mxu0 0.0
    %653 = vmatpush1.msra.mxu0 0.0
    %654 = vmatprep.subr.mxu0 0.0
    %655 = vmatpush1.msra.mxu0 0.0
    %656 = vmatprep.subr.mxu0 0.0
    %657 = vmatpush1.msra.mxu0 0.0
    %658 = vmatprep.subr.mxu0 0.0
    %659 = vmatpush1.msra.mxu0 0.0
    %660 = vmatprep.subr.mxu0 0.0
    %661 = vmatpush1.msra.mxu0 0.0
    %662 = vmatprep.subr.mxu0 0.0
    %663 = vmatpush1.msra.mxu0 0.0
    %664 = vmatprep.subr.mxu0 0.0
    %665 = vmatpush1.msra.mxu0 0.0
    %666 = vmatprep.subr.mxu0 0.0
    %667 = vmatpush1.msra.mxu0 0.0
    %668 = vmatprep.subr.mxu0 0.0
    %669 = vmatpush1.msra.mxu0 0.0
    %670 = vmatprep.subr.mxu0 0.0
    %671 = vmatpush1.msra.mxu0 0.0
    %672 = vmatprep.subr.mxu0 0.0
    %673 = vmatpush1.msra.mxu0 0.0
    %674 = vmatprep.subr.mxu0 0.0
    %675 = vmatpush1.msra.mxu0 0.0
    %676 = vmatprep.subr.mxu0 0.0
    %677 = vmatpush1.msra.mxu0 0.0
    %678 = vmatprep.subr.mxu0 0.0
    %679 = vmatpush1.msra.mxu0 0.0
    %680 = vmatprep.subr.mxu0 0.0
    %681 = vmatpush1.msra.mxu0 0.0
    %682 = vmatprep.mubr.f32.mxu0 0.0
    %683 = vmatmul.mubr.f32.gmra.mrb[0].mxu0 %v616
    %v684 = vpop.f32.mrb[0].mxu0
    %v685 = vadd.f32 %v609, %v684
    %v686 = vpop.f32.mrb[0].mxu0
    %687 = vdwg.mxu0
    %v688 = vxor.u32 %v685, 2147483648
    %v689 = vmul.f32 %v688, 1.442695
    %v690 = vpow.pop %v689
    %v691 = vadd.f32 %v690, 1.0
    %v692 = vrcp.pop %v691
    %v693 = vmul.f32 1.0, %v692
    %v694 = vtanh.pop %v685
    %v695 = vmul.f32 %v693, %v423
    %697 = vrot.lane.b32.xlu0 %v694, 32
    %v698 = vpop.permute.xlu0 %697
    %v700 = vmul.f32 %v693, %v698
    %702 = vrot.lane.b32.xlu0 %v700, 32
    %v703 = vpop.permute.xlu0 %702
    %v705 = vadd.f32 %v695, %v703
    %v706 = vtanh.pop %v705
    %708 = vrot.lane.b32.xlu0 %v706, 32
    %v709 = vpop.permute.xlu0 %708
    %v711 = vmul.f32 %v693, %v709
    %vm712 = vcmp.eq.s32.totalorder %v137, 1
    %v713 = vlaneseq
    %v714 = vshrl.u32 %v713, 7
    %v715 = vsub.s32 0, %v714
    %v716 = vrot.slane %v711, %v715
    %v717 = vsel %vm712, %v716, %v435
    %718 = vmatprep.subr.mxu0 0.0
    %719 = vmatpush1.msra.mxu0 %v138
    %720 = vmatprep.subr.mxu0 0.0
    %721 = vmatpush1.msra.mxu0 %v139
    %722 = vmatprep.subr.mxu0 0.0
    %723 = vmatpush1.msra.mxu0 %v140
    %724 = vmatprep.subr.mxu0 0.0
    %725 = vmatpush1.msra.mxu0 %v141
    %726 = vmatprep.subr.mxu0 0.0
    %727 = vmatpush1.msra.mxu0 0.0
    %728 = vmatprep.subr.mxu0 0.0
    %729 = vmatpush1.msra.mxu0 0.0
    %730 = vmatprep.subr.mxu0 0.0
    %731 = vmatpush1.msra.mxu0 0.0
    %732 = vmatprep.subr.mxu0 0.0
    %733 = vmatpush1.msra.mxu0 0.0
    %734 = vmatprep.subr.mxu0 0.0
    %735 = vmatpush1.msra.mxu0 0.0
    %736 = vmatprep.subr.mxu0 0.0
    %737 = vmatpush1.msra.mxu0 0.0
    %738 = vmatprep.subr.mxu0 0.0
    %739 = vmatpush1.msra.mxu0 0.0
    %740 = vmatprep.subr.mxu0 0.0
    %741 = vmatpush1.msra.mxu0 0.0
    %742 = vmatprep.subr.mxu0 0.0
    %743 = vmatpush1.msra.mxu0 0.0
    %744 = vmatprep.subr.mxu0 0.0
    %745 = vmatpush1.msra.mxu0 0.0
    %746 = vmatprep.subr.mxu0 0.0
    %747 = vmatpush1.msra.mxu0 0.0
    %748 = vmatprep.subr.mxu0 0.0
    %749 = vmatpush1.msra.mxu0 0.0
    %750 = vmatprep.subr.mxu0 0.0
    %751 = vmatpush1.msra.mxu0 0.0
    %752 = vmatprep.subr.mxu0 0.0
    %753 = vmatpush1.msra.mxu0 0.0
    %754 = vmatprep.subr.mxu0 0.0
    %755 = vmatpush1.msra.mxu0 0.0
    %756 = vmatprep.subr.mxu0 0.0
    %757 = vmatpush1.msra.mxu0 0.0
    %758 = vmatprep.subr.mxu0 0.0
    %759 = vmatpush1.msra.mxu0 0.0
    %760 = vmatprep.subr.mxu0 0.0
    %761 = vmatpush1.msra.mxu0 0.0
    %762 = vmatprep.subr.mxu0 0.0
    %763 = vmatpush1.msra.mxu0 0.0
    %764 = vmatprep.subr.mxu0 0.0
    %765 = vmatpush1.msra.mxu0 0.0
    %766 = vmatprep.subr.mxu0 0.0
    %767 = vmatpush1.msra.mxu0 0.0
    %768 = vmatprep.subr.mxu0 0.0
    %769 = vmatpush1.msra.mxu0 0.0
    %770 = vmatprep.subr.mxu0 0.0
    %771 = vmatpush1.msra.mxu0 0.0
    %772 = vmatprep.subr.mxu0 0.0
    %773 = vmatpush1.msra.mxu0 0.0
    %774 = vmatprep.subr.mxu0 0.0
    %775 = vmatpush1.msra.mxu0 0.0
    %776 = vmatprep.subr.mxu0 0.0
    %777 = vmatpush1.msra.mxu0 0.0
    %778 = vmatprep.subr.mxu0 0.0
    %779 = vmatpush1.msra.mxu0 0.0
    %780 = vmatprep.subr.mxu0 0.0
    %781 = vmatpush1.msra.mxu0 0.0
    %782 = vmatprep.mubr.f32.mxu0 0.0
    %783 = vmatmul.mubr.f32.gmra.mrb[0].mxu0 %v616
    %v784 = vpop.f32.mrb[0].mxu0
    %v785 = vadd.f32 0.0, %v784
    %v786 = vpop.f32.mrb[0].mxu0
    %787 = vdwg.mxu0
    %v789 = vrot.slane %v785, 6
    %v791 = vadd.f32 %v129, %v789
    %v792 = vxor.u32 %v791, 2147483648
    %v793 = vmul.f32 %v792, 1.442695
    %v794 = vpow.pop %v793
    %v795 = vadd.f32 %v794, 1.0
    %v796 = vrcp.pop %v795
    %v797 = vmul.f32 1.0, %v796
    %v798 = vtanh.pop %v791
    %v800 = vrot.slane %v530, 7
    %v802 = vmul.f32 %v797, %v800
    %804 = vrot.lane.b32.xlu0 %v798, 32
    %v805 = vpop.permute.xlu0 %804
    %v807 = vmul.f32 %v797, %v805
    %809 = vrot.lane.b32.xlu0 %v807, 32
    %v810 = vpop.permute.xlu0 %809
    %v812 = vadd.f32 %v802, %v810
    %v813 = vtanh.pop %v812
    %815 = vrot.lane.b32.xlu0 %v813, 32
    %v816 = vpop.permute.xlu0 %815
    %v818 = vmul.f32 %v797, %v816
    %820 = vrot.lane.b32.xlu0 %v711, 64
    %v821 = vpop.permute.xlu0 %820
    %v822 = vsel %vm142, %v821, 0
    %824 = vmatprep.subr.mxu0 0.0
    %825 = vmatpush1.msra.mxu0 %v245
    %826 = vmatprep.subr.mxu0 0.0
    %827 = vmatpush1.msra.mxu0 %v246
    %828 = vmatprep.subr.mxu0 0.0
    %829 = vmatpush1.msra.mxu0 %v247
    %830 = vmatprep.subr.mxu0 0.0
    %831 = vmatpush1.msra.mxu0 %v248
    %832 = vmatprep.subr.mxu0 0.0
    %833 = vmatpush1.msra.mxu0 0.0
    %834 = vmatprep.subr.mxu0 0.0
    %835 = vmatpush1.msra.mxu0 0.0
    %836 = vmatprep.subr.mxu0 0.0
    %837 = vmatpush1.msra.mxu0 0.0
    %838 = vmatprep.subr.mxu0 0.0
    %839 = vmatpush1.msra.mxu0 0.0
    %840 = vmatprep.subr.mxu0 0.0
    %841 = vmatpush1.msra.mxu0 0.0
    %842 = vmatprep.subr.mxu0 0.0
    %843 = vmatpush1.msra.mxu0 0.0
    %844 = vmatprep.subr.mxu0 0.0
    %845 = vmatpush1.msra.mxu0 0.0
    %846 = vmatprep.subr.mxu0 0.0
    %847 = vmatpush1.msra.mxu0 0.0
    %848 = vmatprep.subr.mxu0 0.0
    %849 = vmatpush1.msra.mxu0 0.0
    %850 = vmatprep.subr.mxu0 0.0
    %851 = vmatpush1.msra.mxu0 0.0
    %852 = vmatprep.subr.mxu0 0.0
    %853 = vmatpush1.msra.mxu0 0.0
    %854 = vmatprep.subr.mxu0 0.0
    %855 = vmatpush1.msra.mxu0 0.0
    %856 = vmatprep.subr.mxu0 0.0
    %857 = vmatpush1.msra.mxu0 0.0
    %858 = vmatprep.subr.mxu0 0.0
    %859 = vmatpush1.msra.mxu0 0.0
    %860 = vmatprep.subr.mxu0 0.0
    %861 = vmatpush1.msra.mxu0 0.0
    %862 = vmatprep.subr.mxu0 0.0
    %863 = vmatpush1.msra.mxu0 0.0
    %864 = vmatprep.subr.mxu0 0.0
    %865 = vmatpush1.msra.mxu0 0.0
    %866 = vmatprep.subr.mxu0 0.0
    %867 = vmatpush1.msra.mxu0 0.0
    %868 = vmatprep.subr.mxu0 0.0
    %869 = vmatpush1.msra.mxu0 0.0
    %870 = vmatprep.subr.mxu0 0.0
    %871 = vmatpush1.msra.mxu0 0.0
    %872 = vmatprep.subr.mxu0 0.0
    %873 = vmatpush1.msra.mxu0 0.0
    %874 = vmatprep.subr.mxu0 0.0
    %875 = vmatpush1.msra.mxu0 0.0
    %876 = vmatprep.subr.mxu0 0.0
    %877 = vmatpush1.msra.mxu0 0.0
    %878 = vmatprep.subr.mxu0 0.0
    %879 = vmatpush1.msra.mxu0 0.0
    %880 = vmatprep.subr.mxu0 0.0
    %881 = vmatpush1.msra.mxu0 0.0
    %882 = vmatprep.subr.mxu0 0.0
    %883 = vmatpush1.msra.mxu0 0.0
    %884 = vmatprep.subr.mxu0 0.0
    %885 = vmatpush1.msra.mxu0 0.0
    %886 = vmatprep.subr.mxu0 0.0
    %887 = vmatpush1.msra.mxu0 0.0
    %888 = vmatprep.mubr.f32.mxu0 0.0
    %889 = vmatmul.mubr.f32.gmra.mrb[0].mxu0 %v822
    %v890 = vpop.f32.mrb[0].mxu0
    %v891 = vadd.f32 %v249, %v890
    %v892 = vpop.f32.mrb[0].mxu0
    %893 = vdwg.mxu0
    %v895 = vrot.slane %v818, 2
    %896 = vrot.lane.b32.xlu0 %v895, 64
    %v897 = vpop.permute.xlu0 %896
    %v898 = vsel %vm142, %v897, 0
    %900 = vmatprep.subr.mxu0 0.0
    %901 = vmatpush1.msra.mxu0 %v323
    %902 = vmatprep.subr.mxu0 0.0
    %903 = vmatpush1.msra.mxu0 %v324
    %904 = vmatprep.subr.mxu0 0.0
    %905 = vmatpush1.msra.mxu0 %v325
    %906 = vmatprep.subr.mxu0 0.0
    %907 = vmatpush1.msra.mxu0 %v326
    %908 = vmatprep.subr.mxu0 0.0
    %909 = vmatpush1.msra.mxu0 0.0
    %910 = vmatprep.subr.mxu0 0.0
    %911 = vmatpush1.msra.mxu0 0.0
    %912 = vmatprep.subr.mxu0 0.0
    %913 = vmatpush1.msra.mxu0 0.0
    %914 = vmatprep.subr.mxu0 0.0
    %915 = vmatpush1.msra.mxu0 0.0
    %916 = vmatprep.subr.mxu0 0.0
    %917 = vmatpush1.msra.mxu0 0.0
    %918 = vmatprep.subr.mxu0 0.0
    %919 = vmatpush1.msra.mxu0 0.0
    %920 = vmatprep.subr.mxu0 0.0
    %921 = vmatpush1.msra.mxu0 0.0
    %922 = vmatprep.subr.mxu0 0.0
    %923 = vmatpush1.msra.mxu0 0.0
    %924 = vmatprep.subr.mxu0 0.0
    %925 = vmatpush1.msra.mxu0 0.0
    %926 = vmatprep.subr.mxu0 0.0
    %927 = vmatpush1.msra.mxu0 0.0
    %928 = vmatprep.subr.mxu0 0.0
    %929 = vmatpush1.msra.mxu0 0.0
    %930 = vmatprep.subr.mxu0 0.0
    %931 = vmatpush1.msra.mxu0 0.0
    %932 = vmatprep.subr.mxu0 0.0
    %933 = vmatpush1.msra.mxu0 0.0
    %934 = vmatprep.subr.mxu0 0.0
    %935 = vmatpush1.msra.mxu0 0.0
    %936 = vmatprep.subr.mxu0 0.0
    %937 = vmatpush1.msra.mxu0 0.0
    %938 = vmatprep.subr.mxu0 0.0
    %939 = vmatpush1.msra.mxu0 0.0
    %940 = vmatprep.subr.mxu0 0.0
    %941 = vmatpush1.msra.mxu0 0.0
    %942 = vmatprep.subr.mxu0 0.0
    %943 = vmatpush1.msra.mxu0 0.0
    %944 = vmatprep.subr.mxu0 0.0
    %945 = vmatpush1.msra.mxu0 0.0
    %946 = vmatprep.subr.mxu0 0.0
    %947 = vmatpush1.msra.mxu0 0.0
    %948 = vmatprep.subr.mxu0 0.0
    %949 = vmatpush1.msra.mxu0 0.0
    %950 = vmatprep.subr.mxu0 0.0
    %951 = vmatpush1.msra.mxu0 0.0
    %952 = vmatprep.subr.mxu0 0.0
    %953 = vmatpush1.msra.mxu0 0.0
    %954 = vmatprep.subr.mxu0 0.0
    %955 = vmatpush1.msra.mxu0 0.0
    %956 = vmatprep.subr.mxu0 0.0
    %957 = vmatpush1.msra.mxu0 0.0
    %958 = vmatprep.subr.mxu0 0.0
    %959 = vmatpush1.msra.mxu0 0.0
    %960 = vmatprep.subr.mxu0 0.0
    %961 = vmatpush1.msra.mxu0 0.0
    %962 = vmatprep.subr.mxu0 0.0
    %963 = vmatpush1.msra.mxu0 0.0
    %964 = vmatprep.mubr.f32.mxu0 0.0
    %965 = vmatmul.mubr.f32.gmra.mrb[0].mxu0 %v898
    %v966 = vpop.f32.mrb[0].mxu0
    %v967 = vadd.f32 %v891, %v966
    %v968 = vpop.f32.mrb[0].mxu0
    %969 = vdwg.mxu0
    %v970 = vxor.u32 %v967, 2147483648
    %v971 = vmul.f32 %v970, 1.442695
    %v972 = vpow.pop %v971
    %v973 = vadd.f32 %v972, 1.0
    %v974 = vrcp.pop %v973
    %v975 = vmul.f32 1.0, %v974
    %v976 = vtanh.pop %v967
    %v977 = vmul.f32 %v975, %v705
    %979 = vrot.lane.b32.xlu0 %v976, 32
    %v980 = vpop.permute.xlu0 %979
    %v982 = vmul.f32 %v975, %v980
    %984 = vrot.lane.b32.xlu0 %v982, 32
    %v985 = vpop.permute.xlu0 %984
    %v987 = vadd.f32 %v977, %v985
    %v988 = vtanh.pop %v987
    %990 = vrot.lane.b32.xlu0 %v988, 32
    %v991 = vpop.permute.xlu0 %990
    %v993 = vmul.f32 %v975, %v991
    %vm994 = vcmp.eq.s32.totalorder %v137, 2
    %v995 = vlaneseq
    %v996 = vshrl.u32 %v995, 7
    %v997 = vsub.s32 0, %v996
    %v998 = vrot.slane %v993, %v997
    %v999 = vsel %vm994, %v998, %v717
    %1000 = vmatprep.subr.mxu0 0.0
    %1001 = vmatpush1.msra.mxu0 %v138
    %1002 = vmatprep.subr.mxu0 0.0
    %1003 = vmatpush1.msra.mxu0 %v139
    %1004 = vmatprep.subr.mxu0 0.0
    %1005 = vmatpush1.msra.mxu0 %v140
    %1006 = vmatprep.subr.mxu0 0.0
    %1007 = vmatpush1.msra.mxu0 %v141
    %1008 = vmatprep.subr.mxu0 0.0
    %1009 = vmatpush1.msra.mxu0 0.0
    %1010 = vmatprep.subr.mxu0 0.0
    %1011 = vmatpush1.msra.mxu0 0.0
    %1012 = vmatprep.subr.mxu0 0.0
    %1013 = vmatpush1.msra.mxu0 0.0
    %1014 = vmatprep.subr.mxu0 0.0
    %1015 = vmatpush1.msra.mxu0 0.0
    %1016 = vmatprep.subr.mxu0 0.0
    %1017 = vmatpush1.msra.mxu0 0.0
    %1018 = vmatprep.subr.mxu0 0.0
    %1019 = vmatpush1.msra.mxu0 0.0
    %1020 = vmatprep.subr.mxu0 0.0
    %1021 = vmatpush1.msra.mxu0 0.0
    %1022 = vmatprep.subr.mxu0 0.0
    %1023 = vmatpush1.msra.mxu0 0.0
    %1024 = vmatprep.subr.mxu0 0.0
    %1025 = vmatpush1.msra.mxu0 0.0
    %1026 = vmatprep.subr.mxu0 0.0
    %1027 = vmatpush1.msra.mxu0 0.0
    %1028 = vmatprep.subr.mxu0 0.0
    %1029 = vmatpush1.msra.mxu0 0.0
    %1030 = vmatprep.subr.mxu0 0.0
    %1031 = vmatpush1.msra.mxu0 0.0
    %1032 = vmatprep.subr.mxu0 0.0
    %1033 = vmatpush1.msra.mxu0 0.0
    %1034 = vmatprep.subr.mxu0 0.0
    %1035 = vmatpush1.msra.mxu0 0.0
    %1036 = vmatprep.subr.mxu0 0.0
    %1037 = vmatpush1.msra.mxu0 0.0
    %1038 = vmatprep.subr.mxu0 0.0
    %1039 = vmatpush1.msra.mxu0 0.0
    %1040 = vmatprep.subr.mxu0 0.0
    %1041 = vmatpush1.msra.mxu0 0.0
    %1042 = vmatprep.subr.mxu0 0.0
    %1043 = vmatpush1.msra.mxu0 0.0
    %1044 = vmatprep.subr.mxu0 0.0
    %1045 = vmatpush1.msra.mxu0 0.0
    %1046 = vmatprep.subr.mxu0 0.0
    %1047 = vmatpush1.msra.mxu0 0.0
    %1048 = vmatprep.subr.mxu0 0.0
    %1049 = vmatpush1.msra.mxu0 0.0
    %1050 = vmatprep.subr.mxu0 0.0
    %1051 = vmatpush1.msra.mxu0 0.0
    %1052 = vmatprep.subr.mxu0 0.0
    %1053 = vmatpush1.msra.mxu0 0.0
    %1054 = vmatprep.subr.mxu0 0.0
    %1055 = vmatpush1.msra.mxu0 0.0
    %1056 = vmatprep.subr.mxu0 0.0
    %1057 = vmatpush1.msra.mxu0 0.0
    %1058 = vmatprep.subr.mxu0 0.0
    %1059 = vmatpush1.msra.mxu0 0.0
    %1060 = vmatprep.subr.mxu0 0.0
    %1061 = vmatpush1.msra.mxu0 0.0
    %1062 = vmatprep.subr.mxu0 0.0
    %1063 = vmatpush1.msra.mxu0 0.0
    %1064 = vmatprep.mubr.f32.mxu0 0.0
    %1065 = vmatmul.mubr.f32.gmra.mrb[0].mxu0 %v898
    %v1066 = vpop.f32.mrb[0].mxu0
    %v1067 = vadd.f32 0.0, %v1066
    %v1068 = vpop.f32.mrb[0].mxu0
    %1069 = vdwg.mxu0
    %v1071 = vrot.slane %v1067, 5
    %v1073 = vadd.f32 %v129, %v1071
    %v1074 = vxor.u32 %v1073, 2147483648
    %v1075 = vmul.f32 %v1074, 1.442695
    %v1076 = vpow.pop %v1075
    %v1077 = vadd.f32 %v1076, 1.0
    %v1078 = vrcp.pop %v1077
    %v1079 = vmul.f32 1.0, %v1078
    %v1080 = vtanh.pop %v1073
    %v1082 = vrot.slane %v812, 7
    %v1084 = vmul.f32 %v1079, %v1082
    %1086 = vrot.lane.b32.xlu0 %v1080, 32
    %v1087 = vpop.permute.xlu0 %1086
    %v1089 = vmul.f32 %v1079, %v1087
    %1091 = vrot.lane.b32.xlu0 %v1089, 32
    %v1092 = vpop.permute.xlu0 %1091
    %v1094 = vadd.f32 %v1084, %v1092
    %v1095 = vtanh.pop %v1094
    %1097 = vrot.lane.b32.xlu0 %v1095, 32
    %v1098 = vpop.permute.xlu0 %1097
    %v1100 = vmul.f32 %v1079, %v1098
    %1102 = vrot.lane.b32.xlu0 %v993, 64
    %v1103 = vpop.permute.xlu0 %1102
    %v1104 = vsel %vm142, %v1103, 0
    %1106 = vmatprep.subr.mxu0 0.0
    %1107 = vmatpush1.msra.mxu0 %v245
    %1108 = vmatprep.subr.mxu0 0.0
    %1109 = vmatpush1.msra.mxu0 %v246
    %1110 = vmatprep.subr.mxu0 0.0
    %1111 = vmatpush1.msra.mxu0 %v247
    %1112 = vmatprep.subr.mxu0 0.0
    %1113 = vmatpush1.msra.mxu0 %v248
    %1114 = vmatprep.subr.mxu0 0.0
    %1115 = vmatpush1.msra.mxu0 0.0
    %1116 = vmatprep.subr.mxu0 0.0
    %1117 = vmatpush1.msra.mxu0 0.0
    %1118 = vmatprep.subr.mxu0 0.0
    %1119 = vmatpush1.msra.mxu0 0.0
    %1120 = vmatprep.subr.mxu0 0.0
    %1121 = vmatpush1.msra.mxu0 0.0
    %1122 = vmatprep.subr.mxu0 0.0
    %1123 = vmatpush1.msra.mxu0 0.0
    %1124 = vmatprep.subr.mxu0 0.0
    %1125 = vmatpush1.msra.mxu0 0.0
    %1126 = vmatprep.subr.mxu0 0.0
    %1127 = vmatpush1.msra.mxu0 0.0
    %1128 = vmatprep.subr.mxu0 0.0
    %1129 = vmatpush1.msra.mxu0 0.0
    %1130 = vmatprep.subr.mxu0 0.0
    %1131 = vmatpush1.msra.mxu0 0.0
    %1132 = vmatprep.subr.mxu0 0.0
    %1133 = vmatpush1.msra.mxu0 0.0
    %1134 = vmatprep.subr.mxu0 0.0
    %1135 = vmatpush1.msra.mxu0 0.0
    %1136 = vmatprep.subr.mxu0 0.0
    %1137 = vmatpush1.msra.mxu0 0.0
    %1138 = vmatprep.subr.mxu0 0.0
    %1139 = vmatpush1.msra.mxu0 0.0
    %1140 = vmatprep.subr.mxu0 0.0
    %1141 = vmatpush1.msra.mxu0 0.0
    %1142 = vmatprep.subr.mxu0 0.0
    %1143 = vmatpush1.msra.mxu0 0.0
    %1144 = vmatprep.subr.mxu0 0.0
    %1145 = vmatpush1.msra.mxu0 0.0
    %1146 = vmatprep.subr.mxu0 0.0
    %1147 = vmatpush1.msra.mxu0 0.0
    %1148 = vmatprep.subr.mxu0 0.0
    %1149 = vmatpush1.msra.mxu0 0.0
    %1150 = vmatprep.subr.mxu0 0.0
    %1151 = vmatpush1.msra.mxu0 0.0
    %1152 = vmatprep.subr.mxu0 0.0
    %1153 = vmatpush1.msra.mxu0 0.0
    %1154 = vmatprep.subr.mxu0 0.0
    %1155 = vmatpush1.msra.mxu0 0.0
    %1156 = vmatprep.subr.mxu0 0.0
    %1157 = vmatpush1.msra.mxu0 0.0
    %1158 = vmatprep.subr.mxu0 0.0
    %1159 = vmatpush1.msra.mxu0 0.0
    %1160 = vmatprep.subr.mxu0 0.0
    %1161 = vmatpush1.msra.mxu0 0.0
    %1162 = vmatprep.subr.mxu0 0.0
    %1163 = vmatpush1.msra.mxu0 0.0
    %1164 = vmatprep.subr.mxu0 0.0
    %1165 = vmatpush1.msra.mxu0 0.0
    %1166 = vmatprep.subr.mxu0 0.0
    %1167 = vmatpush1.msra.mxu0 0.0
    %1168 = vmatprep.subr.mxu0 0.0
    %1169 = vmatpush1.msra.mxu0 0.0
    %1170 = vmatprep.mubr.f32.mxu0 0.0
    %1171 = vmatmul.mubr.f32.gmra.mrb[0].mxu0 %v1104
    %v1172 = vpop.f32.mrb[0].mxu0
    %v1173 = vadd.f32 %v249, %v1172
    %v1174 = vpop.f32.mrb[0].mxu0
    %1175 = vdwg.mxu0
    %v1177 = vrot.slane %v1100, 3
    %1178 = vrot.lane.b32.xlu0 %v1177, 64
    %v1179 = vpop.permute.xlu0 %1178
    %v1180 = vsel %vm142, %v1179, 0
    %1182 = vmatprep.subr.mxu0 0.0
    %1183 = vmatpush1.msra.mxu0 %v323
    %1184 = vmatprep.subr.mxu0 0.0
    %1185 = vmatpush1.msra.mxu0 %v324
    %1186 = vmatprep.subr.mxu0 0.0
    %1187 = vmatpush1.msra.mxu0 %v325
    %1188 = vmatprep.subr.mxu0 0.0
    %1189 = vmatpush1.msra.mxu0 %v326
    %1190 = vmatprep.subr.mxu0 0.0
    %1191 = vmatpush1.msra.mxu0 0.0
    %1192 = vmatprep.subr.mxu0 0.0
    %1193 = vmatpush1.msra.mxu0 0.0
    %1194 = vmatprep.subr.mxu0 0.0
    %1195 = vmatpush1.msra.mxu0 0.0
    %1196 = vmatprep.subr.mxu0 0.0
    %1197 = vmatpush1.msra.mxu0 0.0
    %1198 = vmatprep.subr.mxu0 0.0
    %1199 = vmatpush1.msra.mxu0 0.0
    %1200 = vmatprep.subr.mxu0 0.0
    %1201 = vmatpush1.msra.mxu0 0.0
    %1202 = vmatprep.subr.mxu0 0.0
    %1203 = vmatpush1.msra.mxu0 0.0
    %1204 = vmatprep.subr.mxu0 0.0
    %1205 = vmatpush1.msra.mxu0 0.0
    %1206 = vmatprep.subr.mxu0 0.0
    %1207 = vmatpush1.msra.mxu0 0.0
    %1208 = vmatprep.subr.mxu0 0.0
    %1209 = vmatpush1.msra.mxu0 0.0
    %1210 = vmatprep.subr.mxu0 0.0
    %1211 = vmatpush1.msra.mxu0 0.0
    %1212 = vmatprep.subr.mxu0 0.0
    %1213 = vmatpush1.msra.mxu0 0.0
    %1214 = vmatprep.subr.mxu0 0.0
    %1215 = vmatpush1.msra.mxu0 0.0
    %1216 = vmatprep.subr.mxu0 0.0
    %1217 = vmatpush1.msra.mxu0 0.0
    %1218 = vmatprep.subr.mxu0 0.0
    %1219 = vmatpush1.msra.mxu0 0.0
    %1220 = vmatprep.subr.mxu0 0.0
    %1221 = vmatpush1.msra.mxu0 0.0
    %1222 = vmatprep.subr.mxu0 0.0
    %1223 = vmatpush1.msra.mxu0 0.0
    %1224 = vmatprep.subr.mxu0 0.0
    %1225 = vmatpush1.msra.mxu0 0.0
    %1226 = vmatprep.subr.mxu0 0.0
    %1227 = vmatpush1.msra.mxu0 0.0
    %1228 = vmatprep.subr.mxu0 0.0
    %1229 = vmatpush1.msra.mxu0 0.0
    %1230 = vmatprep.subr.mxu0 0.0
    %1231 = vmatpush1.msra.mxu0 0.0
    %1232 = vmatprep.subr.mxu0 0.0
    %1233 = vmatpush1.msra.mxu0 0.0
    %1234 = vmatprep.subr.mxu0 0.0
    %1235 = vmatpush1.msra.mxu0 0.0
    %1236 = vmatprep.subr.mxu0 0.0
    %1237 = vmatpush1.msra.mxu0 0.0
    %1238 = vmatprep.subr.mxu0 0.0
    %1239 = vmatpush1.msra.mxu0 0.0
    %1240 = vmatprep.subr.mxu0 0.0
    %1241 = vmatpush1.msra.mxu0 0.0
    %1242 = vmatprep.subr.mxu0 0.0
    %1243 = vmatpush1.msra.mxu0 0.0
    %1244 = vmatprep.subr.mxu0 0.0
    %1245 = vmatpush1.msra.mxu0 0.0
    %1246 = vmatprep.mubr.f32.mxu0 0.0
    %1247 = vmatmul.mubr.f32.gmra.mrb[0].mxu0 %v1180
    %v1248 = vpop.f32.mrb[0].mxu0
    %v1249 = vadd.f32 %v1173, %v1248
    %v1250 = vpop.f32.mrb[0].mxu0
    %1251 = vdwg.mxu0
    %v1252 = vxor.u32 %v1249, 2147483648
    %v1253 = vmul.f32 %v1252, 1.442695
    %v1254 = vpow.pop %v1253
    %v1255 = vadd.f32 %v1254, 1.0
    %v1256 = vrcp.pop %v1255
    %v1257 = vmul.f32 1.0, %v1256
    %v1258 = vtanh.pop %v1249
    %v1259 = vmul.f32 %v1257, %v987
    %1261 = vrot.lane.b32.xlu0 %v1258, 32
    %v1262 = vpop.permute.xlu0 %1261
    %v1264 = vmul.f32 %v1257, %v1262
    %1266 = vrot.lane.b32.xlu0 %v1264, 32
    %v1267 = vpop.permute.xlu0 %1266
    %v1269 = vadd.f32 %v1259, %v1267
    %v1270 = vtanh.pop %v1269
    %1272 = vrot.lane.b32.xlu0 %v1270, 32
    %v1273 = vpop.permute.xlu0 %1272
    %v1275 = vmul.f32 %v1257, %v1273
    %vm1276 = vcmp.eq.s32.totalorder %v137, 3
    %v1277 = vlaneseq
    %v1278 = vshrl.u32 %v1277, 7
    %v1279 = vsub.s32 0, %v1278
    %v1280 = vrot.slane %v1275, %v1279
    %v1281 = vsel %vm1276, %v1280, %v999
    %1282 = vmatprep.subr.mxu0 0.0
    %1283 = vmatpush1.msra.mxu0 %v138
    %1284 = vmatprep.subr.mxu0 0.0
    %1285 = vmatpush1.msra.mxu0 %v139
    %1286 = vmatprep.subr.mxu0 0.0
    %1287 = vmatpush1.msra.mxu0 %v140
    %1288 = vmatprep.subr.mxu0 0.0
    %1289 = vmatpush1.msra.mxu0 %v141
    %1290 = vmatprep.subr.mxu0 0.0
    %1291 = vmatpush1.msra.mxu0 0.0
    %1292 = vmatprep.subr.mxu0 0.0
    %1293 = vmatpush1.msra.mxu0 0.0
    %1294 = vmatprep.subr.mxu0 0.0
    %1295 = vmatpush1.msra.mxu0 0.0
    %1296 = vmatprep.subr.mxu0 0.0
    %1297 = vmatpush1.msra.mxu0 0.0
    %1298 = vmatprep.subr.mxu0 0.0
    %1299 = vmatpush1.msra.mxu0 0.0
    %1300 = vmatprep.subr.mxu0 0.0
    %1301 = vmatpush1.msra.mxu0 0.0
    %1302 = vmatprep.subr.mxu0 0.0
    %1303 = vmatpush1.msra.mxu0 0.0
    %1304 = vmatprep.subr.mxu0 0.0
    %1305 = vmatpush1.msra.mxu0 0.0
    %1306 = vmatprep.subr.mxu0 0.0
    %1307 = vmatpush1.msra.mxu0 0.0
    %1308 = vmatprep.subr.mxu0 0.0
    %1309 = vmatpush1.msra.mxu0 0.0
    %1310 = vmatprep.subr.mxu0 0.0
    %1311 = vmatpush1.msra.mxu0 0.0
    %1312 = vmatprep.subr.mxu0 0.0
    %1313 = vmatpush1.msra.mxu0 0.0
    %1314 = vmatprep.subr.mxu0 0.0
    %1315 = vmatpush1.msra.mxu0 0.0
    %1316 = vmatprep.subr.mxu0 0.0
    %1317 = vmatpush1.msra.mxu0 0.0
    %1318 = vmatprep.subr.mxu0 0.0
    %1319 = vmatpush1.msra.mxu0 0.0
    %1320 = vmatprep.subr.mxu0 0.0
    %1321 = vmatpush1.msra.mxu0 0.0
    %1322 = vmatprep.subr.mxu0 0.0
    %1323 = vmatpush1.msra.mxu0 0.0
    %1324 = vmatprep.subr.mxu0 0.0
    %1325 = vmatpush1.msra.mxu0 0.0
    %1326 = vmatprep.subr.mxu0 0.0
    %1327 = vmatpush1.msra.mxu0 0.0
    %1328 = vmatprep.subr.mxu0 0.0
    %1329 = vmatpush1.msra.mxu0 0.0
    %1330 = vmatprep.subr.mxu0 0.0
    %1331 = vmatpush1.msra.mxu0 0.0
    %1332 = vmatprep.subr.mxu0 0.0
    %1333 = vmatpush1.msra.mxu0 0.0
    %1334 = vmatprep.subr.mxu0 0.0
    %1335 = vmatpush1.msra.mxu0 0.0
    %1336 = vmatprep.subr.mxu0 0.0
    %1337 = vmatpush1.msra.mxu0 0.0
    %1338 = vmatprep.subr.mxu0 0.0
    %1339 = vmatpush1.msra.mxu0 0.0
    %1340 = vmatprep.subr.mxu0 0.0
    %1341 = vmatpush1.msra.mxu0 0.0
    %1342 = vmatprep.subr.mxu0 0.0
    %1343 = vmatpush1.msra.mxu0 0.0
    %1344 = vmatprep.subr.mxu0 0.0
    %1345 = vmatpush1.msra.mxu0 0.0
    %1346 = vmatprep.mubr.f32.mxu0 0.0
    %1347 = vmatmul.mubr.f32.gmra.mrb[0].mxu0 %v1180
    %v1348 = vpop.f32.mrb[0].mxu0
    %v1349 = vadd.f32 0.0, %v1348
    %v1350 = vpop.f32.mrb[0].mxu0
    %1351 = vdwg.mxu0
    %v1353 = vrot.slane %v1349, 4
    %v1355 = vadd.f32 %v129, %v1353
    %v1356 = vxor.u32 %v1355, 2147483648
    %v1357 = vmul.f32 %v1356, 1.442695
    %v1358 = vpow.pop %v1357
    %v1359 = vadd.f32 %v1358, 1.0
    %v1360 = vrcp.pop %v1359
    %v1361 = vmul.f32 1.0, %v1360
    %v1362 = vtanh.pop %v1355
    %v1364 = vrot.slane %v1094, 7
    %v1366 = vmul.f32 %v1361, %v1364
    %1368 = vrot.lane.b32.xlu0 %v1362, 32
    %v1369 = vpop.permute.xlu0 %1368
    %v1371 = vmul.f32 %v1361, %v1369
    %1373 = vrot.lane.b32.xlu0 %v1371, 32
    %v1374 = vpop.permute.xlu0 %1373
    %v1376 = vadd.f32 %v1366, %v1374
    %v1377 = vtanh.pop %v1376
    %1379 = vrot.lane.b32.xlu0 %v1377, 32
    %v1380 = vpop.permute.xlu0 %1379
    %v1382 = vmul.f32 %v1361, %v1380
    %1384 = vrot.lane.b32.xlu0 %v1275, 64
    %v1385 = vpop.permute.xlu0 %1384
    %v1386 = vsel %vm142, %v1385, 0
    %1388 = vmatprep.subr.mxu0 0.0
    %1389 = vmatpush1.msra.mxu0 %v245
    %1390 = vmatprep.subr.mxu0 0.0
    %1391 = vmatpush1.msra.mxu0 %v246
    %1392 = vmatprep.subr.mxu0 0.0
    %1393 = vmatpush1.msra.mxu0 %v247
    %1394 = vmatprep.subr.mxu0 0.0
    %1395 = vmatpush1.msra.mxu0 %v248
    %1396 = vmatprep.subr.mxu0 0.0
    %1397 = vmatpush1.msra.mxu0 0.0
    %1398 = vmatprep.subr.mxu0 0.0
    %1399 = vmatpush1.msra.mxu0 0.0
    %1400 = vmatprep.subr.mxu0 0.0
    %1401 = vmatpush1.msra.mxu0 0.0
    %1402 = vmatprep.subr.mxu0 0.0
    %1403 = vmatpush1.msra.mxu0 0.0
    %1404 = vmatprep.subr.mxu0 0.0
    %1405 = vmatpush1.msra.mxu0 0.0
    %1406 = vmatprep.subr.mxu0 0.0
    %1407 = vmatpush1.msra.mxu0 0.0
    %1408 = vmatprep.subr.mxu0 0.0
    %1409 = vmatpush1.msra.mxu0 0.0
    %1410 = vmatprep.subr.mxu0 0.0
    %1411 = vmatpush1.msra.mxu0 0.0
    %1412 = vmatprep.subr.mxu0 0.0
    %1413 = vmatpush1.msra.mxu0 0.0
    %1414 = vmatprep.subr.mxu0 0.0
    %1415 = vmatpush1.msra.mxu0 0.0
    %1416 = vmatprep.subr.mxu0 0.0
    %1417 = vmatpush1.msra.mxu0 0.0
    %1418 = vmatprep.subr.mxu0 0.0
    %1419 = vmatpush1.msra.mxu0 0.0
    %1420 = vmatprep.subr.mxu0 0.0
    %1421 = vmatpush1.msra.mxu0 0.0
    %1422 = vmatprep.subr.mxu0 0.0
    %1423 = vmatpush1.msra.mxu0 0.0
    %1424 = vmatprep.subr.mxu0 0.0
    %1425 = vmatpush1.msra.mxu0 0.0
    %1426 = vmatprep.subr.mxu0 0.0
    %1427 = vmatpush1.msra.mxu0 0.0
    %1428 = vmatprep.subr.mxu0 0.0
    %1429 = vmatpush1.msra.mxu0 0.0
    %1430 = vmatprep.subr.mxu0 0.0
    %1431 = vmatpush1.msra.mxu0 0.0
    %1432 = vmatprep.subr.mxu0 0.0
    %1433 = vmatpush1.msra.mxu0 0.0
    %1434 = vmatprep.subr.mxu0 0.0
    %1435 = vmatpush1.msra.mxu0 0.0
    %1436 = vmatprep.subr.mxu0 0.0
    %1437 = vmatpush1.msra.mxu0 0.0
    %1438 = vmatprep.subr.mxu0 0.0
    %1439 = vmatpush1.msra.mxu0 0.0
    %1440 = vmatprep.subr.mxu0 0.0
    %1441 = vmatpush1.msra.mxu0 0.0
    %1442 = vmatprep.subr.mxu0 0.0
    %1443 = vmatpush1.msra.mxu0 0.0
    %1444 = vmatprep.subr.mxu0 0.0
    %1445 = vmatpush1.msra.mxu0 0.0
    %1446 = vmatprep.subr.mxu0 0.0
    %1447 = vmatpush1.msra.mxu0 0.0
    %1448 = vmatprep.subr.mxu0 0.0
    %1449 = vmatpush1.msra.mxu0 0.0
    %1450 = vmatprep.subr.mxu0 0.0
    %1451 = vmatpush1.msra.mxu0 0.0
    %1452 = vmatprep.mubr.f32.mxu0 0.0
    %1453 = vmatmul.mubr.f32.gmra.mrb[0].mxu0 %v1386
    %v1454 = vpop.f32.mrb[0].mxu0
    %v1455 = vadd.f32 %v249, %v1454
    %v1456 = vpop.f32.mrb[0].mxu0
    %1457 = vdwg.mxu0
    %v1459 = vrot.slane %v1382, 4
    %1460 = vrot.lane.b32.xlu0 %v1459, 64
    %v1461 = vpop.permute.xlu0 %1460
    %v1462 = vsel %vm142, %v1461, 0
    %1464 = vmatprep.subr.mxu0 0.0
    %1465 = vmatpush1.msra.mxu0 %v323
    %1466 = vmatprep.subr.mxu0 0.0
    %1467 = vmatpush1.msra.mxu0 %v324
    %1468 = vmatprep.subr.mxu0 0.0
    %1469 = vmatpush1.msra.mxu0 %v325
    %1470 = vmatprep.subr.mxu0 0.0
    %1471 = vmatpush1.msra.mxu0 %v326
    %1472 = vmatprep.subr.mxu0 0.0
    %1473 = vmatpush1.msra.mxu0 0.0
    %1474 = vmatprep.subr.mxu0 0.0
    %1475 = vmatpush1.msra.mxu0 0.0
    %1476 = vmatprep.subr.mxu0 0.0
    %1477 = vmatpush1.msra.mxu0 0.0
    %1478 = vmatprep.subr.mxu0 0.0
    %1479 = vmatpush1.msra.mxu0 0.0
    %1480 = vmatprep.subr.mxu0 0.0
    %1481 = vmatpush1.msra.mxu0 0.0
    %1482 = vmatprep.subr.mxu0 0.0
    %1483 = vmatpush1.msra.mxu0 0.0
    %1484 = vmatprep.subr.mxu0 0.0
    %1485 = vmatpush1.msra.mxu0 0.0
    %1486 = vmatprep.subr.mxu0 0.0
    %1487 = vmatpush1.msra.mxu0 0.0
    %1488 = vmatprep.subr.mxu0 0.0
    %1489 = vmatpush1.msra.mxu0 0.0
    %1490 = vmatprep.subr.mxu0 0.0
    %1491 = vmatpush1.msra.mxu0 0.0
    %1492 = vmatprep.subr.mxu0 0.0
    %1493 = vmatpush1.msra.mxu0 0.0
    %1494 = vmatprep.subr.mxu0 0.0
    %1495 = vmatpush1.msra.mxu0 0.0
    %1496 = vmatprep.subr.mxu0 0.0
    %1497 = vmatpush1.msra.mxu0 0.0
    %1498 = vmatprep.subr.mxu0 0.0
    %1499 = vmatpush1.msra.mxu0 0.0
    %1500 = vmatprep.subr.mxu0 0.0
    %1501 = vmatpush1.msra.mxu0 0.0
    %1502 = vmatprep.subr.mxu0 0.0
    %1503 = vmatpush1.msra.mxu0 0.0
    %1504 = vmatprep.subr.mxu0 0.0
    %1505 = vmatpush1.msra.mxu0 0.0
    %1506 = vmatprep.subr.mxu0 0.0
    %1507 = vmatpush1.msra.mxu0 0.0
    %1508 = vmatprep.subr.mxu0 0.0
    %1509 = vmatpush1.msra.mxu0 0.0
    %1510 = vmatprep.subr.mxu0 0.0
    %1511 = vmatpush1.msra.mxu0 0.0
    %1512 = vmatprep.subr.mxu0 0.0
    %1513 = vmatpush1.msra.mxu0 0.0
    %1514 = vmatprep.subr.mxu0 0.0
    %1515 = vmatpush1.msra.mxu0 0.0
    %1516 = vmatprep.subr.mxu0 0.0
    %1517 = vmatpush1.msra.mxu0 0.0
    %1518 = vmatprep.subr.mxu0 0.0
    %1519 = vmatpush1.msra.mxu0 0.0
    %1520 = vmatprep.subr.mxu0 0.0
    %1521 = vmatpush1.msra.mxu0 0.0
    %1522 = vmatprep.subr.mxu0 0.0
    %1523 = vmatpush1.msra.mxu0 0.0
    %1524 = vmatprep.subr.mxu0 0.0
    %1525 = vmatpush1.msra.mxu0 0.0
    %1526 = vmatprep.subr.mxu0 0.0
    %1527 = vmatpush1.msra.mxu0 0.0
    %1528 = vmatprep.mubr.f32.mxu0 0.0
    %1529 = vmatmul.mubr.f32.gmra.mrb[0].mxu0 %v1462
    %v1530 = vpop.f32.mrb[0].mxu0
    %v1531 = vadd.f32 %v1455, %v1530
    %v1532 = vpop.f32.mrb[0].mxu0
    %1533 = vdwg.mxu0
    %v1534 = vxor.u32 %v1531, 2147483648
    %v1535 = vmul.f32 %v1534, 1.442695
    %v1536 = vpow.pop %v1535
    %v1537 = vadd.f32 %v1536, 1.0
    %v1538 = vrcp.pop %v1537
    %v1539 = vmul.f32 1.0, %v1538
    %v1540 = vtanh.pop %v1531
    %v1541 = vmul.f32 %v1539, %v1269
    %1543 = vrot.lane.b32.xlu0 %v1540, 32
    %v1544 = vpop.permute.xlu0 %1543
    %v1546 = vmul.f32 %v1539, %v1544
    %1548 = vrot.lane.b32.xlu0 %v1546, 32
    %v1549 = vpop.permute.xlu0 %1548
    %v1551 = vadd.f32 %v1541, %v1549
    %v1552 = vtanh.pop %v1551
    %1554 = vrot.lane.b32.xlu0 %v1552, 32
    %v1555 = vpop.permute.xlu0 %1554
    %v1557 = vmul.f32 %v1539, %v1555
    %vm1558 = vcmp.eq.s32.totalorder %v137, 4
    %v1559 = vlaneseq
    %v1560 = vshrl.u32 %v1559, 7
    %v1561 = vsub.s32 0, %v1560
    %v1562 = vrot.slane %v1557, %v1561
    %v1563 = vsel %vm1558, %v1562, %v1281
    %1564 = vmatprep.subr.mxu0 0.0
    %1565 = vmatpush1.msra.mxu0 %v138
    %1566 = vmatprep.subr.mxu0 0.0
    %1567 = vmatpush1.msra.mxu0 %v139
    %1568 = vmatprep.subr.mxu0 0.0
    %1569 = vmatpush1.msra.mxu0 %v140
    %1570 = vmatprep.subr.mxu0 0.0
    %1571 = vmatpush1.msra.mxu0 %v141
    %1572 = vmatprep.subr.mxu0 0.0
    %1573 = vmatpush1.msra.mxu0 0.0
    %1574 = vmatprep.subr.mxu0 0.0
    %1575 = vmatpush1.msra.mxu0 0.0
    %1576 = vmatprep.subr.mxu0 0.0
    %1577 = vmatpush1.msra.mxu0 0.0
    %1578 = vmatprep.subr.mxu0 0.0
    %1579 = vmatpush1.msra.mxu0 0.0
    %1580 = vmatprep.subr.mxu0 0.0
    %1581 = vmatpush1.msra.mxu0 0.0
    %1582 = vmatprep.subr.mxu0 0.0
    %1583 = vmatpush1.msra.mxu0 0.0
    %1584 = vmatprep.subr.mxu0 0.0
    %1585 = vmatpush1.msra.mxu0 0.0
    %1586 = vmatprep.subr.mxu0 0.0
    %1587 = vmatpush1.msra.mxu0 0.0
    %1588 = vmatprep.subr.mxu0 0.0
    %1589 = vmatpush1.msra.mxu0 0.0
    %1590 = vmatprep.subr.mxu0 0.0
    %1591 = vmatpush1.msra.mxu0 0.0
    %1592 = vmatprep.subr.mxu0 0.0
    %1593 = vmatpush1.msra.mxu0 0.0
    %1594 = vmatprep.subr.mxu0 0.0
    %1595 = vmatpush1.msra.mxu0 0.0
    %1596 = vmatprep.subr.mxu0 0.0
    %1597 = vmatpush1.msra.mxu0 0.0
    %1598 = vmatprep.subr.mxu0 0.0
    %1599 = vmatpush1.msra.mxu0 0.0
    %1600 = vmatprep.subr.mxu0 0.0
    %1601 = vmatpush1.msra.mxu0 0.0
    %1602 = vmatprep.subr.mxu0 0.0
    %1603 = vmatpush1.msra.mxu0 0.0
    %1604 = vmatprep.subr.mxu0 0.0
    %1605 = vmatpush1.msra.mxu0 0.0
    %1606 = vmatprep.subr.mxu0 0.0
    %1607 = vmatpush1.msra.mxu0 0.0
    %1608 = vmatprep.subr.mxu0 0.0
    %1609 = vmatpush1.msra.mxu0 0.0
    %1610 = vmatprep.subr.mxu0 0.0
    %1611 = vmatpush1.msra.mxu0 0.0
    %1612 = vmatprep.subr.mxu0 0.0
    %1613 = vmatpush1.msra.mxu0 0.0
    %1614 = vmatprep.subr.mxu0 0.0
    %1615 = vmatpush1.msra.mxu0 0.0
    %1616 = vmatprep.subr.mxu0 0.0
    %1617 = vmatpush1.msra.mxu0 0.0
    %1618 = vmatprep.subr.mxu0 0.0
    %1619 = vmatpush1.msra.mxu0 0.0
    %1620 = vmatprep.subr.mxu0 0.0
    %1621 = vmatpush1.msra.mxu0 0.0
    %1622 = vmatprep.subr.mxu0 0.0
    %1623 = vmatpush1.msra.mxu0 0.0
    %1624 = vmatprep.subr.mxu0 0.0
    %1625 = vmatpush1.msra.mxu0 0.0
    %1626 = vmatprep.subr.mxu0 0.0
    %1627 = vmatpush1.msra.mxu0 0.0
    %1628 = vmatprep.mubr.f32.mxu0 0.0
    %1629 = vmatmul.mubr.f32.gmra.mrb[0].mxu0 %v1462
    %v1630 = vpop.f32.mrb[0].mxu0
    %v1631 = vadd.f32 0.0, %v1630
    %v1632 = vpop.f32.mrb[0].mxu0
    %1633 = vdwg.mxu0
    %v1635 = vrot.slane %v1631, 3
    %v1637 = vadd.f32 %v129, %v1635
    %v1638 = vxor.u32 %v1637, 2147483648
    %v1639 = vmul.f32 %v1638, 1.442695
    %v1640 = vpow.pop %v1639
    %v1641 = vadd.f32 %v1640, 1.0
    %v1642 = vrcp.pop %v1641
    %v1643 = vmul.f32 1.0, %v1642
    %v1644 = vtanh.pop %v1637
    %v1646 = vrot.slane %v1376, 7
    %v1648 = vmul.f32 %v1643, %v1646
    %1650 = vrot.lane.b32.xlu0 %v1644, 32
    %v1651 = vpop.permute.xlu0 %1650
    %v1653 = vmul.f32 %v1643, %v1651
    %1655 = vrot.lane.b32.xlu0 %v1653, 32
    %v1656 = vpop.permute.xlu0 %1655
    %v1658 = vadd.f32 %v1648, %v1656
    %v1659 = vtanh.pop %v1658
    %1661 = vrot.lane.b32.xlu0 %v1659, 32
    %v1662 = vpop.permute.xlu0 %1661
    %v1664 = vmul.f32 %v1643, %v1662
    %1666 = vrot.lane.b32.xlu0 %v1557, 64
    %v1667 = vpop.permute.xlu0 %1666
    %v1668 = vsel %vm142, %v1667, 0
    %1670 = vmatprep.subr.mxu0 0.0
    %1671 = vmatpush1.msra.mxu0 %v245
    %1672 = vmatprep.subr.mxu0 0.0
    %1673 = vmatpush1.msra.mxu0 %v246
    %1674 = vmatprep.subr.mxu0 0.0
    %1675 = vmatpush1.msra.mxu0 %v247
    %1676 = vmatprep.subr.mxu0 0.0
    %1677 = vmatpush1.msra.mxu0 %v248
    %1678 = vmatprep.subr.mxu0 0.0
    %1679 = vmatpush1.msra.mxu0 0.0
    %1680 = vmatprep.subr.mxu0 0.0
    %1681 = vmatpush1.msra.mxu0 0.0
    %1682 = vmatprep.subr.mxu0 0.0
    %1683 = vmatpush1.msra.mxu0 0.0
    %1684 = vmatprep.subr.mxu0 0.0
    %1685 = vmatpush1.msra.mxu0 0.0
    %1686 = vmatprep.subr.mxu0 0.0
    %1687 = vmatpush1.msra.mxu0 0.0
    %1688 = vmatprep.subr.mxu0 0.0
    %1689 = vmatpush1.msra.mxu0 0.0
    %1690 = vmatprep.subr.mxu0 0.0
    %1691 = vmatpush1.msra.mxu0 0.0
    %1692 = vmatprep.subr.mxu0 0.0
    %1693 = vmatpush1.msra.mxu0 0.0
    %1694 = vmatprep.subr.mxu0 0.0
    %1695 = vmatpush1.msra.mxu0 0.0
    %1696 = vmatprep.subr.mxu0 0.0
    %1697 = vmatpush1.msra.mxu0 0.0
    %1698 = vmatprep.subr.mxu0 0.0
    %1699 = vmatpush1.msra.mxu0 0.0
    %1700 = vmatprep.subr.mxu0 0.0
    %1701 = vmatpush1.msra.mxu0 0.0
    %1702 = vmatprep.subr.mxu0 0.0
    %1703 = vmatpush1.msra.mxu0 0.0
    %1704 = vmatprep.subr.mxu0 0.0
    %1705 = vmatpush1.msra.mxu0 0.0
    %1706 = vmatprep.subr.mxu0 0.0
    %1707 = vmatpush1.msra.mxu0 0.0
    %1708 = vmatprep.subr.mxu0 0.0
    %1709 = vmatpush1.msra.mxu0 0.0
    %1710 = vmatprep.subr.mxu0 0.0
    %1711 = vmatpush1.msra.mxu0 0.0
    %1712 = vmatprep.subr.mxu0 0.0
    %1713 = vmatpush1.msra.mxu0 0.0
    %1714 = vmatprep.subr.mxu0 0.0
    %1715 = vmatpush1.msra.mxu0 0.0
    %1716 = vmatprep.subr.mxu0 0.0
    %1717 = vmatpush1.msra.mxu0 0.0
    %1718 = vmatprep.subr.mxu0 0.0
    %1719 = vmatpush1.msra.mxu0 0.0
    %1720 = vmatprep.subr.mxu0 0.0
    %1721 = vmatpush1.msra.mxu0 0.0
    %1722 = vmatprep.subr.mxu0 0.0
    %1723 = vmatpush1.msra.mxu0 0.0
    %1724 = vmatprep.subr.mxu0 0.0
    %1725 = vmatpush1.msra.mxu0 0.0
    %1726 = vmatprep.subr.mxu0 0.0
    %1727 = vmatpush1.msra.mxu0 0.0
    %1728 = vmatprep.subr.mxu0 0.0
    %1729 = vmatpush1.msra.mxu0 0.0
    %1730 = vmatprep.subr.mxu0 0.0
    %1731 = vmatpush1.msra.mxu0 0.0
    %1732 = vmatprep.subr.mxu0 0.0
    %1733 = vmatpush1.msra.mxu0 0.0
    %1734 = vmatprep.mubr.f32.mxu0 0.0
    %1735 = vmatmul.mubr.f32.gmra.mrb[0].mxu0 %v1668
    %v1736 = vpop.f32.mrb[0].mxu0
    %v1737 = vadd.f32 %v249, %v1736
    %v1738 = vpop.f32.mrb[0].mxu0
    %1739 = vdwg.mxu0
    %v1741 = vrot.slane %v1664, 5
    %1742 = vrot.lane.b32.xlu0 %v1741, 64
    %v1743 = vpop.permute.xlu0 %1742
    %v1744 = vsel %vm142, %v1743, 0
    %1746 = vmatprep.subr.mxu0 0.0
    %1747 = vmatpush1.msra.mxu0 %v323
    %1748 = vmatprep.subr.mxu0 0.0
    %1749 = vmatpush1.msra.mxu0 %v324
    %1750 = vmatprep.subr.mxu0 0.0
    %1751 = vmatpush1.msra.mxu0 %v325
    %1752 = vmatprep.subr.mxu0 0.0
    %1753 = vmatpush1.msra.mxu0 %v326
    %1754 = vmatprep.subr.mxu0 0.0
    %1755 = vmatpush1.msra.mxu0 0.0
    %1756 = vmatprep.subr.mxu0 0.0
    %1757 = vmatpush1.msra.mxu0 0.0
    %1758 = vmatprep.subr.mxu0 0.0
    %1759 = vmatpush1.msra.mxu0 0.0
    %1760 = vmatprep.subr.mxu0 0.0
    %1761 = vmatpush1.msra.mxu0 0.0
    %1762 = vmatprep.subr.mxu0 0.0
    %1763 = vmatpush1.msra.mxu0 0.0
    %1764 = vmatprep.subr.mxu0 0.0
    %1765 = vmatpush1.msra.mxu0 0.0
    %1766 = vmatprep.subr.mxu0 0.0
    %1767 = vmatpush1.msra.mxu0 0.0
    %1768 = vmatprep.subr.mxu0 0.0
    %1769 = vmatpush1.msra.mxu0 0.0
    %1770 = vmatprep.subr.mxu0 0.0
    %1771 = vmatpush1.msra.mxu0 0.0
    %1772 = vmatprep.subr.mxu0 0.0
    %1773 = vmatpush1.msra.mxu0 0.0
    %1774 = vmatprep.subr.mxu0 0.0
    %1775 = vmatpush1.msra.mxu0 0.0
    %1776 = vmatprep.subr.mxu0 0.0
    %1777 = vmatpush1.msra.mxu0 0.0
    %1778 = vmatprep.subr.mxu0 0.0
    %1779 = vmatpush1.msra.mxu0 0.0
    %1780 = vmatprep.subr.mxu0 0.0
    %1781 = vmatpush1.msra.mxu0 0.0
    %1782 = vmatprep.subr.mxu0 0.0
    %1783 = vmatpush1.msra.mxu0 0.0
    %1784 = vmatprep.subr.mxu0 0.0
    %1785 = vmatpush1.msra.mxu0 0.0
    %1786 = vmatprep.subr.mxu0 0.0
    %1787 = vmatpush1.msra.mxu0 0.0
    %1788 = vmatprep.subr.mxu0 0.0
    %1789 = vmatpush1.msra.mxu0 0.0
    %1790 = vmatprep.subr.mxu0 0.0
    %1791 = vmatpush1.msra.mxu0 0.0
    %1792 = vmatprep.subr.mxu0 0.0
    %1793 = vmatpush1.msra.mxu0 0.0
    %1794 = vmatprep.subr.mxu0 0.0
    %1795 = vmatpush1.msra.mxu0 0.0
    %1796 = vmatprep.subr.mxu0 0.0
    %1797 = vmatpush1.msra.mxu0 0.0
    %1798 = vmatprep.subr.mxu0 0.0
    %1799 = vmatpush1.msra.mxu0 0.0
    %1800 = vmatprep.subr.mxu0 0.0
    %1801 = vmatpush1.msra.mxu0 0.0
    %1802 = vmatprep.subr.mxu0 0.0
    %1803 = vmatpush1.msra.mxu0 0.0
    %1804 = vmatprep.subr.mxu0 0.0
    %1805 = vmatpush1.msra.mxu0 0.0
    %1806 = vmatprep.subr.mxu0 0.0
    %1807 = vmatpush1.msra.mxu0 0.0
    %1808 = vmatprep.subr.mxu0 0.0
    %1809 = vmatpush1.msra.mxu0 0.0
    %1810 = vmatprep.mubr.f32.mxu0 0.0
    %1811 = vmatmul.mubr.f32.gmra.mrb[0].mxu0 %v1744
    %v1812 = vpop.f32.mrb[0].mxu0
    %v1813 = vadd.f32 %v1737, %v1812
    %v1814 = vpop.f32.mrb[0].mxu0
    %1815 = vdwg.mxu0
    %v1816 = vxor.u32 %v1813, 2147483648
    %v1817 = vmul.f32 %v1816, 1.442695
    %v1818 = vpow.pop %v1817
    %v1819 = vadd.f32 %v1818, 1.0
    %v1820 = vrcp.pop %v1819
    %v1821 = vmul.f32 1.0, %v1820
    %v1822 = vtanh.pop %v1813
    %v1823 = vmul.f32 %v1821, %v1551
    %1825 = vrot.lane.b32.xlu0 %v1822, 32
    %v1826 = vpop.permute.xlu0 %1825
    %v1828 = vmul.f32 %v1821, %v1826
    %1830 = vrot.lane.b32.xlu0 %v1828, 32
    %v1831 = vpop.permute.xlu0 %1830
    %v1833 = vadd.f32 %v1823, %v1831
    %v1834 = vtanh.pop %v1833
    %1836 = vrot.lane.b32.xlu0 %v1834, 32
    %v1837 = vpop.permute.xlu0 %1836
    %v1839 = vmul.f32 %v1821, %v1837
    %vm1840 = vcmp.eq.s32.totalorder %v137, 5
    %v1841 = vlaneseq
    %v1842 = vshrl.u32 %v1841, 7
    %v1843 = vsub.s32 0, %v1842
    %v1844 = vrot.slane %v1839, %v1843
    %v1845 = vsel %vm1840, %v1844, %v1563
    %1846 = vmatprep.subr.mxu0 0.0
    %1847 = vmatpush1.msra.mxu0 %v138
    %1848 = vmatprep.subr.mxu0 0.0
    %1849 = vmatpush1.msra.mxu0 %v139
    %1850 = vmatprep.subr.mxu0 0.0
    %1851 = vmatpush1.msra.mxu0 %v140
    %1852 = vmatprep.subr.mxu0 0.0
    %1853 = vmatpush1.msra.mxu0 %v141
    %1854 = vmatprep.subr.mxu0 0.0
    %1855 = vmatpush1.msra.mxu0 0.0
    %1856 = vmatprep.subr.mxu0 0.0
    %1857 = vmatpush1.msra.mxu0 0.0
    %1858 = vmatprep.subr.mxu0 0.0
    %1859 = vmatpush1.msra.mxu0 0.0
    %1860 = vmatprep.subr.mxu0 0.0
    %1861 = vmatpush1.msra.mxu0 0.0
    %1862 = vmatprep.subr.mxu0 0.0
    %1863 = vmatpush1.msra.mxu0 0.0
    %1864 = vmatprep.subr.mxu0 0.0
    %1865 = vmatpush1.msra.mxu0 0.0
    %1866 = vmatprep.subr.mxu0 0.0
    %1867 = vmatpush1.msra.mxu0 0.0
    %1868 = vmatprep.subr.mxu0 0.0
    %1869 = vmatpush1.msra.mxu0 0.0
    %1870 = vmatprep.subr.mxu0 0.0
    %1871 = vmatpush1.msra.mxu0 0.0
    %1872 = vmatprep.subr.mxu0 0.0
    %1873 = vmatpush1.msra.mxu0 0.0
    %1874 = vmatprep.subr.mxu0 0.0
    %1875 = vmatpush1.msra.mxu0 0.0
    %1876 = vmatprep.subr.mxu0 0.0
    %1877 = vmatpush1.msra.mxu0 0.0
    %1878 = vmatprep.subr.mxu0 0.0
    %1879 = vmatpush1.msra.mxu0 0.0
    %1880 = vmatprep.subr.mxu0 0.0
    %1881 = vmatpush1.msra.mxu0 0.0
    %1882 = vmatprep.subr.mxu0 0.0
    %1883 = vmatpush1.msra.mxu0 0.0
    %1884 = vmatprep.subr.mxu0 0.0
    %1885 = vmatpush1.msra.mxu0 0.0
    %1886 = vmatprep.subr.mxu0 0.0
    %1887 = vmatpush1.msra.mxu0 0.0
    %1888 = vmatprep.subr.mxu0 0.0
    %1889 = vmatpush1.msra.mxu0 0.0
    %1890 = vmatprep.subr.mxu0 0.0
    %1891 = vmatpush1.msra.mxu0 0.0
    %1892 = vmatprep.subr.mxu0 0.0
    %1893 = vmatpush1.msra.mxu0 0.0
    %1894 = vmatprep.subr.mxu0 0.0
    %1895 = vmatpush1.msra.mxu0 0.0
    %1896 = vmatprep.subr.mxu0 0.0
    %1897 = vmatpush1.msra.mxu0 0.0
    %1898 = vmatprep.subr.mxu0 0.0
    %1899 = vmatpush1.msra.mxu0 0.0
    %1900 = vmatprep.subr.mxu0 0.0
    %1901 = vmatpush1.msra.mxu0 0.0
    %1902 = vmatprep.subr.mxu0 0.0
    %1903 = vmatpush1.msra.mxu0 0.0
    %1904 = vmatprep.subr.mxu0 0.0
    %1905 = vmatpush1.msra.mxu0 0.0
    %1906 = vmatprep.subr.mxu0 0.0
    %1907 = vmatpush1.msra.mxu0 0.0
    %1908 = vmatprep.subr.mxu0 0.0
    %1909 = vmatpush1.msra.mxu0 0.0
    %1910 = vmatprep.mubr.f32.mxu0 0.0
    %1911 = vmatmul.mubr.f32.gmra.mrb[0].mxu0 %v1744
    %v1912 = vpop.f32.mrb[0].mxu0
    %v1913 = vadd.f32 0.0, %v1912
    %v1914 = vpop.f32.mrb[0].mxu0
    %1915 = vdwg.mxu0
    %v1917 = vrot.slane %v1913, 2
    %v1919 = vadd.f32 %v129, %v1917
    %v1920 = vxor.u32 %v1919, 2147483648
    %v1921 = vmul.f32 %v1920, 1.442695
    %v1922 = vpow.pop %v1921
    %v1923 = vadd.f32 %v1922, 1.0
    %v1924 = vrcp.pop %v1923
    %v1925 = vmul.f32 1.0, %v1924
    %v1926 = vtanh.pop %v1919
    %v1928 = vrot.slane %v1658, 7
    %v1930 = vmul.f32 %v1925, %v1928
    %1932 = vrot.lane.b32.xlu0 %v1926, 32
    %v1933 = vpop.permute.xlu0 %1932
    %v1935 = vmul.f32 %v1925, %v1933
    %1937 = vrot.lane.b32.xlu0 %v1935, 32
    %v1938 = vpop.permute.xlu0 %1937
    %v1940 = vadd.f32 %v1930, %v1938
    %v1941 = vtanh.pop %v1940
    %1943 = vrot.lane.b32.xlu0 %v1941, 32
    %v1944 = vpop.permute.xlu0 %1943
    %v1946 = vmul.f32 %v1925, %v1944
    %1948 = vrot.lane.b32.xlu0 %v1839, 64
    %v1949 = vpop.permute.xlu0 %1948
    %v1950 = vsel %vm142, %v1949, 0
    %1952 = vmatprep.subr.mxu0 0.0
    %1953 = vmatpush1.msra.mxu0 %v245
    %1954 = vmatprep.subr.mxu0 0.0
    %1955 = vmatpush1.msra.mxu0 %v246
    %1956 = vmatprep.subr.mxu0 0.0
    %1957 = vmatpush1.msra.mxu0 %v247
    %1958 = vmatprep.subr.mxu0 0.0
    %1959 = vmatpush1.msra.mxu0 %v248
    %1960 = vmatprep.subr.mxu0 0.0
    %1961 = vmatpush1.msra.mxu0 0.0
    %1962 = vmatprep.subr.mxu0 0.0
    %1963 = vmatpush1.msra.mxu0 0.0
    %1964 = vmatprep.subr.mxu0 0.0
    %1965 = vmatpush1.msra.mxu0 0.0
    %1966 = vmatprep.subr.mxu0 0.0
    %1967 = vmatpush1.msra.mxu0 0.0
    %1968 = vmatprep.subr.mxu0 0.0
    %1969 = vmatpush1.msra.mxu0 0.0
    %1970 = vmatprep.subr.mxu0 0.0
    %1971 = vmatpush1.msra.mxu0 0.0
    %1972 = vmatprep.subr.mxu0 0.0
    %1973 = vmatpush1.msra.mxu0 0.0
    %1974 = vmatprep.subr.mxu0 0.0
    %1975 = vmatpush1.msra.mxu0 0.0
    %1976 = vmatprep.subr.mxu0 0.0
    %1977 = vmatpush1.msra.mxu0 0.0
    %1978 = vmatprep.subr.mxu0 0.0
    %1979 = vmatpush1.msra.mxu0 0.0
    %1980 = vmatprep.subr.mxu0 0.0
    %1981 = vmatpush1.msra.mxu0 0.0
    %1982 = vmatprep.subr.mxu0 0.0
    %1983 = vmatpush1.msra.mxu0 0.0
    %1984 = vmatprep.subr.mxu0 0.0
    %1985 = vmatpush1.msra.mxu0 0.0
    %1986 = vmatprep.subr.mxu0 0.0
    %1987 = vmatpush1.msra.mxu0 0.0
    %1988 = vmatprep.subr.mxu0 0.0
    %1989 = vmatpush1.msra.mxu0 0.0
    %1990 = vmatprep.subr.mxu0 0.0
    %1991 = vmatpush1.msra.mxu0 0.0
    %1992 = vmatprep.subr.mxu0 0.0
    %1993 = vmatpush1.msra.mxu0 0.0
    %1994 = vmatprep.subr.mxu0 0.0
    %1995 = vmatpush1.msra.mxu0 0.0
    %1996 = vmatprep.subr.mxu0 0.0
    %1997 = vmatpush1.msra.mxu0 0.0
    %1998 = vmatprep.subr.mxu0 0.0
    %1999 = vmatpush1.msra.mxu0 0.0
    %2000 = vmatprep.subr.mxu0 0.0
    %2001 = vmatpush1.msra.mxu0 0.0
    %2002 = vmatprep.subr.mxu0 0.0
    %2003 = vmatpush1.msra.mxu0 0.0
    %2004 = vmatprep.subr.mxu0 0.0
    %2005 = vmatpush1.msra.mxu0 0.0
    %2006 = vmatprep.subr.mxu0 0.0
    %2007 = vmatpush1.msra.mxu0 0.0
    %2008 = vmatprep.subr.mxu0 0.0
    %2009 = vmatpush1.msra.mxu0 0.0
    %2010 = vmatprep.subr.mxu0 0.0
    %2011 = vmatpush1.msra.mxu0 0.0
    %2012 = vmatprep.subr.mxu0 0.0
    %2013 = vmatpush1.msra.mxu0 0.0
    %2014 = vmatprep.subr.mxu0 0.0
    %2015 = vmatpush1.msra.mxu0 0.0
    %2016 = vmatprep.mubr.f32.mxu0 0.0
    %2017 = vmatmul.mubr.f32.gmra.mrb[0].mxu0 %v1950
    %v2018 = vpop.f32.mrb[0].mxu0
    %v2019 = vadd.f32 %v249, %v2018
    %v2020 = vpop.f32.mrb[0].mxu0
    %2021 = vdwg.mxu0
    %v2023 = vrot.slane %v1946, 6
    %2024 = vrot.lane.b32.xlu0 %v2023, 64
    %v2025 = vpop.permute.xlu0 %2024
    %v2026 = vsel %vm142, %v2025, 0
    %2028 = vmatprep.subr.mxu0 0.0
    %2029 = vmatpush1.msra.mxu0 %v323
    %2030 = vmatprep.subr.mxu0 0.0
    %2031 = vmatpush1.msra.mxu0 %v324
    %2032 = vmatprep.subr.mxu0 0.0
    %2033 = vmatpush1.msra.mxu0 %v325
    %2034 = vmatprep.subr.mxu0 0.0
    %2035 = vmatpush1.msra.mxu0 %v326
    %2036 = vmatprep.subr.mxu0 0.0
    %2037 = vmatpush1.msra.mxu0 0.0
    %2038 = vmatprep.subr.mxu0 0.0
    %2039 = vmatpush1.msra.mxu0 0.0
    %2040 = vmatprep.subr.mxu0 0.0
    %2041 = vmatpush1.msra.mxu0 0.0
    %2042 = vmatprep.subr.mxu0 0.0
    %2043 = vmatpush1.msra.mxu0 0.0
    %2044 = vmatprep.subr.mxu0 0.0
    %2045 = vmatpush1.msra.mxu0 0.0
    %2046 = vmatprep.subr.mxu0 0.0
    %2047 = vmatpush1.msra.mxu0 0.0
    %2048 = vmatprep.subr.mxu0 0.0
    %2049 = vmatpush1.msra.mxu0 0.0
    %2050 = vmatprep.subr.mxu0 0.0
    %2051 = vmatpush1.msra.mxu0 0.0
    %2052 = vmatprep.subr.mxu0 0.0
    %2053 = vmatpush1.msra.mxu0 0.0
    %2054 = vmatprep.subr.mxu0 0.0
    %2055 = vmatpush1.msra.mxu0 0.0
    %2056 = vmatprep.subr.mxu0 0.0
    %2057 = vmatpush1.msra.mxu0 0.0
    %2058 = vmatprep.subr.mxu0 0.0
    %2059 = vmatpush1.msra.mxu0 0.0
    %2060 = vmatprep.subr.mxu0 0.0
    %2061 = vmatpush1.msra.mxu0 0.0
    %2062 = vmatprep.subr.mxu0 0.0
    %2063 = vmatpush1.msra.mxu0 0.0
    %2064 = vmatprep.subr.mxu0 0.0
    %2065 = vmatpush1.msra.mxu0 0.0
    %2066 = vmatprep.subr.mxu0 0.0
    %2067 = vmatpush1.msra.mxu0 0.0
    %2068 = vmatprep.subr.mxu0 0.0
    %2069 = vmatpush1.msra.mxu0 0.0
    %2070 = vmatprep.subr.mxu0 0.0
    %2071 = vmatpush1.msra.mxu0 0.0
    %2072 = vmatprep.subr.mxu0 0.0
    %2073 = vmatpush1.msra.mxu0 0.0
    %2074 = vmatprep.subr.mxu0 0.0
    %2075 = vmatpush1.msra.mxu0 0.0
    %2076 = vmatprep.subr.mxu0 0.0
    %2077 = vmatpush1.msra.mxu0 0.0
    %2078 = vmatprep.subr.mxu0 0.0
    %2079 = vmatpush1.msra.mxu0 0.0
    %2080 = vmatprep.subr.mxu0 0.0
    %2081 = vmatpush1.msra.mxu0 0.0
    %2082 = vmatprep.subr.mxu0 0.0
    %2083 = vmatpush1.msra.mxu0 0.0
    %2084 = vmatprep.subr.mxu0 0.0
    %2085 = vmatpush1.msra.mxu0 0.0
    %2086 = vmatprep.subr.mxu0 0.0
    %2087 = vmatpush1.msra.mxu0 0.0
    %2088 = vmatprep.subr.mxu0 0.0
    %2089 = vmatpush1.msra.mxu0 0.0
    %2090 = vmatprep.subr.mxu0 0.0
    %2091 = vmatpush1.msra.mxu0 0.0
    %2092 = vmatprep.mubr.f32.mxu0 0.0
    %2093 = vmatmul.mubr.f32.gmra.mrb[0].mxu0 %v2026
    %v2094 = vpop.f32.mrb[0].mxu0
    %v2095 = vadd.f32 %v2019, %v2094
    %v2096 = vpop.f32.mrb[0].mxu0
    %2097 = vdwg.mxu0
    %v2098 = vxor.u32 %v2095, 2147483648
    %v2099 = vmul.f32 %v2098, 1.442695
    %v2100 = vpow.pop %v2099
    %v2101 = vadd.f32 %v2100, 1.0
    %v2102 = vrcp.pop %v2101
    %v2103 = vmul.f32 1.0, %v2102
    %v2104 = vtanh.pop %v2095
    %v2105 = vmul.f32 %v2103, %v1833
    %2107 = vrot.lane.b32.xlu0 %v2104, 32
    %v2108 = vpop.permute.xlu0 %2107
    %v2110 = vmul.f32 %v2103, %v2108
    %2112 = vrot.lane.b32.xlu0 %v2110, 32
    %v2113 = vpop.permute.xlu0 %2112
    %v2115 = vadd.f32 %v2105, %v2113
    %v2116 = vtanh.pop %v2115
    %2118 = vrot.lane.b32.xlu0 %v2116, 32
    %v2119 = vpop.permute.xlu0 %2118
    %v2121 = vmul.f32 %v2103, %v2119
    %vm2122 = vcmp.eq.s32.totalorder %v137, 6
    %v2123 = vlaneseq
    %v2124 = vshrl.u32 %v2123, 7
    %v2125 = vsub.s32 0, %v2124
    %v2126 = vrot.slane %v2121, %v2125
    %v2127 = vsel %vm2122, %v2126, %v1845
    %2128 = vmatprep.subr.mxu0 0.0
    %2129 = vmatpush1.msra.mxu0 %v138
    %2130 = vmatprep.subr.mxu0 0.0
    %2131 = vmatpush1.msra.mxu0 %v139
    %2132 = vmatprep.subr.mxu0 0.0
    %2133 = vmatpush1.msra.mxu0 %v140
    %2134 = vmatprep.subr.mxu0 0.0
    %2135 = vmatpush1.msra.mxu0 %v141
    %2136 = vmatprep.subr.mxu0 0.0
    %2137 = vmatpush1.msra.mxu0 0.0
    %2138 = vmatprep.subr.mxu0 0.0
    %2139 = vmatpush1.msra.mxu0 0.0
    %2140 = vmatprep.subr.mxu0 0.0
    %2141 = vmatpush1.msra.mxu0 0.0
    %2142 = vmatprep.subr.mxu0 0.0
    %2143 = vmatpush1.msra.mxu0 0.0
    %2144 = vmatprep.subr.mxu0 0.0
    %2145 = vmatpush1.msra.mxu0 0.0
    %2146 = vmatprep.subr.mxu0 0.0
    %2147 = vmatpush1.msra.mxu0 0.0
    %2148 = vmatprep.subr.mxu0 0.0
    %2149 = vmatpush1.msra.mxu0 0.0
    %2150 = vmatprep.subr.mxu0 0.0
    %2151 = vmatpush1.msra.mxu0 0.0
    %2152 = vmatprep.subr.mxu0 0.0
    %2153 = vmatpush1.msra.mxu0 0.0
    %2154 = vmatprep.subr.mxu0 0.0
    %2155 = vmatpush1.msra.mxu0 0.0
    %2156 = vmatprep.subr.mxu0 0.0
    %2157 = vmatpush1.msra.mxu0 0.0
    %2158 = vmatprep.subr.mxu0 0.0
    %2159 = vmatpush1.msra.mxu0 0.0
    %2160 = vmatprep.subr.mxu0 0.0
    %2161 = vmatpush1.msra.mxu0 0.0
    %2162 = vmatprep.subr.mxu0 0.0
    %2163 = vmatpush1.msra.mxu0 0.0
    %2164 = vmatprep.subr.mxu0 0.0
    %2165 = vmatpush1.msra.mxu0 0.0
    %2166 = vmatprep.subr.mxu0 0.0
    %2167 = vmatpush1.msra.mxu0 0.0
    %2168 = vmatprep.subr.mxu0 0.0
    %2169 = vmatpush1.msra.mxu0 0.0
    %2170 = vmatprep.subr.mxu0 0.0
    %2171 = vmatpush1.msra.mxu0 0.0
    %2172 = vmatprep.subr.mxu0 0.0
    %2173 = vmatpush1.msra.mxu0 0.0
    %2174 = vmatprep.subr.mxu0 0.0
    %2175 = vmatpush1.msra.mxu0 0.0
    %2176 = vmatprep.subr.mxu0 0.0
    %2177 = vmatpush1.msra.mxu0 0.0
    %2178 = vmatprep.subr.mxu0 0.0
    %2179 = vmatpush1.msra.mxu0 0.0
    %2180 = vmatprep.subr.mxu0 0.0
    %2181 = vmatpush1.msra.mxu0 0.0
    %2182 = vmatprep.subr.mxu0 0.0
    %2183 = vmatpush1.msra.mxu0 0.0
    %2184 = vmatprep.subr.mxu0 0.0
    %2185 = vmatpush1.msra.mxu0 0.0
    %2186 = vmatprep.subr.mxu0 0.0
    %2187 = vmatpush1.msra.mxu0 0.0
    %2188 = vmatprep.subr.mxu0 0.0
    %2189 = vmatpush1.msra.mxu0 0.0
    %2190 = vmatprep.subr.mxu0 0.0
    %2191 = vmatpush1.msra.mxu0 0.0
    %2192 = vmatprep.mubr.f32.mxu0 0.0
    %2193 = vmatmul.mubr.f32.gmra.mrb[0].mxu0 %v2026
    %v2194 = vpop.f32.mrb[0].mxu0
    %v2195 = vadd.f32 0.0, %v2194
    %v2196 = vpop.f32.mrb[0].mxu0
    %2197 = vdwg.mxu0
    %v2199 = vrot.slane %v2195, 1
    %v2201 = vadd.f32 %v129, %v2199
    %v2202 = vxor.u32 %v2201, 2147483648
    %v2203 = vmul.f32 %v2202, 1.442695
    %v2204 = vpow.pop %v2203
    %v2205 = vadd.f32 %v2204, 1.0
    %v2206 = vrcp.pop %v2205
    %v2207 = vmul.f32 1.0, %v2206
    %v2208 = vtanh.pop %v2201
    %v2210 = vrot.slane %v1940, 7
    %v2212 = vmul.f32 %v2207, %v2210
    %2214 = vrot.lane.b32.xlu0 %v2208, 32
    %v2215 = vpop.permute.xlu0 %2214
    %v2217 = vmul.f32 %v2207, %v2215
    %2219 = vrot.lane.b32.xlu0 %v2217, 32
    %v2220 = vpop.permute.xlu0 %2219
    %v2222 = vadd.f32 %v2212, %v2220
    %v2223 = vtanh.pop %v2222
    %2225 = vrot.lane.b32.xlu0 %v2223, 32
    %v2226 = vpop.permute.xlu0 %2225
    %v2228 = vmul.f32 %v2207, %v2226
    %2230 = vrot.lane.b32.xlu0 %v2121, 64
    %v2231 = vpop.permute.xlu0 %2230
    %v2232 = vsel %vm142, %v2231, 0
    %2234 = vmatprep.subr.mxu0 0.0
    %2235 = vmatpush1.msra.mxu0 %v245
    %2236 = vmatprep.subr.mxu0 0.0
    %2237 = vmatpush1.msra.mxu0 %v246
    %2238 = vmatprep.subr.mxu0 0.0
    %2239 = vmatpush1.msra.mxu0 %v247
    %2240 = vmatprep.subr.mxu0 0.0
    %2241 = vmatpush1.msra.mxu0 %v248
    %2242 = vmatprep.subr.mxu0 0.0
    %2243 = vmatpush1.msra.mxu0 0.0
    %2244 = vmatprep.subr.mxu0 0.0
    %2245 = vmatpush1.msra.mxu0 0.0
    %2246 = vmatprep.subr.mxu0 0.0
    %2247 = vmatpush1.msra.mxu0 0.0
    %2248 = vmatprep.subr.mxu0 0.0
    %2249 = vmatpush1.msra.mxu0 0.0
    %2250 = vmatprep.subr.mxu0 0.0
    %2251 = vmatpush1.msra.mxu0 0.0
    %2252 = vmatprep.subr.mxu0 0.0
    %2253 = vmatpush1.msra.mxu0 0.0
    %2254 = vmatprep.subr.mxu0 0.0
    %2255 = vmatpush1.msra.mxu0 0.0
    %2256 = vmatprep.subr.mxu0 0.0
    %2257 = vmatpush1.msra.mxu0 0.0
    %2258 = vmatprep.subr.mxu0 0.0
    %2259 = vmatpush1.msra.mxu0 0.0
    %2260 = vmatprep.subr.mxu0 0.0
    %2261 = vmatpush1.msra.mxu0 0.0
    %2262 = vmatprep.subr.mxu0 0.0
    %2263 = vmatpush1.msra.mxu0 0.0
    %2264 = vmatprep.subr.mxu0 0.0
    %2265 = vmatpush1.msra.mxu0 0.0
    %2266 = vmatprep.subr.mxu0 0.0
    %2267 = vmatpush1.msra.mxu0 0.0
    %2268 = vmatprep.subr.mxu0 0.0
    %2269 = vmatpush1.msra.mxu0 0.0
    %2270 = vmatprep.subr.mxu0 0.0
    %2271 = vmatpush1.msra.mxu0 0.0
    %2272 = vmatprep.subr.mxu0 0.0
    %2273 = vmatpush1.msra.mxu0 0.0
    %2274 = vmatprep.subr.mxu0 0.0
    %2275 = vmatpush1.msra.mxu0 0.0
    %2276 = vmatprep.subr.mxu0 0.0
    %2277 = vmatpush1.msra.mxu0 0.0
    %2278 = vmatprep.subr.mxu0 0.0
    %2279 = vmatpush1.msra.mxu0 0.0
    %2280 = vmatprep.subr.mxu0 0.0
    %2281 = vmatpush1.msra.mxu0 0.0
    %2282 = vmatprep.subr.mxu0 0.0
    %2283 = vmatpush1.msra.mxu0 0.0
    %2284 = vmatprep.subr.mxu0 0.0
    %2285 = vmatpush1.msra.mxu0 0.0
    %2286 = vmatprep.subr.mxu0 0.0
    %2287 = vmatpush1.msra.mxu0 0.0
    %2288 = vmatprep.subr.mxu0 0.0
    %2289 = vmatpush1.msra.mxu0 0.0
    %2290 = vmatprep.subr.mxu0 0.0
    %2291 = vmatpush1.msra.mxu0 0.0
    %2292 = vmatprep.subr.mxu0 0.0
    %2293 = vmatpush1.msra.mxu0 0.0
    %2294 = vmatprep.subr.mxu0 0.0
    %2295 = vmatpush1.msra.mxu0 0.0
    %2296 = vmatprep.subr.mxu0 0.0
    %2297 = vmatpush1.msra.mxu0 0.0
    %2298 = vmatprep.mubr.f32.mxu0 0.0
    %2299 = vmatmul.mubr.f32.gmra.mrb[0].mxu0 %v2232
    %v2300 = vpop.f32.mrb[0].mxu0
    %v2301 = vadd.f32 %v249, %v2300
    %v2302 = vpop.f32.mrb[0].mxu0
    %2303 = vdwg.mxu0
    %v2305 = vrot.slane %v2228, 7
    %2306 = vrot.lane.b32.xlu0 %v2305, 64
    %v2307 = vpop.permute.xlu0 %2306
    %v2308 = vsel %vm142, %v2307, 0
    %2310 = vmatprep.subr.mxu0 0.0
    %2311 = vmatpush1.msra.mxu0 %v323
    %2312 = vmatprep.subr.mxu0 0.0
    %2313 = vmatpush1.msra.mxu0 %v324
    %2314 = vmatprep.subr.mxu0 0.0
    %2315 = vmatpush1.msra.mxu0 %v325
    %2316 = vmatprep.subr.mxu0 0.0
    %2317 = vmatpush1.msra.mxu0 %v326
    %2318 = vmatprep.subr.mxu0 0.0
    %2319 = vmatpush1.msra.mxu0 0.0
    %2320 = vmatprep.subr.mxu0 0.0
    %2321 = vmatpush1.msra.mxu0 0.0
    %2322 = vmatprep.subr.mxu0 0.0
    %2323 = vmatpush1.msra.mxu0 0.0
    %2324 = vmatprep.subr.mxu0 0.0
    %2325 = vmatpush1.msra.mxu0 0.0
    %2326 = vmatprep.subr.mxu0 0.0
    %2327 = vmatpush1.msra.mxu0 0.0
    %2328 = vmatprep.subr.mxu0 0.0
    %2329 = vmatpush1.msra.mxu0 0.0
    %2330 = vmatprep.subr.mxu0 0.0
    %2331 = vmatpush1.msra.mxu0 0.0
    %2332 = vmatprep.subr.mxu0 0.0
    %2333 = vmatpush1.msra.mxu0 0.0
    %2334 = vmatprep.subr.mxu0 0.0
    %2335 = vmatpush1.msra.mxu0 0.0
    %2336 = vmatprep.subr.mxu0 0.0
    %2337 = vmatpush1.msra.mxu0 0.0
    %2338 = vmatprep.subr.mxu0 0.0
    %2339 = vmatpush1.msra.mxu0 0.0
    %2340 = vmatprep.subr.mxu0 0.0
    %2341 = vmatpush1.msra.mxu0 0.0
    %2342 = vmatprep.subr.mxu0 0.0
    %2343 = vmatpush1.msra.mxu0 0.0
    %2344 = vmatprep.subr.mxu0 0.0
    %2345 = vmatpush1.msra.mxu0 0.0
    %2346 = vmatprep.subr.mxu0 0.0
    %2347 = vmatpush1.msra.mxu0 0.0
    %2348 = vmatprep.subr.mxu0 0.0
    %2349 = vmatpush1.msra.mxu0 0.0
    %2350 = vmatprep.subr.mxu0 0.0
    %2351 = vmatpush1.msra.mxu0 0.0
    %2352 = vmatprep.subr.mxu0 0.0
    %2353 = vmatpush1.msra.mxu0 0.0
    %2354 = vmatprep.subr.mxu0 0.0
    %2355 = vmatpush1.msra.mxu0 0.0
    %2356 = vmatprep.subr.mxu0 0.0
    %2357 = vmatpush1.msra.mxu0 0.0
    %2358 = vmatprep.subr.mxu0 0.0
    %2359 = vmatpush1.msra.mxu0 0.0
    %2360 = vmatprep.subr.mxu0 0.0
    %2361 = vmatpush1.msra.mxu0 0.0
    %2362 = vmatprep.subr.mxu0 0.0
    %2363 = vmatpush1.msra.mxu0 0.0
    %2364 = vmatprep.subr.mxu0 0.0
    %2365 = vmatpush1.msra.mxu0 0.0
    %2366 = vmatprep.subr.mxu0 0.0
    %2367 = vmatpush1.msra.mxu0 0.0
    %2368 = vmatprep.subr.mxu0 0.0
    %2369 = vmatpush1.msra.mxu0 0.0
    %2370 = vmatprep.subr.mxu0 0.0
    %2371 = vmatpush1.msra.mxu0 0.0
    %2372 = vmatprep.subr.mxu0 0.0
    %2373 = vmatpush1.msra.mxu0 0.0
    %2374 = vmatprep.mubr.f32.mxu0 0.0
    %2375 = vmatmul.mubr.f32.gmra.mrb[0].mxu0 %v2308
    %v2376 = vpop.f32.mrb[0].mxu0
    %v2377 = vadd.f32 %v2301, %v2376
    %v2378 = vpop.f32.mrb[0].mxu0
    %2379 = vdwg.mxu0
    %v2380 = vxor.u32 %v2377, 2147483648
    %v2381 = vmul.f32 %v2380, 1.442695
    %v2382 = vpow.pop %v2381
    %v2383 = vadd.f32 %v2382, 1.0
    %v2384 = vrcp.pop %v2383
    %v2385 = vmul.f32 1.0, %v2384
    %v2386 = vtanh.pop %v2377
    %v2387 = vmul.f32 %v2385, %v2115
    %2389 = vrot.lane.b32.xlu0 %v2386, 32
    %v2390 = vpop.permute.xlu0 %2389
    %v2392 = vmul.f32 %v2385, %v2390
    %2394 = vrot.lane.b32.xlu0 %v2392, 32
    %v2395 = vpop.permute.xlu0 %2394
    %v2397 = vadd.f32 %v2387, %v2395
    %v2398 = vtanh.pop %v2397
    %2400 = vrot.lane.b32.xlu0 %v2398, 32
    %v2401 = vpop.permute.xlu0 %2400
    %v2403 = vmul.f32 %v2385, %v2401
    %vm2404 = vcmp.eq.s32.totalorder %v137, 7
    %v2405 = vlaneseq
    %v2406 = vshrl.u32 %v2405, 7
    %v2407 = vsub.s32 0, %v2406
    %v2408 = vrot.slane %v2403, %v2407
    %v2409 = vsel %vm2404, %v2408, %v2127
    %v2410 = vld [vmem:[%s9] sm:$0xff]
    %v2411 = vld [vmem:[%s9 + $0x8] sm:$0xff]
    %v2412 = vld [vmem:[%s9 + $0x10] sm:$0xff]
    %v2413 = vld [vmem:[%s9 + $0x18] sm:$0xff]
    %v2414 = vld [vmem:[%s9 + $0x20] sm:$0xff]
    %v2415 = vld [vmem:[%s9 + $0x28] sm:$0xff]
    %v2416 = vld [vmem:[%s9 + $0x30] sm:$0xff]
    %v2417 = vld [vmem:[%s9 + $0x38] sm:$0xff]
    %v2418 = vld [vmem:[%s10] sm:$0x3]
    %v2420 = vlaneseq
    %v2421 = vshrl.u32 %v2420, 7
    %v2422 = vsub.s32 0, %v2421
    %v2423 = vrot.slane %v2418, %v2422
    %v2424 = vlaneseq
    %v2425 = vshrl.u32 %v2424, 7
    %v2426 = vsub.s32 1, %v2425
    %v2427 = vrot.slane %v2418, %v2426
    %2431 = vrot.lane.b32.xlu0 %v2409, 64
    %v2432 = vpop.permute.xlu0 %2431
    %v2433 = vsel %vm142, %v2432, 0
    %2435 = vmatprep.subr.mxu0 %v2411
    %2436 = vmatpush1.msra.mxu0 %v2410
    %2437 = vmatprep.subr.mxu0 %v2413
    %2438 = vmatpush1.msra.mxu0 %v2412
    %2439 = vmatprep.subr.mxu0 %v2415
    %2440 = vmatpush1.msra.mxu0 %v2414
    %2441 = vmatprep.subr.mxu0 %v2417
    %2442 = vmatpush1.msra.mxu0 %v2416
    %2443 = vmatprep.subr.mxu0 0.0
    %2444 = vmatpush1.msra.mxu0 0.0
    %2445 = vmatprep.subr.mxu0 0.0
    %2446 = vmatpush1.msra.mxu0 0.0
    %2447 = vmatprep.subr.mxu0 0.0
    %2448 = vmatpush1.msra.mxu0 0.0
    %2449 = vmatprep.subr.mxu0 0.0
    %2450 = vmatpush1.msra.mxu0 0.0
    %2451 = vmatprep.subr.mxu0 0.0
    %2452 = vmatpush1.msra.mxu0 0.0
    %2453 = vmatprep.subr.mxu0 0.0
    %2454 = vmatpush1.msra.mxu0 0.0
    %2455 = vmatprep.subr.mxu0 0.0
    %2456 = vmatpush1.msra.mxu0 0.0
    %2457 = vmatprep.subr.mxu0 0.0
    %2458 = vmatpush1.msra.mxu0 0.0
    %2459 = vmatprep.subr.mxu0 0.0
    %2460 = vmatpush1.msra.mxu0 0.0
    %2461 = vmatprep.subr.mxu0 0.0
    %2462 = vmatpush1.msra.mxu0 0.0
    %2463 = vmatprep.subr.mxu0 0.0
    %2464 = vmatpush1.msra.mxu0 0.0
    %2465 = vmatprep.subr.mxu0 0.0
    %2466 = vmatpush1.msra.mxu0 0.0
    %2467 = vmatprep.subr.mxu0 0.0
    %2468 = vmatpush1.msra.mxu0 0.0
    %2469 = vmatprep.subr.mxu0 0.0
    %2470 = vmatpush1.msra.mxu0 0.0
    %2471 = vmatprep.subr.mxu0 0.0
    %2472 = vmatpush1.msra.mxu0 0.0
    %2473 = vmatprep.subr.mxu0 0.0
    %2474 = vmatpush1.msra.mxu0 0.0
    %2475 = vmatprep.subr.mxu0 0.0
    %2476 = vmatpush1.msra.mxu0 0.0
    %2477 = vmatprep.subr.mxu0 0.0
    %2478 = vmatpush1.msra.mxu0 0.0
    %2479 = vmatprep.subr.mxu0 0.0
    %2480 = vmatpush1.msra.mxu0 0.0
    %2481 = vmatprep.subr.mxu0 0.0
    %2482 = vmatpush1.msra.mxu0 0.0
    %2483 = vmatprep.subr.mxu0 0.0
    %2484 = vmatpush1.msra.mxu0 0.0
    %2485 = vmatprep.subr.mxu0 0.0
    %2486 = vmatpush1.msra.mxu0 0.0
    %2487 = vmatprep.subr.mxu0 0.0
    %2488 = vmatpush1.msra.mxu0 0.0
    %2489 = vmatprep.subr.mxu0 0.0
    %2490 = vmatpush1.msra.mxu0 0.0
    %2491 = vmatprep.subr.mxu0 0.0
    %2492 = vmatpush1.msra.mxu0 0.0
    %2493 = vmatprep.subr.mxu0 0.0
    %2494 = vmatpush1.msra.mxu0 0.0
    %2495 = vmatprep.subr.mxu0 0.0
    %2496 = vmatpush1.msra.mxu0 0.0
    %2497 = vmatprep.subr.mxu0 0.0
    %2498 = vmatpush1.msra.mxu0 0.0
    %2499 = vmatprep.mubr.f32.mxu0 0.0
    %2500 = vmatmul.mubr.f32.gmra.mrb[0].mxu0 %v2433
    %v2501 = vpop.f32.mrb[0].mxu0
    %v2502 = vadd.f32 %v2423, %v2501
    %v2503 = vpop.f32.mrb[0].mxu0
    %v2504 = vadd.f32 %v2427, %v2503
    %2505 = vdwg.mxu0
    %vm2506 = vcmask 302336
    %v2507 = vsel %vm2506, %v2504, -inf
    %2508 = vmax.xlane.f32.xlu0 %v2507
    %v2509 = vpop.xlane.xlu0 %2508
    %v2510 = vsub.f32 %v2504, %v2509
    %v2511 = vmul.f32 %v2510, 1.442695
    %v2512 = vpow.pop %v2511
    %2514 = vrot.lane.b32.xlu0 %v2512, 96
    %v2515 = vpop.permute.xlu0 %2514
    %vm2517 = vcmask 39936
    %v2518 = vsel %vm2517, %v2515, 0.0
    %2519 = vadd.xlane.f32.xlu0 %v2518
    %v2520 = vpop.xlane.xlu0 %2519
    %v2521 = vlog2.pop %v2520
    %v2522 = vmul.f32 %v2521, 0.6931472
    %v2523 = vsub.f32 %v2510, %v2522
    %vm2524 = vcmask 654336
    %2525 = vst.msk [vmem:[%s11] sm:$0xff] %vm2524, %v2502
    %v2526 = vmul.f32 %v2502, 1.442695
    %v2527 = vpow.pop %v2526
    %v2528 = vmul.f32 %v2504, 1.442695
    %v2529 = vpow.pop %v2528
    %vm2530 = vcmask 1048192
    %2531 = vst.msk [vmem:[%s11] sm:$0xff] %vm2530, %v2527
    %2532 = vst.msk [vmem:[%s11 + $0x8] sm:$0xff] %vm142, %v2529
    %2533 = vst.msk [vmem:[%s11 + $0x8] sm:$0xff] %vm2506, %v2523
    %2534 = vrot.lane.b32.xlu0 %v2228, 64
    %v2535 = vpop.permute.xlu0 %2534
    %vm2537 = vcmask 261127
    %2538 = vst.msk [vmem:[#allocation2 - $0x7] sm:$0x80] %vm2537, %v2535
    %2540 = vrot.lane.b32.xlu0 %v2222, 96
    %v2541 = vpop.permute.xlu0 %2540
    %2543 = vst.msk [vmem:[#allocation4 - $0x7] sm:$0x80] %vm2537, %v2541
    %2545 = vrot.lane.b32.xlu0 %v2403, 64
    %v2546 = vpop.permute.xlu0 %2545
    %vm2548 = vcmask 253952
    %2549 = vst.msk [vmem:[#allocation2 + $0x1] sm:$0x1] %vm2548, %v2546
    %2551 = vrot.lane.b32.xlu0 %v2397, 96
    %v2552 = vpop.permute.xlu0 %2551
    %2554 = vst.msk [vmem:[#allocation4 + $0x1] sm:$0x1] %vm2548, %v2552
    // Predicated region
    $region46: #{mdlstm_forward.1} parent=1 // pred_check
      _
    $region47: #{mdlstm_forward.1} parent=1 // pred_check_branch
      %2556 = sbr.rel (0) target = $region49
    $region48: #{mdlstm_forward.1} parent=1 // pred_region
      _
    $region49: #{mdlstm_forward.1} parent=1 // pred_fallthru
      _
    // Predicated region
    $region50: #{mdlstm_forward.1} parent=1 // pred_check
      _
    $region51: #{mdlstm_forward.1} parent=1 // pred_check_branch
      %2558 = sbr.rel (0) target = $region53
    $region52: #{mdlstm_forward.1} parent=1 // pred_region
      %s2560 = ssub.s32 32, 32
      %2561 = vsyncadd [#allocation3], %s2560
      %s2563 = sshll.u32 [#allocation2], 4
      %s2564 = int_to_ptr.vmem [resolvable:$true] %s2563
      %2566 = dma.vmem_to_hbm [thread:$0]  %s2564, 32, %s12, [#allocation3]
    $region53: #{mdlstm_forward.1} parent=1 // pred_fallthru
      _
    // Predicated region
    $region54: #{mdlstm_forward.1} parent=1 // pred_check
      _
    $region55: #{mdlstm_forward.1} parent=1 // pred_check_branch
      %2568 = sbr.rel (0) target = $region57
    $region56: #{mdlstm_forward.1} parent=1 // pred_region
      %s2570 = ssub.s32 32, 32
      %2571 = vsyncadd [#allocation5], %s2570
      %s2573 = sshll.u32 [#allocation4], 4
      %s2574 = int_to_ptr.vmem [resolvable:$true] %s2573
      %2576 = dma.vmem_to_hbm [thread:$0]  %s2574, 32, %s13, [#allocation5]
    $region57: #{mdlstm_forward.1} parent=1 // pred_fallthru
      _
    // Predicated region
    $region58: #{mdlstm_forward.1} parent=1 // pred_check
      _
    $region59: #{mdlstm_forward.1} parent=1 // pred_check_branch
      %2578 = sbr.rel (0) target = $region61
    $region60: #{mdlstm_forward.1} parent=1 // pred_region
      _
    $region61: #{mdlstm_forward.1} parent=1 // pred_fallthru
      _
    // Predicated region
    $region62: #{mdlstm_forward.1} parent=1 // pred_check
      _
    $region63: #{mdlstm_forward.1} parent=1 // pred_check_branch
      %2580 = sbr.rel (0) target = $region65
    $region64: #{mdlstm_forward.1} parent=1 // pred_region
      %2581 = dma.done [#allocation3], 32
    $region65: #{mdlstm_forward.1} parent=1 // pred_fallthru
      _
    // Predicated region
    $region66: #{mdlstm_forward.1} parent=1 // pred_check
      _
    $region67: #{mdlstm_forward.1} parent=1 // pred_check_branch
      %2583 = sbr.rel (0) target = $region69
    $region68: #{mdlstm_forward.1} parent=1 // pred_region
      %2584 = dma.done [#allocation5], 32
    $region69: #{mdlstm_forward.1} parent=1 // pred_fallthru
      _
    %2585 = vsyncpa [#allocation3], 1
    %2586 = vsyncpa [#allocation5], 1

</llo_original>
